<compile_context>
chip_gen: v6e
topology: v6e:2x2x1
jax: 0.10.0
libtpu: 0.0.40
codegen_flags: <defaults>
</compile_context>

<pallas_src>
import jax
import jax.numpy as jnp
from jax.experimental import pallas as pl
from jax.experimental.pallas import tpu as pltpu

KERNEL_SIZE = 5
DIM = 2
K_BASES = KERNEL_SIZE ** DIM  # 25
C1 = 32   # conv1 output channels
C2 = 64   # conv2 output channels


# ----------------------------- Pallas kernel ------------------------------- #

def splinenet_fused_kernel(
        basis_ref, x_ref, gmat_ref, asum_ref, invdeg_ref, psum_ref, invcnt_ref,
        w1w_ref, w1r_ref, b1_ref,
        w2w_ref, w2r_ref, b2_ref,
        lw1_ref, lb1_ref, lw2_ref, lb2_ref, lw3_ref, lb3_ref,
        out_ref):
    f32 = jnp.float32
    bf16 = jnp.bfloat16

    basis = basis_ref[...]                                              # [E, 25] f32

    def spline_messages(feat_src_bf16, w_wide_ref, cout):
        # One wide MXU pass: P[:, k*cout:(k+1)*cout] = feat_src @ W[k]
        p = jnp.dot(feat_src_bf16, w_wide_ref[...],
                    preferred_element_type=f32)                         # [E, K*cout] f32
        # 25 VPU mul-adds on [E, cout] slabs (replaces the old tmat matmul + brep mul)
        msgs = basis[:, 0:1] * p[:, 0:cout]
        for k in range(1, K_BASES):
            msgs = msgs + basis[:, k:k + 1] * p[:, k * cout:(k + 1) * cout]
        return msgs                                                     # [E, cout] f32

    # ---- conv1: gather x[src], fused spline matmul, exact mean aggr, root, bias, relu
    x_src = jnp.dot(gmat_ref[...], x_ref[...], preferred_element_type=f32)    # [E, F]
    msgs1 = spline_messages(x_src.astype(bf16), w1w_ref, C1)                  # [E, 32]
    agg1 = jnp.dot(asum_ref[...], msgs1.astype(bf16),
                   preferred_element_type=f32) * invdeg_ref[...]              # [N, 32]
    root1 = jnp.dot(x_ref[...], w1r_ref[...], preferred_element_type=f32)     # [N, 32]
    h1 = jnp.maximum(agg1 + root1 + b1_ref[...], 0.0)                         # [N, 32] f32
    h1b = h1.astype(bf16)

    # ---- conv2: same structure on the in-VMEM h1 (never touches HBM)
    h1_src = jnp.dot(gmat_ref[...], h1b, preferred_element_type=f32)          # [E, 32]
    msgs2 = spline_messages(h1_src.astype(bf16), w2w_ref, C2)                 # [E, 64]
    agg2 = jnp.dot(asum_ref[...], msgs2.astype(bf16),
                   preferred_element_type=f32) * invdeg_ref[...]              # [N, 64]
    root2 = jnp.dot(h1b, w2r_ref[...], preferred_element_type=f32)            # [N, 64]
    h2 = jnp.maximum(agg2 + root2 + b2_ref[...], 0.0)                         # [N, 64]

    # ---- global mean pool: exact 0/1 sum matmul, f32 1/count scaling
    pooled = jnp.dot(psum_ref[...], h2.astype(bf16),
                     preferred_element_type=f32) * invcnt_ref[...]            # [B, 64]

    # ---- gated MLP head + log_softmax (f32 math)
    g1 = jax.nn.sigmoid(jnp.dot(pooled.astype(bf16), lw1_ref[...],
                                preferred_element_type=f32) + lb1_ref[...])
    z1 = pooled * g1
    g2 = jax.nn.sigmoid(jnp.dot(z1.astype(bf16), lw2_ref[...],
                                preferred_element_type=f32) + lb2_ref[...])
    z2 = z1 * g2
    logits = jnp.dot(z2.astype(bf16), lw3_ref[...],
                     preferred_element_type=f32) + lb3_ref[...]
    zc = logits - jnp.max(logits, axis=1, keepdims=True)
    out_ref[...] = zc - jnp.log(jnp.sum(jnp.exp(zc), axis=1, keepdims=True))


def _vmem_specs(n):
    return [pl.BlockSpec(memory_space=pltpu.MemorySpace.VMEM) for _ in range(n)]


# --------------------------- plain-JAX glue -------------------------------- #

def spline_basis_matrix(pseudo):
    """Degree-1 open B-spline basis on a 5x5 grid -> dense [E, 25] coefficients.
    Vectorized compare-and-select (no XLA scatter)."""
    v = jnp.clip(pseudo, 0.0, 1.0) * (KERNEL_SIZE - 1)
    lo = jnp.floor(v)
    frac = v - lo
    lo = lo.astype(jnp.int32)
    e = pseudo.shape[0]
    grid = jnp.arange(K_BASES, dtype=jnp.int32)
    bmat = jnp.zeros((e, K_BASES), jnp.float32)
    for bits in range(2 ** DIM):
        w = jnp.ones((e,), jnp.float32)
        idx = jnp.zeros((e,), jnp.int32)
        stride = 1
        for d in range(DIM):
            bd = (bits >> d) & 1
            w = w * (frac[:, d] if bd else (1.0 - frac[:, d]))
            idx = idx + jnp.clip(lo[:, d] + bd, 0, KERNEL_SIZE - 1) * stride
            stride *= KERNEL_SIZE
        bmat = bmat + (idx[:, None] == grid[None, :]).astype(jnp.float32) * w[:, None]
    return bmat


def init_params(key, num_features, num_classes, width):
    ks = jax.random.split(key, 12)

    def nrm(k, shape, scale):
        return jax.random.normal(k, shape, jnp.float32) * scale

    p = {}
    p["w1_spline"] = nrm(ks[0], (K_BASES, num_features, C1), 0.2)
    p["w1_root"] = nrm(ks[1], (num_features, C1), 0.2)
    p["b1"] = nrm(ks[2], (1, C1), 0.05)
    p["w2_spline"] = nrm(ks[3], (K_BASES, C1, C2), 0.1)
    p["w2_root"] = nrm(ks[4], (C1, C2), 0.1)
    p["b2"] = nrm(ks[5], (1, C2), 0.05)
    p["lw1"] = nrm(ks[6], (C2, width[0]), 0.1)
    p["lb1"] = nrm(ks[7], (1, width[0]), 0.05)
    p["lw2"] = nrm(ks[8], (width[0], width[1]), 0.1)
    p["lb2"] = nrm(ks[9], (1, width[1]), 0.05)
    p["lw3"] = nrm(ks[10], (width[1], num_classes), 0.1)
    p["lb3"] = nrm(ks[11], (1, num_classes), 0.05)
    return p


def splinenet_forward(params, x, edge_index, edge_attr, batch, n_graphs):
    src, dst = edge_index[0], edge_index[1]
    n, f = x.shape
    e = edge_attr.shape[0]
    bf16 = jnp.bfloat16

    # Gated head requires width[0] == C2 (and width[1] == width[0]) to broadcast,
    # exactly as in the PyTorch module.
    w0 = params["lw1"].shape[1]
    w1 = params["lw2"].shape[1]
    ncls = params["lw3"].shape[1]
    assert w0 == C2 and w1 == w0, "gated head needs width == (64, 64)"

    basis = spline_basis_matrix(edge_attr)                              # [E, 25] f32

    # Exact 0/1 gather / scatter-sum / pool-sum matrices (bf16-exact); the mean
    # scaling stays in f32 vectors applied after the MXU sums.
    gmat = (src[:, None] == jnp.arange(n)[None, :]).astype(jnp.float32)          # [E, N]
    asum = (dst[None, :] == jnp.arange(n)[:, None]).astype(jnp.float32)          # [N, E]
    inv_deg = 1.0 / jnp.maximum(asum.sum(axis=1, keepdims=True), 1.0)            # [N, 1]
    psum = (batch[None, :] == jnp.arange(n_graphs)[:, None]).astype(jnp.float32)  # [B, N]
    inv_cnt = 1.0 / jnp.maximum(psum.sum(axis=1, keepdims=True), 1.0)            # [B, 1]

    # Spline weights rearranged to "wide" layout [Cin, K*Cout]:
    #   w_wide[f, k*Cout + c] = W[k, f, c]
    w1w = jnp.transpose(params["w1_spline"], (1, 0, 2)).reshape(f, K_BASES * C1)
    w2w = jnp.transpose(params["w2_spline"], (1, 0, 2)).reshape(C1, K_BASES * C2)

    args = (
        basis, x.astype(bf16), gmat.astype(bf16), asum.astype(bf16), inv_deg,
        psum.astype(bf16), inv_cnt,
        w1w.astype(bf16), params["w1_root"].astype(bf16), params["b1"],
        w2w.astype(bf16), params["w2_root"].astype(bf16), params["b2"],
        params["lw1"].astype(bf16), params["lb1"],
        params["lw2"].astype(bf16), params["lb2"],
        params["lw3"].astype(bf16), params["lb3"],
    )

    flops = 2 * (
        e * n * f + e * f * K_BASES * C1 + n * e * C1 + n * f * C1 +
        e * n * C1 + e * C1 * K_BASES * C2 + n * e * C2 + n * C1 * C2 +
        n_graphs * n * C2 +
        n_graphs * (C2 * w0 + w0 * w1 + w1 * ncls)
    ) + 2 * e * K_BASES * (C1 + C2)
    bytes_accessed = int(sum(a.size * a.dtype.itemsize for a in args)
                         + n_graphs * ncls * 4)
    cost = pl.CostEstimate(flops=int(flops),
                           transcendentals=int(n_graphs * (w0 + w1 + ncls)),
                           bytes_accessed=bytes_accessed)

    return pl.pallas_call(
        splinenet_fused_kernel,
        out_shape=jax.ShapeDtypeStruct((n_graphs, ncls), jnp.float32),
        in_specs=_vmem_specs(len(args)),
        out_specs=pl.BlockSpec(memory_space=pltpu.MemorySpace.VMEM),
        cost_estimate=cost,
    )(*args)


if __name__ == "__main__":
    num_features = 4
    num_classes = 10
    width = (64, 64)   # must be (64, 64) so the gated head broadcasts, as in PyTorch
    n_nodes, n_edges, n_graphs = 12, 40, 2

    key = jax.random.PRNGKey(0)
    kx, ks, kd, kp = jax.random.split(key, 4)
    x = jax.random.normal(kx, (n_nodes, num_features), jnp.float32)
    src = jax.random.randint(ks, (n_edges,), 0, n_nodes)
    dst = jax.random.randint(kd, (n_edges,), 0, n_nodes)
    edge_index = jnp.stack([src, dst], axis=0)                        # [2, E]
    edge_attr = jax.random.uniform(kp, (n_edges, DIM), jnp.float32)   # pseudo-coords in [0,1]^2
    batch = jnp.concatenate([jnp.zeros((n_nodes // 2,), jnp.int32),
                             jnp.ones((n_nodes - n_nodes // 2,), jnp.int32)])

    params = init_params(jax.random.PRNGKey(1), num_features, num_classes, width)

    out = splinenet_forward(params, x, edge_index, edge_attr, batch, n_graphs)
    out = jax.block_until_ready(out)

    assert out.shape == (n_graphs, num_classes)
    assert bool(jnp.all(jnp.isfinite(out)))
    row_sums = jnp.sum(jnp.exp(out), axis=1)   # log_softmax rows must exponentiate to 1
    assert bool(jnp.allclose(row_sums, 1.0, atol=1e-3))
    print("KERNEL_OK")
</pallas_src>

<mosaic_0001>
module attributes {stable_mosaic.version = 11 : i64} {
  func.func @splinenet_fused_kernel(%arg0: memref<40x25xf32, #tpu.memory_space<vmem>>, %arg1: memref<12x4xbf16, #tpu.memory_space<vmem>>, %arg2: memref<40x12xbf16, #tpu.memory_space<vmem>>, %arg3: memref<12x40xbf16, #tpu.memory_space<vmem>>, %arg4: memref<12x1xf32, #tpu.memory_space<vmem>>, %arg5: memref<2x12xbf16, #tpu.memory_space<vmem>>, %arg6: memref<2x1xf32, #tpu.memory_space<vmem>>, %arg7: memref<4x800xbf16, #tpu.memory_space<vmem>>, %arg8: memref<4x32xbf16, #tpu.memory_space<vmem>>, %arg9: memref<1x32xf32, #tpu.memory_space<vmem>>, %arg10: memref<32x1600xbf16, #tpu.memory_space<vmem>>, %arg11: memref<32x64xbf16, #tpu.memory_space<vmem>>, %arg12: memref<1x64xf32, #tpu.memory_space<vmem>>, %arg13: memref<64x64xbf16, #tpu.memory_space<vmem>>, %arg14: memref<1x64xf32, #tpu.memory_space<vmem>>, %arg15: memref<64x64xbf16, #tpu.memory_space<vmem>>, %arg16: memref<1x64xf32, #tpu.memory_space<vmem>>, %arg17: memref<64x10xbf16, #tpu.memory_space<vmem>>, %arg18: memref<1x10xf32, #tpu.memory_space<vmem>>, %arg19: memref<2x10xf32, #tpu.memory_space<vmem>>) attributes {dimension_semantics = [], scalar_prefetch = 0 : i64, scratch_operands = 0 : i64, tpu.core_type = #tpu.core_type<tc>} {
    %c0 = arith.constant 0 : index
    %c0_0 = arith.constant 0 : index
    %0 = vector.load %arg0[%c0, %c0_0] : memref<40x25xf32, #tpu.memory_space<vmem>>, vector<40x25xf32>
    %c0_1 = arith.constant 0 : index
    %c0_2 = arith.constant 0 : index
    %1 = vector.load %arg2[%c0_1, %c0_2] : memref<40x12xbf16, #tpu.memory_space<vmem>>, vector<40x12xbf16>
    %c0_3 = arith.constant 0 : index
    %c0_4 = arith.constant 0 : index
    %2 = vector.load %arg1[%c0_3, %c0_4] : memref<12x4xbf16, #tpu.memory_space<vmem>>, vector<12x4xbf16>
    %cst = arith.constant dense<0.000000e+00> : vector<40x4xf32>
    %3 = tpu.matmul %1, %2, %cst {dimension_numbers = #tpu.dot_dimension_numbers<[1], [0], [0], [1], [0, 0, 1, 1], [], []>} : vector<40x12xbf16>, vector<12x4xbf16>, vector<40x4xf32> -> vector<40x4xf32>
    %4 = arith.truncf %3 : vector<40x4xf32> to vector<40x4xbf16>
    %c0_5 = arith.constant 0 : index
    %c0_6 = arith.constant 0 : index
    %5 = vector.load %arg7[%c0_5, %c0_6] : memref<4x800xbf16, #tpu.memory_space<vmem>>, vector<4x800xbf16>
    %cst_7 = arith.constant dense<0.000000e+00> : vector<40x800xf32>
    %6 = tpu.matmul %4, %5, %cst_7 {dimension_numbers = #tpu.dot_dimension_numbers<[1], [0], [0], [1], [0, 0, 1, 1], [], []>} : vector<40x4xbf16>, vector<4x800xbf16>, vector<40x800xf32> -> vector<40x800xf32>
    %7 = vector.extract_strided_slice %0 {offsets = [0, 0], sizes = [40, 1], strides = [1, 1]} : vector<40x25xf32> to vector<40x1xf32>
    %8 = vector.extract_strided_slice %6 {offsets = [0, 0], sizes = [40, 32], strides = [1, 1]} : vector<40x800xf32> to vector<40x32xf32>
    %9 = vector.broadcast %7 : vector<40x1xf32> to vector<40x32xf32>
    %10 = arith.mulf %9, %8 : vector<40x32xf32>
    %11 = vector.extract_strided_slice %0 {offsets = [0, 1], sizes = [40, 1], strides = [1, 1]} : vector<40x25xf32> to vector<40x1xf32>
    %12 = vector.extract_strided_slice %6 {offsets = [0, 32], sizes = [40, 32], strides = [1, 1]} : vector<40x800xf32> to vector<40x32xf32>
    %13 = vector.broadcast %11 : vector<40x1xf32> to vector<40x32xf32>
    %14 = arith.mulf %13, %12 : vector<40x32xf32>
    %15 = arith.addf %10, %14 : vector<40x32xf32>
    %16 = vector.extract_strided_slice %0 {offsets = [0, 2], sizes = [40, 1], strides = [1, 1]} : vector<40x25xf32> to vector<40x1xf32>
    %17 = vector.extract_strided_slice %6 {offsets = [0, 64], sizes = [40, 32], strides = [1, 1]} : vector<40x800xf32> to vector<40x32xf32>
    %18 = vector.broadcast %16 : vector<40x1xf32> to vector<40x32xf32>
    %19 = arith.mulf %18, %17 : vector<40x32xf32>
    %20 = arith.addf %15, %19 : vector<40x32xf32>
    %21 = vector.extract_strided_slice %0 {offsets = [0, 3], sizes = [40, 1], strides = [1, 1]} : vector<40x25xf32> to vector<40x1xf32>
    %22 = vector.extract_strided_slice %6 {offsets = [0, 96], sizes = [40, 32], strides = [1, 1]} : vector<40x800xf32> to vector<40x32xf32>
    %23 = vector.broadcast %21 : vector<40x1xf32> to vector<40x32xf32>
    %24 = arith.mulf %23, %22 : vector<40x32xf32>
    %25 = arith.addf %20, %24 : vector<40x32xf32>
    %26 = vector.extract_strided_slice %0 {offsets = [0, 4], sizes = [40, 1], strides = [1, 1]} : vector<40x25xf32> to vector<40x1xf32>
    %27 = vector.extract_strided_slice %6 {offsets = [0, 128], sizes = [40, 32], strides = [1, 1]} : vector<40x800xf32> to vector<40x32xf32>
    %28 = vector.broadcast %26 : vector<40x1xf32> to vector<40x32xf32>
    %29 = arith.mulf %28, %27 : vector<40x32xf32>
    %30 = arith.addf %25, %29 : vector<40x32xf32>
    %31 = vector.extract_strided_slice %0 {offsets = [0, 5], sizes = [40, 1], strides = [1, 1]} : vector<40x25xf32> to vector<40x1xf32>
    %32 = vector.extract_strided_slice %6 {offsets = [0, 160], sizes = [40, 32], strides = [1, 1]} : vector<40x800xf32> to vector<40x32xf32>
    %33 = vector.broadcast %31 : vector<40x1xf32> to vector<40x32xf32>
    %34 = arith.mulf %33, %32 : vector<40x32xf32>
    %35 = arith.addf %30, %34 : vector<40x32xf32>
    %36 = vector.extract_strided_slice %0 {offsets = [0, 6], sizes = [40, 1], strides = [1, 1]} : vector<40x25xf32> to vector<40x1xf32>
    %37 = vector.extract_strided_slice %6 {offsets = [0, 192], sizes = [40, 32], strides = [1, 1]} : vector<40x800xf32> to vector<40x32xf32>
    %38 = vector.broadcast %36 : vector<40x1xf32> to vector<40x32xf32>
    %39 = arith.mulf %38, %37 : vector<40x32xf32>
    %40 = arith.addf %35, %39 : vector<40x32xf32>
    %41 = vector.extract_strided_slice %0 {offsets = [0, 7], sizes = [40, 1], strides = [1, 1]} : vector<40x25xf32> to vector<40x1xf32>
    %42 = vector.extract_strided_slice %6 {offsets = [0, 224], sizes = [40, 32], strides = [1, 1]} : vector<40x800xf32> to vector<40x32xf32>
    %43 = vector.broadcast %41 : vector<40x1xf32> to vector<40x32xf32>
    %44 = arith.mulf %43, %42 : vector<40x32xf32>
    %45 = arith.addf %40, %44 : vector<40x32xf32>
    %46 = vector.extract_strided_slice %0 {offsets = [0, 8], sizes = [40, 1], strides = [1, 1]} : vector<40x25xf32> to vector<40x1xf32>
    %47 = vector.extract_strided_slice %6 {offsets = [0, 256], sizes = [40, 32], strides = [1, 1]} : vector<40x800xf32> to vector<40x32xf32>
    %48 = vector.broadcast %46 : vector<40x1xf32> to vector<40x32xf32>
    %49 = arith.mulf %48, %47 : vector<40x32xf32>
    %50 = arith.addf %45, %49 : vector<40x32xf32>
    %51 = vector.extract_strided_slice %0 {offsets = [0, 9], sizes = [40, 1], strides = [1, 1]} : vector<40x25xf32> to vector<40x1xf32>
    %52 = vector.extract_strided_slice %6 {offsets = [0, 288], sizes = [40, 32], strides = [1, 1]} : vector<40x800xf32> to vector<40x32xf32>
    %53 = vector.broadcast %51 : vector<40x1xf32> to vector<40x32xf32>
    %54 = arith.mulf %53, %52 : vector<40x32xf32>
    %55 = arith.addf %50, %54 : vector<40x32xf32>
    %56 = vector.extract_strided_slice %0 {offsets = [0, 10], sizes = [40, 1], strides = [1, 1]} : vector<40x25xf32> to vector<40x1xf32>
    %57 = vector.extract_strided_slice %6 {offsets = [0, 320], sizes = [40, 32], strides = [1, 1]} : vector<40x800xf32> to vector<40x32xf32>
    %58 = vector.broadcast %56 : vector<40x1xf32> to vector<40x32xf32>
    %59 = arith.mulf %58, %57 : vector<40x32xf32>
    %60 = arith.addf %55, %59 : vector<40x32xf32>
    %61 = vector.extract_strided_slice %0 {offsets = [0, 11], sizes = [40, 1], strides = [1, 1]} : vector<40x25xf32> to vector<40x1xf32>
    %62 = vector.extract_strided_slice %6 {offsets = [0, 352], sizes = [40, 32], strides = [1, 1]} : vector<40x800xf32> to vector<40x32xf32>
    %63 = vector.broadcast %61 : vector<40x1xf32> to vector<40x32xf32>
    %64 = arith.mulf %63, %62 : vector<40x32xf32>
    %65 = arith.addf %60, %64 : vector<40x32xf32>
    %66 = vector.extract_strided_slice %0 {offsets = [0, 12], sizes = [40, 1], strides = [1, 1]} : vector<40x25xf32> to vector<40x1xf32>
    %67 = vector.extract_strided_slice %6 {offsets = [0, 384], sizes = [40, 32], strides = [1, 1]} : vector<40x800xf32> to vector<40x32xf32>
    %68 = vector.broadcast %66 : vector<40x1xf32> to vector<40x32xf32>
    %69 = arith.mulf %68, %67 : vector<40x32xf32>
    %70 = arith.addf %65, %69 : vector<40x32xf32>
    %71 = vector.extract_strided_slice %0 {offsets = [0, 13], sizes = [40, 1], strides = [1, 1]} : vector<40x25xf32> to vector<40x1xf32>
    %72 = vector.extract_strided_slice %6 {offsets = [0, 416], sizes = [40, 32], strides = [1, 1]} : vector<40x800xf32> to vector<40x32xf32>
    %73 = vector.broadcast %71 : vector<40x1xf32> to vector<40x32xf32>
    %74 = arith.mulf %73, %72 : vector<40x32xf32>
    %75 = arith.addf %70, %74 : vector<40x32xf32>
    %76 = vector.extract_strided_slice %0 {offsets = [0, 14], sizes = [40, 1], strides = [1, 1]} : vector<40x25xf32> to vector<40x1xf32>
    %77 = vector.extract_strided_slice %6 {offsets = [0, 448], sizes = [40, 32], strides = [1, 1]} : vector<40x800xf32> to vector<40x32xf32>
    %78 = vector.broadcast %76 : vector<40x1xf32> to vector<40x32xf32>
    %79 = arith.mulf %78, %77 : vector<40x32xf32>
    %80 = arith.addf %75, %79 : vector<40x32xf32>
    %81 = vector.extract_strided_slice %0 {offsets = [0, 15], sizes = [40, 1], strides = [1, 1]} : vector<40x25xf32> to vector<40x1xf32>
    %82 = vector.extract_strided_slice %6 {offsets = [0, 480], sizes = [40, 32], strides = [1, 1]} : vector<40x800xf32> to vector<40x32xf32>
    %83 = vector.broadcast %81 : vector<40x1xf32> to vector<40x32xf32>
    %84 = arith.mulf %83, %82 : vector<40x32xf32>
    %85 = arith.addf %80, %84 : vector<40x32xf32>
    %86 = vector.extract_strided_slice %0 {offsets = [0, 16], sizes = [40, 1], strides = [1, 1]} : vector<40x25xf32> to vector<40x1xf32>
    %87 = vector.extract_strided_slice %6 {offsets = [0, 512], sizes = [40, 32], strides = [1, 1]} : vector<40x800xf32> to vector<40x32xf32>
    %88 = vector.broadcast %86 : vector<40x1xf32> to vector<40x32xf32>
    %89 = arith.mulf %88, %87 : vector<40x32xf32>
    %90 = arith.addf %85, %89 : vector<40x32xf32>
    %91 = vector.extract_strided_slice %0 {offsets = [0, 17], sizes = [40, 1], strides = [1, 1]} : vector<40x25xf32> to vector<40x1xf32>
    %92 = vector.extract_strided_slice %6 {offsets = [0, 544], sizes = [40, 32], strides = [1, 1]} : vector<40x800xf32> to vector<40x32xf32>
    %93 = vector.broadcast %91 : vector<40x1xf32> to vector<40x32xf32>
    %94 = arith.mulf %93, %92 : vector<40x32xf32>
    %95 = arith.addf %90, %94 : vector<40x32xf32>
    %96 = vector.extract_strided_slice %0 {offsets = [0, 18], sizes = [40, 1], strides = [1, 1]} : vector<40x25xf32> to vector<40x1xf32>
    %97 = vector.extract_strided_slice %6 {offsets = [0, 576], sizes = [40, 32], strides = [1, 1]} : vector<40x800xf32> to vector<40x32xf32>
    %98 = vector.broadcast %96 : vector<40x1xf32> to vector<40x32xf32>
    %99 = arith.mulf %98, %97 : vector<40x32xf32>
    %100 = arith.addf %95, %99 : vector<40x32xf32>
    %101 = vector.extract_strided_slice %0 {offsets = [0, 19], sizes = [40, 1], strides = [1, 1]} : vector<40x25xf32> to vector<40x1xf32>
    %102 = vector.extract_strided_slice %6 {offsets = [0, 608], sizes = [40, 32], strides = [1, 1]} : vector<40x800xf32> to vector<40x32xf32>
    %103 = vector.broadcast %101 : vector<40x1xf32> to vector<40x32xf32>
    %104 = arith.mulf %103, %102 : vector<40x32xf32>
    %105 = arith.addf %100, %104 : vector<40x32xf32>
    %106 = vector.extract_strided_slice %0 {offsets = [0, 20], sizes = [40, 1], strides = [1, 1]} : vector<40x25xf32> to vector<40x1xf32>
    %107 = vector.extract_strided_slice %6 {offsets = [0, 640], sizes = [40, 32], strides = [1, 1]} : vector<40x800xf32> to vector<40x32xf32>
    %108 = vector.broadcast %106 : vector<40x1xf32> to vector<40x32xf32>
    %109 = arith.mulf %108, %107 : vector<40x32xf32>
    %110 = arith.addf %105, %109 : vector<40x32xf32>
    %111 = vector.extract_strided_slice %0 {offsets = [0, 21], sizes = [40, 1], strides = [1, 1]} : vector<40x25xf32> to vector<40x1xf32>
    %112 = vector.extract_strided_slice %6 {offsets = [0, 672], sizes = [40, 32], strides = [1, 1]} : vector<40x800xf32> to vector<40x32xf32>
    %113 = vector.broadcast %111 : vector<40x1xf32> to vector<40x32xf32>
    %114 = arith.mulf %113, %112 : vector<40x32xf32>
    %115 = arith.addf %110, %114 : vector<40x32xf32>
    %116 = vector.extract_strided_slice %0 {offsets = [0, 22], sizes = [40, 1], strides = [1, 1]} : vector<40x25xf32> to vector<40x1xf32>
    %117 = vector.extract_strided_slice %6 {offsets = [0, 704], sizes = [40, 32], strides = [1, 1]} : vector<40x800xf32> to vector<40x32xf32>
    %118 = vector.broadcast %116 : vector<40x1xf32> to vector<40x32xf32>
    %119 = arith.mulf %118, %117 : vector<40x32xf32>
    %120 = arith.addf %115, %119 : vector<40x32xf32>
    %121 = vector.extract_strided_slice %0 {offsets = [0, 23], sizes = [40, 1], strides = [1, 1]} : vector<40x25xf32> to vector<40x1xf32>
    %122 = vector.extract_strided_slice %6 {offsets = [0, 736], sizes = [40, 32], strides = [1, 1]} : vector<40x800xf32> to vector<40x32xf32>
    %123 = vector.broadcast %121 : vector<40x1xf32> to vector<40x32xf32>
    %124 = arith.mulf %123, %122 : vector<40x32xf32>
    %125 = arith.addf %120, %124 : vector<40x32xf32>
    %126 = vector.extract_strided_slice %0 {offsets = [0, 24], sizes = [40, 1], strides = [1, 1]} : vector<40x25xf32> to vector<40x1xf32>
    %127 = vector.extract_strided_slice %6 {offsets = [0, 768], sizes = [40, 32], strides = [1, 1]} : vector<40x800xf32> to vector<40x32xf32>
    %128 = vector.broadcast %126 : vector<40x1xf32> to vector<40x32xf32>
    %129 = arith.mulf %128, %127 : vector<40x32xf32>
    %130 = arith.addf %125, %129 : vector<40x32xf32>
    %c0_8 = arith.constant 0 : index
    %c0_9 = arith.constant 0 : index
    %131 = vector.load %arg3[%c0_8, %c0_9] : memref<12x40xbf16, #tpu.memory_space<vmem>>, vector<12x40xbf16>
    %132 = arith.truncf %130 : vector<40x32xf32> to vector<40x32xbf16>
    %cst_10 = arith.constant dense<0.000000e+00> : vector<12x32xf32>
    %133 = tpu.matmul %131, %132, %cst_10 {dimension_numbers = #tpu.dot_dimension_numbers<[1], [0], [0], [1], [0, 0, 1, 1], [], []>} : vector<12x40xbf16>, vector<40x32xbf16>, vector<12x32xf32> -> vector<12x32xf32>
    %c0_11 = arith.constant 0 : index
    %c0_12 = arith.constant 0 : index
    %134 = vector.load %arg4[%c0_11, %c0_12] : memref<12x1xf32, #tpu.memory_space<vmem>>, vector<12x1xf32>
    %135 = vector.broadcast %134 : vector<12x1xf32> to vector<12x32xf32>
    %136 = arith.mulf %133, %135 : vector<12x32xf32>
    %c0_13 = arith.constant 0 : index
    %c0_14 = arith.constant 0 : index
    %137 = vector.load %arg1[%c0_13, %c0_14] : memref<12x4xbf16, #tpu.memory_space<vmem>>, vector<12x4xbf16>
    %c0_15 = arith.constant 0 : index
    %c0_16 = arith.constant 0 : index
    %138 = vector.load %arg8[%c0_15, %c0_16] : memref<4x32xbf16, #tpu.memory_space<vmem>>, vector<4x32xbf16>
    %cst_17 = arith.constant dense<0.000000e+00> : vector<12x32xf32>
    %139 = tpu.matmul %137, %138, %cst_17 {dimension_numbers = #tpu.dot_dimension_numbers<[1], [0], [0], [1], [0, 0, 1, 1], [], []>} : vector<12x4xbf16>, vector<4x32xbf16>, vector<12x32xf32> -> vector<12x32xf32>
    %140 = arith.addf %136, %139 : vector<12x32xf32>
    %c0_18 = arith.constant 0 : index
    %c0_19 = arith.constant 0 : index
    %141 = vector.load %arg9[%c0_18, %c0_19] : memref<1x32xf32, #tpu.memory_space<vmem>>, vector<1x32xf32>
    %142 = vector.broadcast %141 : vector<1x32xf32> to vector<12x32xf32>
    %143 = arith.addf %140, %142 : vector<12x32xf32>
    %cst_20 = arith.constant 0.000000e+00 : f32
    %144 = vector.broadcast %cst_20 : f32 to vector<12x32xf32>
    %145 = arith.maximumf %143, %144 : vector<12x32xf32>
    %146 = arith.truncf %145 : vector<12x32xf32> to vector<12x32xbf16>
    %c0_21 = arith.constant 0 : index
    %c0_22 = arith.constant 0 : index
    %147 = vector.load %arg2[%c0_21, %c0_22] : memref<40x12xbf16, #tpu.memory_space<vmem>>, vector<40x12xbf16>
    %cst_23 = arith.constant dense<0.000000e+00> : vector<40x32xf32>
    %148 = tpu.matmul %147, %146, %cst_23 {dimension_numbers = #tpu.dot_dimension_numbers<[1], [0], [0], [1], [0, 0, 1, 1], [], []>} : vector<40x12xbf16>, vector<12x32xbf16>, vector<40x32xf32> -> vector<40x32xf32>
    %149 = arith.truncf %148 : vector<40x32xf32> to vector<40x32xbf16>
    %c0_24 = arith.constant 0 : index
    %c0_25 = arith.constant 0 : index
    %150 = vector.load %arg10[%c0_24, %c0_25] : memref<32x1600xbf16, #tpu.memory_space<vmem>>, vector<32x1600xbf16>
    %cst_26 = arith.constant dense<0.000000e+00> : vector<40x1600xf32>
    %151 = tpu.matmul %149, %150, %cst_26 {dimension_numbers = #tpu.dot_dimension_numbers<[1], [0], [0], [1], [0, 0, 1, 1], [], []>} : vector<40x32xbf16>, vector<32x1600xbf16>, vector<40x1600xf32> -> vector<40x1600xf32>
    %152 = vector.extract_strided_slice %0 {offsets = [0, 0], sizes = [40, 1], strides = [1, 1]} : vector<40x25xf32> to vector<40x1xf32>
    %153 = vector.extract_strided_slice %151 {offsets = [0, 0], sizes = [40, 64], strides = [1, 1]} : vector<40x1600xf32> to vector<40x64xf32>
    %154 = vector.broadcast %152 : vector<40x1xf32> to vector<40x64xf32>
    %155 = arith.mulf %154, %153 : vector<40x64xf32>
    %156 = vector.extract_strided_slice %0 {offsets = [0, 1], sizes = [40, 1], strides = [1, 1]} : vector<40x25xf32> to vector<40x1xf32>
    %157 = vector.extract_strided_slice %151 {offsets = [0, 64], sizes = [40, 64], strides = [1, 1]} : vector<40x1600xf32> to vector<40x64xf32>
    %158 = vector.broadcast %156 : vector<40x1xf32> to vector<40x64xf32>
    %159 = arith.mulf %158, %157 : vector<40x64xf32>
    %160 = arith.addf %155, %159 : vector<40x64xf32>
    %161 = vector.extract_strided_slice %0 {offsets = [0, 2], sizes = [40, 1], strides = [1, 1]} : vector<40x25xf32> to vector<40x1xf32>
    %162 = vector.extract_strided_slice %151 {offsets = [0, 128], sizes = [40, 64], strides = [1, 1]} : vector<40x1600xf32> to vector<40x64xf32>
    %163 = vector.broadcast %161 : vector<40x1xf32> to vector<40x64xf32>
    %164 = arith.mulf %163, %162 : vector<40x64xf32>
    %165 = arith.addf %160, %164 : vector<40x64xf32>
    %166 = vector.extract_strided_slice %0 {offsets = [0, 3], sizes = [40, 1], strides = [1, 1]} : vector<40x25xf32> to vector<40x1xf32>
    %167 = vector.extract_strided_slice %151 {offsets = [0, 192], sizes = [40, 64], strides = [1, 1]} : vector<40x1600xf32> to vector<40x64xf32>
    %168 = vector.broadcast %166 : vector<40x1xf32> to vector<40x64xf32>
    %169 = arith.mulf %168, %167 : vector<40x64xf32>
    %170 = arith.addf %165, %169 : vector<40x64xf32>
    %171 = vector.extract_strided_slice %0 {offsets = [0, 4], sizes = [40, 1], strides = [1, 1]} : vector<40x25xf32> to vector<40x1xf32>
    %172 = vector.extract_strided_slice %151 {offsets = [0, 256], sizes = [40, 64], strides = [1, 1]} : vector<40x1600xf32> to vector<40x64xf32>
    %173 = vector.broadcast %171 : vector<40x1xf32> to vector<40x64xf32>
    %174 = arith.mulf %173, %172 : vector<40x64xf32>
    %175 = arith.addf %170, %174 : vector<40x64xf32>
    %176 = vector.extract_strided_slice %0 {offsets = [0, 5], sizes = [40, 1], strides = [1, 1]} : vector<40x25xf32> to vector<40x1xf32>
    %177 = vector.extract_strided_slice %151 {offsets = [0, 320], sizes = [40, 64], strides = [1, 1]} : vector<40x1600xf32> to vector<40x64xf32>
    %178 = vector.broadcast %176 : vector<40x1xf32> to vector<40x64xf32>
    %179 = arith.mulf %178, %177 : vector<40x64xf32>
    %180 = arith.addf %175, %179 : vector<40x64xf32>
    %181 = vector.extract_strided_slice %0 {offsets = [0, 6], sizes = [40, 1], strides = [1, 1]} : vector<40x25xf32> to vector<40x1xf32>
    %182 = vector.extract_strided_slice %151 {offsets = [0, 384], sizes = [40, 64], strides = [1, 1]} : vector<40x1600xf32> to vector<40x64xf32>
    %183 = vector.broadcast %181 : vector<40x1xf32> to vector<40x64xf32>
    %184 = arith.mulf %183, %182 : vector<40x64xf32>
    %185 = arith.addf %180, %184 : vector<40x64xf32>
    %186 = vector.extract_strided_slice %0 {offsets = [0, 7], sizes = [40, 1], strides = [1, 1]} : vector<40x25xf32> to vector<40x1xf32>
    %187 = vector.extract_strided_slice %151 {offsets = [0, 448], sizes = [40, 64], strides = [1, 1]} : vector<40x1600xf32> to vector<40x64xf32>
    %188 = vector.broadcast %186 : vector<40x1xf32> to vector<40x64xf32>
    %189 = arith.mulf %188, %187 : vector<40x64xf32>
    %190 = arith.addf %185, %189 : vector<40x64xf32>
    %191 = vector.extract_strided_slice %0 {offsets = [0, 8], sizes = [40, 1], strides = [1, 1]} : vector<40x25xf32> to vector<40x1xf32>
    %192 = vector.extract_strided_slice %151 {offsets = [0, 512], sizes = [40, 64], strides = [1, 1]} : vector<40x1600xf32> to vector<40x64xf32>
    %193 = vector.broadcast %191 : vector<40x1xf32> to vector<40x64xf32>
    %194 = arith.mulf %193, %192 : vector<40x64xf32>
    %195 = arith.addf %190, %194 : vector<40x64xf32>
    %196 = vector.extract_strided_slice %0 {offsets = [0, 9], sizes = [40, 1], strides = [1, 1]} : vector<40x25xf32> to vector<40x1xf32>
    %197 = vector.extract_strided_slice %151 {offsets = [0, 576], sizes = [40, 64], strides = [1, 1]} : vector<40x1600xf32> to vector<40x64xf32>
    %198 = vector.broadcast %196 : vector<40x1xf32> to vector<40x64xf32>
    %199 = arith.mulf %198, %197 : vector<40x64xf32>
    %200 = arith.addf %195, %199 : vector<40x64xf32>
    %201 = vector.extract_strided_slice %0 {offsets = [0, 10], sizes = [40, 1], strides = [1, 1]} : vector<40x25xf32> to vector<40x1xf32>
    %202 = vector.extract_strided_slice %151 {offsets = [0, 640], sizes = [40, 64], strides = [1, 1]} : vector<40x1600xf32> to vector<40x64xf32>
    %203 = vector.broadcast %201 : vector<40x1xf32> to vector<40x64xf32>
    %204 = arith.mulf %203, %202 : vector<40x64xf32>
    %205 = arith.addf %200, %204 : vector<40x64xf32>
    %206 = vector.extract_strided_slice %0 {offsets = [0, 11], sizes = [40, 1], strides = [1, 1]} : vector<40x25xf32> to vector<40x1xf32>
    %207 = vector.extract_strided_slice %151 {offsets = [0, 704], sizes = [40, 64], strides = [1, 1]} : vector<40x1600xf32> to vector<40x64xf32>
    %208 = vector.broadcast %206 : vector<40x1xf32> to vector<40x64xf32>
    %209 = arith.mulf %208, %207 : vector<40x64xf32>
    %210 = arith.addf %205, %209 : vector<40x64xf32>
    %211 = vector.extract_strided_slice %0 {offsets = [0, 12], sizes = [40, 1], strides = [1, 1]} : vector<40x25xf32> to vector<40x1xf32>
    %212 = vector.extract_strided_slice %151 {offsets = [0, 768], sizes = [40, 64], strides = [1, 1]} : vector<40x1600xf32> to vector<40x64xf32>
    %213 = vector.broadcast %211 : vector<40x1xf32> to vector<40x64xf32>
    %214 = arith.mulf %213, %212 : vector<40x64xf32>
    %215 = arith.addf %210, %214 : vector<40x64xf32>
    %216 = vector.extract_strided_slice %0 {offsets = [0, 13], sizes = [40, 1], strides = [1, 1]} : vector<40x25xf32> to vector<40x1xf32>
    %217 = vector.extract_strided_slice %151 {offsets = [0, 832], sizes = [40, 64], strides = [1, 1]} : vector<40x1600xf32> to vector<40x64xf32>
    %218 = vector.broadcast %216 : vector<40x1xf32> to vector<40x64xf32>
    %219 = arith.mulf %218, %217 : vector<40x64xf32>
    %220 = arith.addf %215, %219 : vector<40x64xf32>
    %221 = vector.extract_strided_slice %0 {offsets = [0, 14], sizes = [40, 1], strides = [1, 1]} : vector<40x25xf32> to vector<40x1xf32>
    %222 = vector.extract_strided_slice %151 {offsets = [0, 896], sizes = [40, 64], strides = [1, 1]} : vector<40x1600xf32> to vector<40x64xf32>
    %223 = vector.broadcast %221 : vector<40x1xf32> to vector<40x64xf32>
    %224 = arith.mulf %223, %222 : vector<40x64xf32>
    %225 = arith.addf %220, %224 : vector<40x64xf32>
    %226 = vector.extract_strided_slice %0 {offsets = [0, 15], sizes = [40, 1], strides = [1, 1]} : vector<40x25xf32> to vector<40x1xf32>
    %227 = vector.extract_strided_slice %151 {offsets = [0, 960], sizes = [40, 64], strides = [1, 1]} : vector<40x1600xf32> to vector<40x64xf32>
    %228 = vector.broadcast %226 : vector<40x1xf32> to vector<40x64xf32>
    %229 = arith.mulf %228, %227 : vector<40x64xf32>
    %230 = arith.addf %225, %229 : vector<40x64xf32>
    %231 = vector.extract_strided_slice %0 {offsets = [0, 16], sizes = [40, 1], strides = [1, 1]} : vector<40x25xf32> to vector<40x1xf32>
    %232 = vector.extract_strided_slice %151 {offsets = [0, 1024], sizes = [40, 64], strides = [1, 1]} : vector<40x1600xf32> to vector<40x64xf32>
    %233 = vector.broadcast %231 : vector<40x1xf32> to vector<40x64xf32>
    %234 = arith.mulf %233, %232 : vector<40x64xf32>
    %235 = arith.addf %230, %234 : vector<40x64xf32>
    %236 = vector.extract_strided_slice %0 {offsets = [0, 17], sizes = [40, 1], strides = [1, 1]} : vector<40x25xf32> to vector<40x1xf32>
    %237 = vector.extract_strided_slice %151 {offsets = [0, 1088], sizes = [40, 64], strides = [1, 1]} : vector<40x1600xf32> to vector<40x64xf32>
    %238 = vector.broadcast %236 : vector<40x1xf32> to vector<40x64xf32>
    %239 = arith.mulf %238, %237 : vector<40x64xf32>
    %240 = arith.addf %235, %239 : vector<40x64xf32>
    %241 = vector.extract_strided_slice %0 {offsets = [0, 18], sizes = [40, 1], strides = [1, 1]} : vector<40x25xf32> to vector<40x1xf32>
    %242 = vector.extract_strided_slice %151 {offsets = [0, 1152], sizes = [40, 64], strides = [1, 1]} : vector<40x1600xf32> to vector<40x64xf32>
    %243 = vector.broadcast %241 : vector<40x1xf32> to vector<40x64xf32>
    %244 = arith.mulf %243, %242 : vector<40x64xf32>
    %245 = arith.addf %240, %244 : vector<40x64xf32>
    %246 = vector.extract_strided_slice %0 {offsets = [0, 19], sizes = [40, 1], strides = [1, 1]} : vector<40x25xf32> to vector<40x1xf32>
    %247 = vector.extract_strided_slice %151 {offsets = [0, 1216], sizes = [40, 64], strides = [1, 1]} : vector<40x1600xf32> to vector<40x64xf32>
    %248 = vector.broadcast %246 : vector<40x1xf32> to vector<40x64xf32>
    %249 = arith.mulf %248, %247 : vector<40x64xf32>
    %250 = arith.addf %245, %249 : vector<40x64xf32>
    %251 = vector.extract_strided_slice %0 {offsets = [0, 20], sizes = [40, 1], strides = [1, 1]} : vector<40x25xf32> to vector<40x1xf32>
    %252 = vector.extract_strided_slice %151 {offsets = [0, 1280], sizes = [40, 64], strides = [1, 1]} : vector<40x1600xf32> to vector<40x64xf32>
    %253 = vector.broadcast %251 : vector<40x1xf32> to vector<40x64xf32>
    %254 = arith.mulf %253, %252 : vector<40x64xf32>
    %255 = arith.addf %250, %254 : vector<40x64xf32>
    %256 = vector.extract_strided_slice %0 {offsets = [0, 21], sizes = [40, 1], strides = [1, 1]} : vector<40x25xf32> to vector<40x1xf32>
    %257 = vector.extract_strided_slice %151 {offsets = [0, 1344], sizes = [40, 64], strides = [1, 1]} : vector<40x1600xf32> to vector<40x64xf32>
    %258 = vector.broadcast %256 : vector<40x1xf32> to vector<40x64xf32>
    %259 = arith.mulf %258, %257 : vector<40x64xf32>
    %260 = arith.addf %255, %259 : vector<40x64xf32>
    %261 = vector.extract_strided_slice %0 {offsets = [0, 22], sizes = [40, 1], strides = [1, 1]} : vector<40x25xf32> to vector<40x1xf32>
    %262 = vector.extract_strided_slice %151 {offsets = [0, 1408], sizes = [40, 64], strides = [1, 1]} : vector<40x1600xf32> to vector<40x64xf32>
    %263 = vector.broadcast %261 : vector<40x1xf32> to vector<40x64xf32>
    %264 = arith.mulf %263, %262 : vector<40x64xf32>
    %265 = arith.addf %260, %264 : vector<40x64xf32>
    %266 = vector.extract_strided_slice %0 {offsets = [0, 23], sizes = [40, 1], strides = [1, 1]} : vector<40x25xf32> to vector<40x1xf32>
    %267 = vector.extract_strided_slice %151 {offsets = [0, 1472], sizes = [40, 64], strides = [1, 1]} : vector<40x1600xf32> to vector<40x64xf32>
    %268 = vector.broadcast %266 : vector<40x1xf32> to vector<40x64xf32>
    %269 = arith.mulf %268, %267 : vector<40x64xf32>
    %270 = arith.addf %265, %269 : vector<40x64xf32>
    %271 = vector.extract_strided_slice %0 {offsets = [0, 24], sizes = [40, 1], strides = [1, 1]} : vector<40x25xf32> to vector<40x1xf32>
    %272 = vector.extract_strided_slice %151 {offsets = [0, 1536], sizes = [40, 64], strides = [1, 1]} : vector<40x1600xf32> to vector<40x64xf32>
    %273 = vector.broadcast %271 : vector<40x1xf32> to vector<40x64xf32>
    %274 = arith.mulf %273, %272 : vector<40x64xf32>
    %275 = arith.addf %270, %274 : vector<40x64xf32>
    %c0_27 = arith.constant 0 : index
    %c0_28 = arith.constant 0 : index
    %276 = vector.load %arg3[%c0_27, %c0_28] : memref<12x40xbf16, #tpu.memory_space<vmem>>, vector<12x40xbf16>
    %277 = arith.truncf %275 : vector<40x64xf32> to vector<40x64xbf16>
    %cst_29 = arith.constant dense<0.000000e+00> : vector<12x64xf32>
    %278 = tpu.matmul %276, %277, %cst_29 {dimension_numbers = #tpu.dot_dimension_numbers<[1], [0], [0], [1], [0, 0, 1, 1], [], []>} : vector<12x40xbf16>, vector<40x64xbf16>, vector<12x64xf32> -> vector<12x64xf32>
    %c0_30 = arith.constant 0 : index
    %c0_31 = arith.constant 0 : index
    %279 = vector.load %arg4[%c0_30, %c0_31] : memref<12x1xf32, #tpu.memory_space<vmem>>, vector<12x1xf32>
    %280 = vector.broadcast %279 : vector<12x1xf32> to vector<12x64xf32>
    %281 = arith.mulf %278, %280 : vector<12x64xf32>
    %c0_32 = arith.constant 0 : index
    %c0_33 = arith.constant 0 : index
    %282 = vector.load %arg11[%c0_32, %c0_33] : memref<32x64xbf16, #tpu.memory_space<vmem>>, vector<32x64xbf16>
    %cst_34 = arith.constant dense<0.000000e+00> : vector<12x64xf32>
    %283 = tpu.matmul %146, %282, %cst_34 {dimension_numbers = #tpu.dot_dimension_numbers<[1], [0], [0], [1], [0, 0, 1, 1], [], []>} : vector<12x32xbf16>, vector<32x64xbf16>, vector<12x64xf32> -> vector<12x64xf32>
    %284 = arith.addf %281, %283 : vector<12x64xf32>
    %c0_35 = arith.constant 0 : index
    %c0_36 = arith.constant 0 : index
    %285 = vector.load %arg12[%c0_35, %c0_36] : memref<1x64xf32, #tpu.memory_space<vmem>>, vector<1x64xf32>
    %286 = vector.broadcast %285 : vector<1x64xf32> to vector<12x64xf32>
    %287 = arith.addf %284, %286 : vector<12x64xf32>
    %cst_37 = arith.constant 0.000000e+00 : f32
    %288 = vector.broadcast %cst_37 : f32 to vector<12x64xf32>
    %289 = arith.maximumf %287, %288 : vector<12x64xf32>
    %c0_38 = arith.constant 0 : index
    %c0_39 = arith.constant 0 : index
    %290 = vector.load %arg5[%c0_38, %c0_39] : memref<2x12xbf16, #tpu.memory_space<vmem>>, vector<2x12xbf16>
    %291 = arith.truncf %289 : vector<12x64xf32> to vector<12x64xbf16>
    %cst_40 = arith.constant dense<0.000000e+00> : vector<2x64xf32>
    %292 = tpu.matmul %290, %291, %cst_40 {dimension_numbers = #tpu.dot_dimension_numbers<[1], [0], [0], [1], [0, 0, 1, 1], [], []>} : vector<2x12xbf16>, vector<12x64xbf16>, vector<2x64xf32> -> vector<2x64xf32>
    %c0_41 = arith.constant 0 : index
    %c0_42 = arith.constant 0 : index
    %293 = vector.load %arg6[%c0_41, %c0_42] : memref<2x1xf32, #tpu.memory_space<vmem>>, vector<2x1xf32>
    %294 = vector.broadcast %293 : vector<2x1xf32> to vector<2x64xf32>
    %295 = arith.mulf %292, %294 : vector<2x64xf32>
    %296 = arith.truncf %295 : vector<2x64xf32> to vector<2x64xbf16>
    %c0_43 = arith.constant 0 : index
    %c0_44 = arith.constant 0 : index
    %297 = vector.load %arg13[%c0_43, %c0_44] : memref<64x64xbf16, #tpu.memory_space<vmem>>, vector<64x64xbf16>
    %cst_45 = arith.constant dense<0.000000e+00> : vector<2x64xf32>
    %298 = tpu.matmul %296, %297, %cst_45 {dimension_numbers = #tpu.dot_dimension_numbers<[1], [0], [0], [1], [0, 0, 1, 1], [], []>} : vector<2x64xbf16>, vector<64x64xbf16>, vector<2x64xf32> -> vector<2x64xf32>
    %c0_46 = arith.constant 0 : index
    %c0_47 = arith.constant 0 : index
    %299 = vector.load %arg14[%c0_46, %c0_47] : memref<1x64xf32, #tpu.memory_space<vmem>>, vector<1x64xf32>
    %300 = vector.broadcast %299 : vector<1x64xf32> to vector<2x64xf32>
    %301 = arith.addf %298, %300 : vector<2x64xf32>
    %302 = arith.negf %301 : vector<2x64xf32>
    %303 = math.exp %302 : vector<2x64xf32>
    %cst_48 = arith.constant 1.000000e+00 : f32
    %304 = vector.broadcast %cst_48 : f32 to vector<2x64xf32>
    %305 = arith.addf %304, %303 : vector<2x64xf32>
    %306 = arith.divf %304, %305 : vector<2x64xf32>
    %307 = arith.mulf %295, %306 : vector<2x64xf32>
    %308 = arith.truncf %307 : vector<2x64xf32> to vector<2x64xbf16>
    %c0_49 = arith.constant 0 : index
    %c0_50 = arith.constant 0 : index
    %309 = vector.load %arg15[%c0_49, %c0_50] : memref<64x64xbf16, #tpu.memory_space<vmem>>, vector<64x64xbf16>
    %cst_51 = arith.constant dense<0.000000e+00> : vector<2x64xf32>
    %310 = tpu.matmul %308, %309, %cst_51 {dimension_numbers = #tpu.dot_dimension_numbers<[1], [0], [0], [1], [0, 0, 1, 1], [], []>} : vector<2x64xbf16>, vector<64x64xbf16>, vector<2x64xf32> -> vector<2x64xf32>
    %c0_52 = arith.constant 0 : index
    %c0_53 = arith.constant 0 : index
    %311 = vector.load %arg16[%c0_52, %c0_53] : memref<1x64xf32, #tpu.memory_space<vmem>>, vector<1x64xf32>
    %312 = vector.broadcast %311 : vector<1x64xf32> to vector<2x64xf32>
    %313 = arith.addf %310, %312 : vector<2x64xf32>
    %314 = arith.negf %313 : vector<2x64xf32>
    %315 = math.exp %314 : vector<2x64xf32>
    %cst_54 = arith.constant 1.000000e+00 : f32
    %316 = vector.broadcast %cst_54 : f32 to vector<2x64xf32>
    %317 = arith.addf %316, %315 : vector<2x64xf32>
    %318 = arith.divf %316, %317 : vector<2x64xf32>
    %319 = arith.mulf %307, %318 : vector<2x64xf32>
    %320 = arith.truncf %319 : vector<2x64xf32> to vector<2x64xbf16>
    %c0_55 = arith.constant 0 : index
    %c0_56 = arith.constant 0 : index
    %321 = vector.load %arg17[%c0_55, %c0_56] : memref<64x10xbf16, #tpu.memory_space<vmem>>, vector<64x10xbf16>
    %cst_57 = arith.constant dense<0.000000e+00> : vector<2x10xf32>
    %322 = tpu.matmul %320, %321, %cst_57 {dimension_numbers = #tpu.dot_dimension_numbers<[1], [0], [0], [1], [0, 0, 1, 1], [], []>} : vector<2x64xbf16>, vector<64x10xbf16>, vector<2x10xf32> -> vector<2x10xf32>
    %c0_58 = arith.constant 0 : index
    %c0_59 = arith.constant 0 : index
    %323 = vector.load %arg18[%c0_58, %c0_59] : memref<1x10xf32, #tpu.memory_space<vmem>>, vector<1x10xf32>
    %324 = vector.broadcast %323 : vector<1x10xf32> to vector<2x10xf32>
    %325 = arith.addf %322, %324 : vector<2x10xf32>
    %cst_60 = arith.constant dense<0xFF800000> : vector<2xf32>
    %326 = vector.multi_reduction <maximumf>, %325, %cst_60 [1] : vector<2x10xf32> to vector<2xf32>
    %327 = vector.shape_cast %326 : vector<2xf32> to vector<2x1xf32>
    %328 = vector.broadcast %327 : vector<2x1xf32> to vector<2x10xf32>
    %329 = arith.subf %325, %328 : vector<2x10xf32>
    %330 = math.exp %329 : vector<2x10xf32>
    %cst_61 = arith.constant dense<0.000000e+00> : vector<2xf32>
    %331 = vector.multi_reduction <add>, %330, %cst_61 [1] : vector<2x10xf32> to vector<2xf32>
    %332 = vector.shape_cast %331 : vector<2xf32> to vector<2x1xf32>
    %333 = math.log %332 : vector<2x1xf32>
    %334 = vector.broadcast %333 : vector<2x1xf32> to vector<2x10xf32>
    %335 = arith.subf %329, %334 : vector<2x10xf32>
    %c0_62 = arith.constant 0 : index
    %c0_63 = arith.constant 0 : index
    %336 = vector.load %arg19[%c0_62, %c0_63] : memref<2x10xf32, #tpu.memory_space<vmem>>, vector<2x10xf32>
    tpu.vector_store %arg19[%c0_62, %c0_63], %335 {strides = array<i32>} : memref<2x10xf32, #tpu.memory_space<vmem>>, vector<2x10xf32>,
    return
  }
}

</mosaic_0001>

<llo_original>
// kernel: tpu_custom_call.1
$region0: #{tpu_custom_call.1}
  #allocation0 [shape = 'u32[]', space=smem, size = 0x4, offset = 0x4, fixed_abs, tag = 'smem constant byte address 0x4 - core index']
  #allocation1 [shape = 'u32[144,128]{1,0:T(1,128)}', space=vmem, size = 0x12000, scoped, tag = 'internal scratch']
  %s0 = inlined_call_operand.vmem [shape: f32[40,25], index: 0, kind: input, shape index: {}]
  %s1 = inlined_call_operand.vmem [shape: bf16[12,4], index: 1, kind: input, shape index: {}]
  %s2 = inlined_call_operand.vmem [shape: bf16[40,12], index: 2, kind: input, shape index: {}]
  %s3 = inlined_call_operand.vmem [shape: bf16[12,40], index: 3, kind: input, shape index: {}]
  %s4 = inlined_call_operand.vmem [shape: f32[12,1], index: 4, kind: input, shape index: {}]
  %s5 = inlined_call_operand.vmem [shape: bf16[2,12], index: 5, kind: input, shape index: {}]
  %s6 = inlined_call_operand.vmem [shape: f32[2,1], index: 6, kind: input, shape index: {}]
  %s7 = inlined_call_operand.vmem [shape: bf16[4,800], index: 7, kind: input, shape index: {}]
  %s8 = inlined_call_operand.vmem [shape: bf16[4,32], index: 8, kind: input, shape index: {}]
  %s9 = inlined_call_operand.vmem [shape: f32[1,32], index: 9, kind: input, shape index: {}]
  %s10 = inlined_call_operand.hbm [shape: bf16[32,1600], index: 10, kind: input, shape index: {}]
  %s11 = inlined_call_operand.vmem [shape: bf16[32,64], index: 11, kind: input, shape index: {}]
  %s12 = inlined_call_operand.vmem [shape: f32[1,64], index: 12, kind: input, shape index: {}]
  %s13 = inlined_call_operand.vmem [shape: bf16[64,64], index: 13, kind: input, shape index: {}]
  %s14 = inlined_call_operand.vmem [shape: f32[1,64], index: 14, kind: input, shape index: {}]
  %s15 = inlined_call_operand.vmem [shape: bf16[64,64], index: 15, kind: input, shape index: {}]
  %s16 = inlined_call_operand.vmem [shape: f32[1,64], index: 16, kind: input, shape index: {}]
  %s17 = inlined_call_operand.vmem [shape: bf16[64,10], index: 17, kind: input, shape index: {}]
  %s18 = inlined_call_operand.vmem [shape: f32[1,10], index: 18, kind: input, shape index: {}]
  %s19 = inlined_call_operand.hbm [shape: f32[2,10], index: 19, kind: output, shape index: {}]
  %s20 = sld [smem:[#allocation0]]
  $region90: #{tpu_custom_call.1} parent=0
    _
  %s22 = ssub.s32 1, %s20
  %s23 = scalar_select 0, %s22, %s20
  $region1: #{tpu_custom_call.1} parent=0
    #allocation2 [shape = 'u8[106496]{0}', space=vmem, size = 0x1a000, scoped, tag = 'input window, operand 10, single buffered']
    #allocation3 [shape = 's32[1]{0}', space=sflag, size = 0x4, scoped, tag = 'scoped memory for tpu_custom_call.1']
    #allocation4 [shape = 's32[1]{0}', space=sflag, size = 0x4, scoped, tag = 'scoped memory for tpu_custom_call.1']
    #allocation5 [shape = 'u8[1024]{0}', space=vmem, size = 0x400, scoped, tag = 'output window, operand 0, single buffered']
    %24 = vsyncpa [#allocation3], 0
    %25 = vsyncpa [#allocation4], 0
    // Predicated region
    $region2: #{tpu_custom_call.1} parent=1 // pred_check
      _
    $region3: #{tpu_custom_call.1} parent=1 // pred_check_branch
      %27 = sbr.rel (0) target = $region5
    $region4: #{tpu_custom_call.1} parent=1 // pred_region
      _
    $region5: #{tpu_custom_call.1} parent=1 // pred_fallthru
      _
    // Predicated region
    $region6: #{tpu_custom_call.1} parent=1 // pred_check
      _
    $region7: #{tpu_custom_call.1} parent=1 // pred_check_branch
      %29 = sbr.rel (0) target = $region9
    $region8: #{tpu_custom_call.1} parent=1 // pred_region
      _
    $region9: #{tpu_custom_call.1} parent=1 // pred_fallthru
      _
    // Predicated region
    $region10: #{tpu_custom_call.1} parent=1 // pred_check
      _
    $region11: #{tpu_custom_call.1} parent=1 // pred_check_branch
      %31 = sbr.rel (0) target = $region13
    $region12: #{tpu_custom_call.1} parent=1 // pred_region
      _
    $region13: #{tpu_custom_call.1} parent=1 // pred_fallthru
      _
    // Predicated region
    $region14: #{tpu_custom_call.1} parent=1 // pred_check
      _
    $region15: #{tpu_custom_call.1} parent=1 // pred_check_branch
      %33 = sbr.rel (0) target = $region17
    $region16: #{tpu_custom_call.1} parent=1 // pred_region
      _
    $region17: #{tpu_custom_call.1} parent=1 // pred_fallthru
      _
    // Predicated region
    $region18: #{tpu_custom_call.1} parent=1 // pred_check
      _
    $region19: #{tpu_custom_call.1} parent=1 // pred_check_branch
      %35 = sbr.rel (0) target = $region21
    $region20: #{tpu_custom_call.1} parent=1 // pred_region
      _
    $region21: #{tpu_custom_call.1} parent=1 // pred_fallthru
      _
    // Predicated region
    $region22: #{tpu_custom_call.1} parent=1 // pred_check
      _
    $region23: #{tpu_custom_call.1} parent=1 // pred_check_branch
      %37 = sbr.rel (0) target = $region25
    $region24: #{tpu_custom_call.1} parent=1 // pred_region
      _
    $region25: #{tpu_custom_call.1} parent=1 // pred_fallthru
      _
    // Predicated region
    $region26: #{tpu_custom_call.1} parent=1 // pred_check
      _
    $region27: #{tpu_custom_call.1} parent=1 // pred_check_branch
      %39 = sbr.rel (0) target = $region29
    $region28: #{tpu_custom_call.1} parent=1 // pred_region
      _
    $region29: #{tpu_custom_call.1} parent=1 // pred_fallthru
      _
    // Predicated region
    $region30: #{tpu_custom_call.1} parent=1 // pred_check
      _
    $region31: #{tpu_custom_call.1} parent=1 // pred_check_branch
      %41 = sbr.rel (0) target = $region33
    $region32: #{tpu_custom_call.1} parent=1 // pred_region
      _
    $region33: #{tpu_custom_call.1} parent=1 // pred_fallthru
      _
    // Predicated region
    $region34: #{tpu_custom_call.1} parent=1 // pred_check
      _
    $region35: #{tpu_custom_call.1} parent=1 // pred_check_branch
      %43 = sbr.rel (0) target = $region37
    $region36: #{tpu_custom_call.1} parent=1 // pred_region
      _
    $region37: #{tpu_custom_call.1} parent=1 // pred_fallthru
      _
    // Predicated region
    $region38: #{tpu_custom_call.1} parent=1 // pred_check
      _
    $region39: #{tpu_custom_call.1} parent=1 // pred_check_branch
      %45 = sbr.rel (0) target = $region41
    $region40: #{tpu_custom_call.1} parent=1 // pred_region
      _
    $region41: #{tpu_custom_call.1} parent=1 // pred_fallthru
      _
    // Predicated region
    $region42: #{tpu_custom_call.1} parent=1 // pred_check
      _
    $region43: #{tpu_custom_call.1} parent=1 // pred_check_branch
      %47 = sbr.rel (0) target = $region45
    $region44: #{tpu_custom_call.1} parent=1 // pred_region
      %s49 = ssub.s32 3328, 3328
      %50 = vsyncadd [#allocation3], %s49
      %s51 = sshll.u32 [#allocation2], 4
      %s52 = int_to_ptr.vmem [resolvable:$true] %s51
      %57 = dma.hbm_to_vmem [thread:$0]  %s10, 3328, %s52, [#allocation3], 832, 832, 52
    $region45: #{tpu_custom_call.1} parent=1 // pred_fallthru
      _
    // Predicated region
    $region46: #{tpu_custom_call.1} parent=1 // pred_check
      _
    $region47: #{tpu_custom_call.1} parent=1 // pred_check_branch
      %59 = sbr.rel (0) target = $region49
    $region48: #{tpu_custom_call.1} parent=1 // pred_region
      _
    $region49: #{tpu_custom_call.1} parent=1 // pred_fallthru
      _
    // Predicated region
    $region50: #{tpu_custom_call.1} parent=1 // pred_check
      _
    $region51: #{tpu_custom_call.1} parent=1 // pred_check_branch
      %61 = sbr.rel (0) target = $region53
    $region52: #{tpu_custom_call.1} parent=1 // pred_region
      _
    $region53: #{tpu_custom_call.1} parent=1 // pred_fallthru
      _
    // Predicated region
    $region54: #{tpu_custom_call.1} parent=1 // pred_check
      _
    $region55: #{tpu_custom_call.1} parent=1 // pred_check_branch
      %63 = sbr.rel (0) target = $region57
    $region56: #{tpu_custom_call.1} parent=1 // pred_region
      _
    $region57: #{tpu_custom_call.1} parent=1 // pred_fallthru
      _
    // Predicated region
    $region58: #{tpu_custom_call.1} parent=1 // pred_check
      _
    $region59: #{tpu_custom_call.1} parent=1 // pred_check_branch
      %65 = sbr.rel (0) target = $region61
    $region60: #{tpu_custom_call.1} parent=1 // pred_region
      _
    $region61: #{tpu_custom_call.1} parent=1 // pred_fallthru
      _
    // Predicated region
    $region62: #{tpu_custom_call.1} parent=1 // pred_check
      _
    $region63: #{tpu_custom_call.1} parent=1 // pred_check_branch
      %67 = sbr.rel (0) target = $region65
    $region64: #{tpu_custom_call.1} parent=1 // pred_region
      _
    $region65: #{tpu_custom_call.1} parent=1 // pred_fallthru
      _
    // Predicated region
    $region66: #{tpu_custom_call.1} parent=1 // pred_check
      _
    $region67: #{tpu_custom_call.1} parent=1 // pred_check_branch
      %69 = sbr.rel (0) target = $region69
    $region68: #{tpu_custom_call.1} parent=1 // pred_region
      _
    $region69: #{tpu_custom_call.1} parent=1 // pred_fallthru
      _
    // Predicated region
    $region70: #{tpu_custom_call.1} parent=1 // pred_check
      _
    $region71: #{tpu_custom_call.1} parent=1 // pred_check_branch
      %71 = sbr.rel (0) target = $region73
    $region72: #{tpu_custom_call.1} parent=1 // pred_region
      _
    $region73: #{tpu_custom_call.1} parent=1 // pred_fallthru
      _
    // Predicated region
    $region74: #{tpu_custom_call.1} parent=1 // pred_check
      _
    $region75: #{tpu_custom_call.1} parent=1 // pred_check_branch
      %73 = sbr.rel (0) target = $region77
    $region76: #{tpu_custom_call.1} parent=1 // pred_region
      _
    $region77: #{tpu_custom_call.1} parent=1 // pred_fallthru
      _
    // Predicated region
    $region78: #{tpu_custom_call.1} parent=1 // pred_check
      _
    $region79: #{tpu_custom_call.1} parent=1 // pred_check_branch
      %75 = sbr.rel (0) target = $region81
    $region80: #{tpu_custom_call.1} parent=1 // pred_region
      %76 = dma.done [#allocation3], 3328
    $region81: #{tpu_custom_call.1} parent=1 // pred_fallthru
      _
    %v78 = vld [vmem:[%s0] sm:$0xff]
    %v79 = vld [vmem:[%s0 + $0x8] sm:$0xff]
    %v80 = vld [vmem:[%s0 + $0x10] sm:$0xff]
    %v81 = vld [vmem:[%s0 + $0x18] sm:$0xff]
    %v82 = vld [vmem:[%s0 + $0x20] sm:$0xff]
    %v83 = vld [vmem:[%s2] sm:$0xf]
    %v84 = vld [vmem:[%s2 + $0x4] sm:$0xf]
    %v85 = vld [vmem:[%s2 + $0x8] sm:$0xf]
    %v86 = vld [vmem:[%s2 + $0xc] sm:$0xf]
    %v87 = vld [vmem:[%s2 + $0x10] sm:$0xf]
    %v88 = vld [vmem:[%s1] sm:$0xf]
    %v89 = vld [vmem:[%s1 + $0x4] sm:$0x3]
    %v95 = vunpack.c.l.b16 %v83
    %v96 = vunpack.c.l.b16 %v84
    %v97 = vunpack.c.l.b16 %v85
    %v98 = vunpack.c.l.b16 %v86
    %v99 = vunpack.c.l.b16 %v87
    %v100 = vpack.c.b16 %v96, %v95
    %v101 = vpack.c.b16 %v98, %v97
    %v102 = vpack.c.b16 %v99, %v99
    %v105 = vunpack.c.l.b16 %v88
    %v106 = vunpack.c.l.b16 %v89
    %v107 = vpack.c.b16 %v106, %v105
    %vm108 = vcmask 97280
    %v110 = vsel %vm108, %v100, 0
    %v113 = vsel %vm108, %v101, 0
    %v116 = vsel %vm108, %v102, 0
    %vm118 = vcmask 1045504
    %v120 = vsel %vm118, %v107, 0
    %122 = vmatprep.subr.bf16.mxu0 0
    %123 = vmatpush1.bf16.msra.mxu0 0
    %124 = vmatprep.subr.bf16.mxu0 0
    %125 = vmatpush1.bf16.msra.mxu0 0
    %126 = vmatprep.subr.bf16.mxu0 0
    %127 = vmatpush1.bf16.msra.mxu0 0
    %128 = vmatprep.subr.bf16.mxu0 0
    %129 = vmatpush1.bf16.msra.mxu0 0
    %130 = vmatprep.subr.bf16.mxu0 0
    %131 = vmatpush1.bf16.msra.mxu0 0
    %132 = vmatprep.subr.bf16.mxu0 0
    %133 = vmatpush1.bf16.msra.mxu0 0
    %134 = vmatprep.subr.bf16.mxu0 0
    %135 = vmatpush1.bf16.msra.mxu0 0
    %136 = vmatprep.subr.bf16.mxu0 0
    %137 = vmatpush1.bf16.msra.mxu0 %v120
    %138 = vmatprep.subr.bf16.mxu0 0
    %139 = vmatpush2.bf16.msra.mxu0 0
    %140 = vmatprep.subr.bf16.mxu0 0
    %141 = vmatpush2.bf16.msra.mxu0 0
    %142 = vmatprep.subr.bf16.mxu0 0
    %143 = vmatpush2.bf16.msra.mxu0 0
    %144 = vmatprep.subr.bf16.mxu0 0
    %145 = vmatpush2.bf16.msra.mxu0 0
    %146 = vmatprep.subr.bf16.mxu0 0
    %147 = vmatpush2.bf16.msra.mxu0 0
    %148 = vmatprep.subr.bf16.mxu0 0
    %149 = vmatpush2.bf16.msra.mxu0 0
    %150 = vmatprep.subr.bf16.mxu0 0
    %151 = vmatpush2.bf16.msra.mxu0 0
    %152 = vmatprep.subr.bf16.mxu0 0
    %153 = vmatpush2.bf16.msra.mxu0 0
    %154 = vmatprep.mubr.bf16.mxu0 0
    %155 = vmatmul.mubr.bf16.gmra.mxu0 %v110
    %v156 = vpop.f32.mrf.mxu0
    %v157 = vadd.f32 0.0, %v156
    %v158 = vpop.f32.mrf.mxu0
    %v159 = vpop.f32.mrf.mxu0
    %v160 = vadd.f32 0.0, %v159
    %v161 = vpop.f32.mrf.mxu0
    %162 = vmatprep.mubr.bf16.mxu0 0
    %163 = vmatmul.mubr.bf16.gmra.mxu0 %v113
    %v164 = vpop.f32.mrf.mxu0
    %v165 = vadd.f32 0.0, %v164
    %v166 = vpop.f32.mrf.mxu0
    %v167 = vpop.f32.mrf.mxu0
    %v168 = vadd.f32 0.0, %v167
    %v169 = vpop.f32.mrf.mxu0
    %170 = vmatprep.mubr.bf16.mxu0 0
    %171 = vmatmul.mubr.bf16.gmra.mxu0 %v116
    %v172 = vpop.f32.mrf.mxu0
    %v173 = vadd.f32 0.0, %v172
    %v174 = vpop.f32.mrf.mxu0
    %v175 = vpop.f32.mrf.mxu0
    %v176 = vpop.f32.mrf.mxu0
    %177 = vdwg.mxu0
    %v178 = vpack.c.bf16 %v160, %v157
    %v179 = vpack.c.bf16 %v168, %v165
    %v180 = vpack.c.bf16 %v173, %v173
    %v181 = vld [vmem:[%s7] sm:$0xff]
    %v182 = vld [vmem:[%s7 + $0x8] sm:$0x3f]
    %v185 = vcombine.high %v181, %v181
    %v187 = vunpack.c.l.s4 1983009808
    %v188 = vunpack.c.0.s8 %v187
    %v189 = vlaneseq
    %v190 = vshrl.u32 %v189, 7
    %v191 = vsub.s32 %v188, %v190
    %v192 = vrot.slane %v181, %v191
    %v194 = vunpack.c.l.s4 1983009808
    %v195 = vunpack.c.0.s8 %v194
    %v196 = vlaneseq
    %v197 = vshrl.u32 %v196, 7
    %v198 = vsub.s32 %v195, %v197
    %v199 = vrot.slane %v185, %v198
    %v200 = vcombine.high %v192, %v192
    %v201 = vcombine.high %v199, %v199
    %v202 = vcombine.high %v182, %v182
    %v204 = vunpack.c.l.s4 1983009808
    %v205 = vunpack.c.0.s8 %v204
    %v206 = vlaneseq
    %v207 = vshrl.u32 %v206, 7
    %v208 = vsub.s32 %v205, %v207
    %v209 = vrot.slane %v182, %v208
    %v211 = vunpack.c.l.s4 1983009808
    %v212 = vunpack.c.0.s8 %v211
    %v213 = vlaneseq
    %v214 = vshrl.u32 %v213, 7
    %v215 = vsub.s32 %v212, %v214
    %v216 = vrot.slane %v202, %v215
    %v217 = vcombine.high %v209, %v209
    %vm218 = vcmask 31744
    %v220 = vsel %vm218, %v178, 0
    %v223 = vsel %vm218, %v179, 0
    %v226 = vsel %vm218, %v180, 0
    %vm228 = vcmask 1041408
    %v230 = vsel %vm228, %v192, 0
    %v233 = vsel %vm228, %v200, 0
    %v236 = vsel %vm228, %v199, 0
    %v239 = vsel %vm228, %v201, 0
    %v242 = vsel %vm228, %v209, 0
    %v245 = vsel %vm228, %v217, 0
    %v248 = vsel %vm228, %v216, 0
    %250 = vmatprep.subr.bf16.mxu0 0
    %251 = vmatpush1.bf16.msra.mxu0 0
    %252 = vmatprep.subr.bf16.mxu0 0
    %253 = vmatpush1.bf16.msra.mxu0 0
    %254 = vmatprep.subr.bf16.mxu0 0
    %255 = vmatpush1.bf16.msra.mxu0 0
    %256 = vmatprep.subr.bf16.mxu0 0
    %257 = vmatpush1.bf16.msra.mxu0 0
    %258 = vmatprep.subr.bf16.mxu0 0
    %259 = vmatpush1.bf16.msra.mxu0 0
    %260 = vmatprep.subr.bf16.mxu0 0
    %261 = vmatpush1.bf16.msra.mxu0 0
    %262 = vmatprep.subr.bf16.mxu0 0
    %263 = vmatpush1.bf16.msra.mxu0 0
    %264 = vmatprep.subr.bf16.mxu0 %v233
    %265 = vmatpush1.bf16.msra.mxu0 %v230
    %266 = vmatprep.subr.bf16.mxu0 0
    %267 = vmatpush2.bf16.msra.mxu0 0
    %268 = vmatprep.subr.bf16.mxu0 0
    %269 = vmatpush2.bf16.msra.mxu0 0
    %270 = vmatprep.subr.bf16.mxu0 0
    %271 = vmatpush2.bf16.msra.mxu0 0
    %272 = vmatprep.subr.bf16.mxu0 0
    %273 = vmatpush2.bf16.msra.mxu0 0
    %274 = vmatprep.subr.bf16.mxu0 0
    %275 = vmatpush2.bf16.msra.mxu0 0
    %276 = vmatprep.subr.bf16.mxu0 0
    %277 = vmatpush2.bf16.msra.mxu0 0
    %278 = vmatprep.subr.bf16.mxu0 0
    %279 = vmatpush2.bf16.msra.mxu0 0
    %280 = vmatprep.subr.bf16.mxu0 0
    %281 = vmatpush2.bf16.msra.mxu0 0
    %282 = vmatprep.mubr.bf16.mxu0 0
    %283 = vmatmul.mubr.bf16.gmra.mxu0 %v220
    %v284 = vpop.f32.mrf.mxu0
    %v285 = vadd.f32 0.0, %v284
    %v286 = vpop.f32.mrf.mxu0
    %v287 = vadd.f32 0.0, %v286
    %v288 = vpop.f32.mrf.mxu0
    %v289 = vadd.f32 0.0, %v288
    %v290 = vpop.f32.mrf.mxu0
    %v291 = vadd.f32 0.0, %v290
    %292 = vmatprep.mubr.bf16.mxu0 0
    %293 = vmatmul.mubr.bf16.gmra.mxu0 %v223
    %v294 = vpop.f32.mrf.mxu0
    %v295 = vadd.f32 0.0, %v294
    %v296 = vpop.f32.mrf.mxu0
    %v297 = vadd.f32 0.0, %v296
    %v298 = vpop.f32.mrf.mxu0
    %v299 = vadd.f32 0.0, %v298
    %v300 = vpop.f32.mrf.mxu0
    %v301 = vadd.f32 0.0, %v300
    %302 = vmatprep.mubr.bf16.mxu0 0
    %303 = vmatmul.mubr.bf16.gmra.mxu0 %v226
    %v304 = vpop.f32.mrf.mxu0
    %v305 = vadd.f32 0.0, %v304
    %v306 = vpop.f32.mrf.mxu0
    %v307 = vadd.f32 0.0, %v306
    %v308 = vpop.f32.mrf.mxu0
    %v309 = vpop.f32.mrf.mxu0
    %310 = vdwg.mxu0
    %311 = vmatprep.subr.bf16.mxu0 0
    %312 = vmatpush1.bf16.msra.mxu0 0
    %313 = vmatprep.subr.bf16.mxu0 0
    %314 = vmatpush1.bf16.msra.mxu0 0
    %315 = vmatprep.subr.bf16.mxu0 0
    %316 = vmatpush1.bf16.msra.mxu0 0
    %317 = vmatprep.subr.bf16.mxu0 0
    %318 = vmatpush1.bf16.msra.mxu0 0
    %319 = vmatprep.subr.bf16.mxu0 0
    %320 = vmatpush1.bf16.msra.mxu0 0
    %321 = vmatprep.subr.bf16.mxu0 0
    %322 = vmatpush1.bf16.msra.mxu0 0
    %323 = vmatprep.subr.bf16.mxu0 0
    %324 = vmatpush1.bf16.msra.mxu0 0
    %325 = vmatprep.subr.bf16.mxu0 %v239
    %326 = vmatpush1.bf16.msra.mxu0 %v236
    %327 = vmatprep.subr.bf16.mxu0 0
    %328 = vmatpush2.bf16.msra.mxu0 0
    %329 = vmatprep.subr.bf16.mxu0 0
    %330 = vmatpush2.bf16.msra.mxu0 0
    %331 = vmatprep.subr.bf16.mxu0 0
    %332 = vmatpush2.bf16.msra.mxu0 0
    %333 = vmatprep.subr.bf16.mxu0 0
    %334 = vmatpush2.bf16.msra.mxu0 0
    %335 = vmatprep.subr.bf16.mxu0 0
    %336 = vmatpush2.bf16.msra.mxu0 0
    %337 = vmatprep.subr.bf16.mxu0 0
    %338 = vmatpush2.bf16.msra.mxu0 0
    %339 = vmatprep.subr.bf16.mxu0 0
    %340 = vmatpush2.bf16.msra.mxu0 0
    %341 = vmatprep.subr.bf16.mxu0 0
    %342 = vmatpush2.bf16.msra.mxu0 0
    %343 = vmatprep.mubr.bf16.mxu0 0
    %344 = vmatmul.mubr.bf16.gmra.mxu0 %v220
    %v345 = vpop.f32.mrf.mxu0
    %v346 = vadd.f32 0.0, %v345
    %v347 = vpop.f32.mrf.mxu0
    %v348 = vadd.f32 0.0, %v347
    %v349 = vpop.f32.mrf.mxu0
    %v350 = vadd.f32 0.0, %v349
    %v351 = vpop.f32.mrf.mxu0
    %v352 = vadd.f32 0.0, %v351
    %353 = vmatprep.mubr.bf16.mxu0 0
    %354 = vmatmul.mubr.bf16.gmra.mxu0 %v223
    %v355 = vpop.f32.mrf.mxu0
    %v356 = vadd.f32 0.0, %v355
    %v357 = vpop.f32.mrf.mxu0
    %v358 = vadd.f32 0.0, %v357
    %v359 = vpop.f32.mrf.mxu0
    %v360 = vadd.f32 0.0, %v359
    %v361 = vpop.f32.mrf.mxu0
    %v362 = vadd.f32 0.0, %v361
    %363 = vmatprep.mubr.bf16.mxu0 0
    %364 = vmatmul.mubr.bf16.gmra.mxu0 %v226
    %v365 = vpop.f32.mrf.mxu0
    %v366 = vadd.f32 0.0, %v365
    %v367 = vpop.f32.mrf.mxu0
    %v368 = vadd.f32 0.0, %v367
    %v369 = vpop.f32.mrf.mxu0
    %v370 = vpop.f32.mrf.mxu0
    %371 = vdwg.mxu0
    %372 = vmatprep.subr.bf16.mxu0 0
    %373 = vmatpush1.bf16.msra.mxu0 0
    %374 = vmatprep.subr.bf16.mxu0 0
    %375 = vmatpush1.bf16.msra.mxu0 0
    %376 = vmatprep.subr.bf16.mxu0 0
    %377 = vmatpush1.bf16.msra.mxu0 0
    %378 = vmatprep.subr.bf16.mxu0 0
    %379 = vmatpush1.bf16.msra.mxu0 0
    %380 = vmatprep.subr.bf16.mxu0 0
    %381 = vmatpush1.bf16.msra.mxu0 0
    %382 = vmatprep.subr.bf16.mxu0 0
    %383 = vmatpush1.bf16.msra.mxu0 0
    %384 = vmatprep.subr.bf16.mxu0 0
    %385 = vmatpush1.bf16.msra.mxu0 0
    %386 = vmatprep.subr.bf16.mxu0 %v245
    %387 = vmatpush1.bf16.msra.mxu0 %v242
    %388 = vmatprep.subr.bf16.mxu0 0
    %389 = vmatpush2.bf16.msra.mxu0 0
    %390 = vmatprep.subr.bf16.mxu0 0
    %391 = vmatpush2.bf16.msra.mxu0 0
    %392 = vmatprep.subr.bf16.mxu0 0
    %393 = vmatpush2.bf16.msra.mxu0 0
    %394 = vmatprep.subr.bf16.mxu0 0
    %395 = vmatpush2.bf16.msra.mxu0 0
    %396 = vmatprep.subr.bf16.mxu0 0
    %397 = vmatpush2.bf16.msra.mxu0 0
    %398 = vmatprep.subr.bf16.mxu0 0
    %399 = vmatpush2.bf16.msra.mxu0 0
    %400 = vmatprep.subr.bf16.mxu0 0
    %401 = vmatpush2.bf16.msra.mxu0 0
    %402 = vmatprep.subr.bf16.mxu0 0
    %403 = vmatpush2.bf16.msra.mxu0 0
    %404 = vmatprep.mubr.bf16.mxu0 0
    %405 = vmatmul.mubr.bf16.gmra.mxu0 %v220
    %v406 = vpop.f32.mrf.mxu0
    %v407 = vadd.f32 0.0, %v406
    %v408 = vpop.f32.mrf.mxu0
    %v409 = vadd.f32 0.0, %v408
    %v410 = vpop.f32.mrf.mxu0
    %v411 = vadd.f32 0.0, %v410
    %v412 = vpop.f32.mrf.mxu0
    %v413 = vadd.f32 0.0, %v412
    %414 = vmatprep.mubr.bf16.mxu0 0
    %415 = vmatmul.mubr.bf16.gmra.mxu0 %v223
    %v416 = vpop.f32.mrf.mxu0
    %v417 = vadd.f32 0.0, %v416
    %v418 = vpop.f32.mrf.mxu0
    %v419 = vadd.f32 0.0, %v418
    %v420 = vpop.f32.mrf.mxu0
    %v421 = vadd.f32 0.0, %v420
    %v422 = vpop.f32.mrf.mxu0
    %v423 = vadd.f32 0.0, %v422
    %424 = vmatprep.mubr.bf16.mxu0 0
    %425 = vmatmul.mubr.bf16.gmra.mxu0 %v226
    %v426 = vpop.f32.mrf.mxu0
    %v427 = vadd.f32 0.0, %v426
    %v428 = vpop.f32.mrf.mxu0
    %v429 = vadd.f32 0.0, %v428
    %v430 = vpop.f32.mrf.mxu0
    %v431 = vpop.f32.mrf.mxu0
    %432 = vdwg.mxu0
    %433 = vmatprep.subr.bf16.mxu0 0
    %434 = vmatpush1.bf16.msra.mxu0 0
    %435 = vmatprep.subr.bf16.mxu0 0
    %436 = vmatpush1.bf16.msra.mxu0 0
    %437 = vmatprep.subr.bf16.mxu0 0
    %438 = vmatpush1.bf16.msra.mxu0 0
    %439 = vmatprep.subr.bf16.mxu0 0
    %440 = vmatpush1.bf16.msra.mxu0 0
    %441 = vmatprep.subr.bf16.mxu0 0
    %442 = vmatpush1.bf16.msra.mxu0 0
    %443 = vmatprep.subr.bf16.mxu0 0
    %444 = vmatpush1.bf16.msra.mxu0 0
    %445 = vmatprep.subr.bf16.mxu0 0
    %446 = vmatpush1.bf16.msra.mxu0 0
    %447 = vmatprep.subr.bf16.mxu0 0
    %448 = vmatpush1.bf16.msra.mxu0 %v248
    %449 = vmatprep.subr.bf16.mxu0 0
    %450 = vmatpush2.bf16.msra.mxu0 0
    %451 = vmatprep.subr.bf16.mxu0 0
    %452 = vmatpush2.bf16.msra.mxu0 0
    %453 = vmatprep.subr.bf16.mxu0 0
    %454 = vmatpush2.bf16.msra.mxu0 0
    %455 = vmatprep.subr.bf16.mxu0 0
    %456 = vmatpush2.bf16.msra.mxu0 0
    %457 = vmatprep.subr.bf16.mxu0 0
    %458 = vmatpush2.bf16.msra.mxu0 0
    %459 = vmatprep.subr.bf16.mxu0 0
    %460 = vmatpush2.bf16.msra.mxu0 0
    %461 = vmatprep.subr.bf16.mxu0 0
    %462 = vmatpush2.bf16.msra.mxu0 0
    %463 = vmatprep.subr.bf16.mxu0 0
    %464 = vmatpush2.bf16.msra.mxu0 0
    %465 = vmatprep.mubr.bf16.mxu0 0
    %466 = vmatmul.mubr.bf16.gmra.mxu0 %v220
    %v467 = vpop.f32.mrf.mxu0
    %v468 = vadd.f32 0.0, %v467
    %v469 = vpop.f32.mrf.mxu0
    %v470 = vpop.f32.mrf.mxu0
    %v471 = vadd.f32 0.0, %v470
    %v472 = vpop.f32.mrf.mxu0
    %473 = vmatprep.mubr.bf16.mxu0 0
    %474 = vmatmul.mubr.bf16.gmra.mxu0 %v223
    %v475 = vpop.f32.mrf.mxu0
    %v476 = vadd.f32 0.0, %v475
    %v477 = vpop.f32.mrf.mxu0
    %v478 = vpop.f32.mrf.mxu0
    %v479 = vadd.f32 0.0, %v478
    %v480 = vpop.f32.mrf.mxu0
    %481 = vmatprep.mubr.bf16.mxu0 0
    %482 = vmatmul.mubr.bf16.gmra.mxu0 %v226
    %v483 = vpop.f32.mrf.mxu0
    %v484 = vadd.f32 0.0, %v483
    %v485 = vpop.f32.mrf.mxu0
    %v486 = vpop.f32.mrf.mxu0
    %v487 = vpop.f32.mrf.mxu0
    %488 = vdwg.mxu0
    %490 = vset.pattern.permute.xlu0 0
    %491 = vperm.xlu0 %490, %v78
    %v492 = vpop.permute.xlu0 %491
    %495 = vset.pattern.permute.xlu0 0
    %496 = vperm.xlu0 %495, %v79
    %v497 = vpop.permute.xlu0 %496
    %500 = vset.pattern.permute.xlu0 0
    %501 = vperm.xlu0 %500, %v80
    %v502 = vpop.permute.xlu0 %501
    %505 = vset.pattern.permute.xlu0 0
    %506 = vperm.xlu0 %505, %v81
    %v507 = vpop.permute.xlu0 %506
    %510 = vset.pattern.permute.xlu0 0
    %511 = vperm.xlu0 %510, %v82
    %v512 = vpop.permute.xlu0 %511
    %v514 = vmul.f32 %v492, %v285
    %v515 = vmul.f32 %v497, %v289
    %v516 = vmul.f32 %v502, %v295
    %v517 = vmul.f32 %v507, %v299
    %v518 = vmul.f32 %v512, %v305
    %519 = vset.pattern.permute.xlu0 1
    %520 = vperm.xlu0 %519, %v78
    %v521 = vpop.permute.xlu0 %520
    %523 = vset.pattern.permute.xlu0 1
    %524 = vperm.xlu0 %523, %v79
    %v525 = vpop.permute.xlu0 %524
    %527 = vset.pattern.permute.xlu0 1
    %528 = vperm.xlu0 %527, %v80
    %v529 = vpop.permute.xlu0 %528
    %531 = vset.pattern.permute.xlu0 1
    %532 = vperm.xlu0 %531, %v81
    %v533 = vpop.permute.xlu0 %532
    %535 = vset.pattern.permute.xlu0 1
    %536 = vperm.xlu0 %535, %v82
    %v537 = vpop.permute.xlu0 %536
    %v539 = vmul.f32 %v521, %v285
    %v540 = vmul.f32 %v525, %v289
    %v541 = vmul.f32 %v529, %v295
    %v542 = vmul.f32 %v533, %v299
    %v543 = vmul.f32 %v537, %v305
    %549 = vrot.lane.b32.xlu0 %v539, 96
    %v550 = vpop.permute.xlu0 %549
    %551 = vrot.lane.b32.xlu0 %v540, 96
    %v552 = vpop.permute.xlu0 %551
    %553 = vrot.lane.b32.xlu0 %v541, 96
    %v554 = vpop.permute.xlu0 %553
    %555 = vrot.lane.b32.xlu0 %v542, 96
    %v556 = vpop.permute.xlu0 %555
    %557 = vrot.lane.b32.xlu0 %v543, 96
    %v558 = vpop.permute.xlu0 %557
    %v564 = vadd.f32 %v514, %v550
    %v565 = vadd.f32 %v515, %v552
    %v566 = vadd.f32 %v516, %v554
    %v567 = vadd.f32 %v517, %v556
    %v568 = vadd.f32 %v518, %v558
    %569 = vset.pattern.permute.xlu0 2
    %570 = vperm.xlu0 %569, %v78
    %v571 = vpop.permute.xlu0 %570
    %573 = vset.pattern.permute.xlu0 2
    %574 = vperm.xlu0 %573, %v79
    %v575 = vpop.permute.xlu0 %574
    %577 = vset.pattern.permute.xlu0 2
    %578 = vperm.xlu0 %577, %v80
    %v579 = vpop.permute.xlu0 %578
    %581 = vset.pattern.permute.xlu0 2
    %582 = vperm.xlu0 %581, %v81
    %v583 = vpop.permute.xlu0 %582
    %585 = vset.pattern.permute.xlu0 2
    %586 = vperm.xlu0 %585, %v82
    %v587 = vpop.permute.xlu0 %586
    %v589 = vmul.f32 %v571, %v285
    %v590 = vmul.f32 %v575, %v289
    %v591 = vmul.f32 %v579, %v295
    %v592 = vmul.f32 %v583, %v299
    %v593 = vmul.f32 %v587, %v305
    %599 = vrot.lane.b32.xlu0 %v589, 64
    %v600 = vpop.permute.xlu0 %599
    %601 = vrot.lane.b32.xlu0 %v590, 64
    %v602 = vpop.permute.xlu0 %601
    %603 = vrot.lane.b32.xlu0 %v591, 64
    %v604 = vpop.permute.xlu0 %603
    %605 = vrot.lane.b32.xlu0 %v592, 64
    %v606 = vpop.permute.xlu0 %605
    %607 = vrot.lane.b32.xlu0 %v593, 64
    %v608 = vpop.permute.xlu0 %607
    %v614 = vadd.f32 %v564, %v600
    %v615 = vadd.f32 %v565, %v602
    %v616 = vadd.f32 %v566, %v604
    %v617 = vadd.f32 %v567, %v606
    %v618 = vadd.f32 %v568, %v608
    %619 = vset.pattern.permute.xlu0 3
    %620 = vperm.xlu0 %619, %v78
    %v621 = vpop.permute.xlu0 %620
    %623 = vset.pattern.permute.xlu0 3
    %624 = vperm.xlu0 %623, %v79
    %v625 = vpop.permute.xlu0 %624
    %627 = vset.pattern.permute.xlu0 3
    %628 = vperm.xlu0 %627, %v80
    %v629 = vpop.permute.xlu0 %628
    %631 = vset.pattern.permute.xlu0 3
    %632 = vperm.xlu0 %631, %v81
    %v633 = vpop.permute.xlu0 %632
    %635 = vset.pattern.permute.xlu0 3
    %636 = vperm.xlu0 %635, %v82
    %v637 = vpop.permute.xlu0 %636
    %v639 = vmul.f32 %v621, %v285
    %v640 = vmul.f32 %v625, %v289
    %v641 = vmul.f32 %v629, %v295
    %v642 = vmul.f32 %v633, %v299
    %v643 = vmul.f32 %v637, %v305
    %649 = vrot.lane.b32.xlu0 %v639, 32
    %v650 = vpop.permute.xlu0 %649
    %651 = vrot.lane.b32.xlu0 %v640, 32
    %v652 = vpop.permute.xlu0 %651
    %653 = vrot.lane.b32.xlu0 %v641, 32
    %v654 = vpop.permute.xlu0 %653
    %655 = vrot.lane.b32.xlu0 %v642, 32
    %v656 = vpop.permute.xlu0 %655
    %657 = vrot.lane.b32.xlu0 %v643, 32
    %v658 = vpop.permute.xlu0 %657
    %v664 = vadd.f32 %v614, %v650
    %v665 = vadd.f32 %v615, %v652
    %v666 = vadd.f32 %v616, %v654
    %v667 = vadd.f32 %v617, %v656
    %v668 = vadd.f32 %v618, %v658
    %669 = vset.pattern.permute.xlu0 4
    %670 = vperm.xlu0 %669, %v78
    %v671 = vpop.permute.xlu0 %670
    %673 = vset.pattern.permute.xlu0 4
    %674 = vperm.xlu0 %673, %v79
    %v675 = vpop.permute.xlu0 %674
    %677 = vset.pattern.permute.xlu0 4
    %678 = vperm.xlu0 %677, %v80
    %v679 = vpop.permute.xlu0 %678
    %681 = vset.pattern.permute.xlu0 4
    %682 = vperm.xlu0 %681, %v81
    %v683 = vpop.permute.xlu0 %682
    %685 = vset.pattern.permute.xlu0 4
    %686 = vperm.xlu0 %685, %v82
    %v687 = vpop.permute.xlu0 %686
    %v689 = vmul.f32 %v671, %v287
    %v690 = vmul.f32 %v675, %v291
    %v691 = vmul.f32 %v679, %v297
    %v692 = vmul.f32 %v683, %v301
    %v693 = vmul.f32 %v687, %v307
    %v694 = vadd.f32 %v664, %v689
    %v695 = vadd.f32 %v665, %v690
    %v696 = vadd.f32 %v666, %v691
    %v697 = vadd.f32 %v667, %v692
    %v698 = vadd.f32 %v668, %v693
    %699 = vset.pattern.permute.xlu0 5
    %700 = vperm.xlu0 %699, %v78
    %v701 = vpop.permute.xlu0 %700
    %703 = vset.pattern.permute.xlu0 5
    %704 = vperm.xlu0 %703, %v79
    %v705 = vpop.permute.xlu0 %704
    %707 = vset.pattern.permute.xlu0 5
    %708 = vperm.xlu0 %707, %v80
    %v709 = vpop.permute.xlu0 %708
    %711 = vset.pattern.permute.xlu0 5
    %712 = vperm.xlu0 %711, %v81
    %v713 = vpop.permute.xlu0 %712
    %715 = vset.pattern.permute.xlu0 5
    %716 = vperm.xlu0 %715, %v82
    %v717 = vpop.permute.xlu0 %716
    %v719 = vmul.f32 %v701, %v287
    %v720 = vmul.f32 %v705, %v291
    %v721 = vmul.f32 %v709, %v297
    %v722 = vmul.f32 %v713, %v301
    %v723 = vmul.f32 %v717, %v307
    %729 = vrot.lane.b32.xlu0 %v719, 96
    %v730 = vpop.permute.xlu0 %729
    %731 = vrot.lane.b32.xlu0 %v720, 96
    %v732 = vpop.permute.xlu0 %731
    %733 = vrot.lane.b32.xlu0 %v721, 96
    %v734 = vpop.permute.xlu0 %733
    %735 = vrot.lane.b32.xlu0 %v722, 96
    %v736 = vpop.permute.xlu0 %735
    %737 = vrot.lane.b32.xlu0 %v723, 96
    %v738 = vpop.permute.xlu0 %737
    %v744 = vadd.f32 %v694, %v730
    %v745 = vadd.f32 %v695, %v732
    %v746 = vadd.f32 %v696, %v734
    %v747 = vadd.f32 %v697, %v736
    %v748 = vadd.f32 %v698, %v738
    %749 = vset.pattern.permute.xlu0 6
    %750 = vperm.xlu0 %749, %v78
    %v751 = vpop.permute.xlu0 %750
    %753 = vset.pattern.permute.xlu0 6
    %754 = vperm.xlu0 %753, %v79
    %v755 = vpop.permute.xlu0 %754
    %757 = vset.pattern.permute.xlu0 6
    %758 = vperm.xlu0 %757, %v80
    %v759 = vpop.permute.xlu0 %758
    %761 = vset.pattern.permute.xlu0 6
    %762 = vperm.xlu0 %761, %v81
    %v763 = vpop.permute.xlu0 %762
    %765 = vset.pattern.permute.xlu0 6
    %766 = vperm.xlu0 %765, %v82
    %v767 = vpop.permute.xlu0 %766
    %v769 = vmul.f32 %v751, %v287
    %v770 = vmul.f32 %v755, %v291
    %v771 = vmul.f32 %v759, %v297
    %v772 = vmul.f32 %v763, %v301
    %v773 = vmul.f32 %v767, %v307
    %779 = vrot.lane.b32.xlu0 %v769, 64
    %v780 = vpop.permute.xlu0 %779
    %781 = vrot.lane.b32.xlu0 %v770, 64
    %v782 = vpop.permute.xlu0 %781
    %783 = vrot.lane.b32.xlu0 %v771, 64
    %v784 = vpop.permute.xlu0 %783
    %785 = vrot.lane.b32.xlu0 %v772, 64
    %v786 = vpop.permute.xlu0 %785
    %787 = vrot.lane.b32.xlu0 %v773, 64
    %v788 = vpop.permute.xlu0 %787
    %v794 = vadd.f32 %v744, %v780
    %v795 = vadd.f32 %v745, %v782
    %v796 = vadd.f32 %v746, %v784
    %v797 = vadd.f32 %v747, %v786
    %v798 = vadd.f32 %v748, %v788
    %799 = vset.pattern.permute.xlu0 7
    %800 = vperm.xlu0 %799, %v78
    %v801 = vpop.permute.xlu0 %800
    %803 = vset.pattern.permute.xlu0 7
    %804 = vperm.xlu0 %803, %v79
    %v805 = vpop.permute.xlu0 %804
    %807 = vset.pattern.permute.xlu0 7
    %808 = vperm.xlu0 %807, %v80
    %v809 = vpop.permute.xlu0 %808
    %811 = vset.pattern.permute.xlu0 7
    %812 = vperm.xlu0 %811, %v81
    %v813 = vpop.permute.xlu0 %812
    %815 = vset.pattern.permute.xlu0 7
    %816 = vperm.xlu0 %815, %v82
    %v817 = vpop.permute.xlu0 %816
    %v819 = vmul.f32 %v801, %v287
    %v820 = vmul.f32 %v805, %v291
    %v821 = vmul.f32 %v809, %v297
    %v822 = vmul.f32 %v813, %v301
    %v823 = vmul.f32 %v817, %v307
    %829 = vrot.lane.b32.xlu0 %v819, 32
    %v830 = vpop.permute.xlu0 %829
    %831 = vrot.lane.b32.xlu0 %v820, 32
    %v832 = vpop.permute.xlu0 %831
    %833 = vrot.lane.b32.xlu0 %v821, 32
    %v834 = vpop.permute.xlu0 %833
    %835 = vrot.lane.b32.xlu0 %v822, 32
    %v836 = vpop.permute.xlu0 %835
    %837 = vrot.lane.b32.xlu0 %v823, 32
    %v838 = vpop.permute.xlu0 %837
    %v844 = vadd.f32 %v794, %v830
    %v845 = vadd.f32 %v795, %v832
    %v846 = vadd.f32 %v796, %v834
    %v847 = vadd.f32 %v797, %v836
    %v848 = vadd.f32 %v798, %v838
    %849 = vset.pattern.permute.xlu0 8
    %850 = vperm.xlu0 %849, %v78
    %v851 = vpop.permute.xlu0 %850
    %853 = vset.pattern.permute.xlu0 8
    %854 = vperm.xlu0 %853, %v79
    %v855 = vpop.permute.xlu0 %854
    %857 = vset.pattern.permute.xlu0 8
    %858 = vperm.xlu0 %857, %v80
    %v859 = vpop.permute.xlu0 %858
    %861 = vset.pattern.permute.xlu0 8
    %862 = vperm.xlu0 %861, %v81
    %v863 = vpop.permute.xlu0 %862
    %865 = vset.pattern.permute.xlu0 8
    %866 = vperm.xlu0 %865, %v82
    %v867 = vpop.permute.xlu0 %866
    %v869 = vmul.f32 %v851, %v346
    %v870 = vmul.f32 %v855, %v350
    %v871 = vmul.f32 %v859, %v356
    %v872 = vmul.f32 %v863, %v360
    %v873 = vmul.f32 %v867, %v366
    %v874 = vadd.f32 %v844, %v869
    %v875 = vadd.f32 %v845, %v870
    %v876 = vadd.f32 %v846, %v871
    %v877 = vadd.f32 %v847, %v872
    %v878 = vadd.f32 %v848, %v873
    %879 = vset.pattern.permute.xlu0 9
    %880 = vperm.xlu0 %879, %v78
    %v881 = vpop.permute.xlu0 %880
    %883 = vset.pattern.permute.xlu0 9
    %884 = vperm.xlu0 %883, %v79
    %v885 = vpop.permute.xlu0 %884
    %887 = vset.pattern.permute.xlu0 9
    %888 = vperm.xlu0 %887, %v80
    %v889 = vpop.permute.xlu0 %888
    %891 = vset.pattern.permute.xlu0 9
    %892 = vperm.xlu0 %891, %v81
    %v893 = vpop.permute.xlu0 %892
    %895 = vset.pattern.permute.xlu0 9
    %896 = vperm.xlu0 %895, %v82
    %v897 = vpop.permute.xlu0 %896
    %v899 = vmul.f32 %v881, %v346
    %v900 = vmul.f32 %v885, %v350
    %v901 = vmul.f32 %v889, %v356
    %v902 = vmul.f32 %v893, %v360
    %v903 = vmul.f32 %v897, %v366
    %909 = vrot.lane.b32.xlu0 %v899, 96
    %v910 = vpop.permute.xlu0 %909
    %911 = vrot.lane.b32.xlu0 %v900, 96
    %v912 = vpop.permute.xlu0 %911
    %913 = vrot.lane.b32.xlu0 %v901, 96
    %v914 = vpop.permute.xlu0 %913
    %915 = vrot.lane.b32.xlu0 %v902, 96
    %v916 = vpop.permute.xlu0 %915
    %917 = vrot.lane.b32.xlu0 %v903, 96
    %v918 = vpop.permute.xlu0 %917
    %v924 = vadd.f32 %v874, %v910
    %v925 = vadd.f32 %v875, %v912
    %v926 = vadd.f32 %v876, %v914
    %v927 = vadd.f32 %v877, %v916
    %v928 = vadd.f32 %v878, %v918
    %929 = vset.pattern.permute.xlu0 10
    %930 = vperm.xlu0 %929, %v78
    %v931 = vpop.permute.xlu0 %930
    %933 = vset.pattern.permute.xlu0 10
    %934 = vperm.xlu0 %933, %v79
    %v935 = vpop.permute.xlu0 %934
    %937 = vset.pattern.permute.xlu0 10
    %938 = vperm.xlu0 %937, %v80
    %v939 = vpop.permute.xlu0 %938
    %941 = vset.pattern.permute.xlu0 10
    %942 = vperm.xlu0 %941, %v81
    %v943 = vpop.permute.xlu0 %942
    %945 = vset.pattern.permute.xlu0 10
    %946 = vperm.xlu0 %945, %v82
    %v947 = vpop.permute.xlu0 %946
    %v949 = vmul.f32 %v931, %v346
    %v950 = vmul.f32 %v935, %v350
    %v951 = vmul.f32 %v939, %v356
    %v952 = vmul.f32 %v943, %v360
    %v953 = vmul.f32 %v947, %v366
    %959 = vrot.lane.b32.xlu0 %v949, 64
    %v960 = vpop.permute.xlu0 %959
    %961 = vrot.lane.b32.xlu0 %v950, 64
    %v962 = vpop.permute.xlu0 %961
    %963 = vrot.lane.b32.xlu0 %v951, 64
    %v964 = vpop.permute.xlu0 %963
    %965 = vrot.lane.b32.xlu0 %v952, 64
    %v966 = vpop.permute.xlu0 %965
    %967 = vrot.lane.b32.xlu0 %v953, 64
    %v968 = vpop.permute.xlu0 %967
    %v974 = vadd.f32 %v924, %v960
    %v975 = vadd.f32 %v925, %v962
    %v976 = vadd.f32 %v926, %v964
    %v977 = vadd.f32 %v927, %v966
    %v978 = vadd.f32 %v928, %v968
    %979 = vset.pattern.permute.xlu0 11
    %980 = vperm.xlu0 %979, %v78
    %v981 = vpop.permute.xlu0 %980
    %983 = vset.pattern.permute.xlu0 11
    %984 = vperm.xlu0 %983, %v79
    %v985 = vpop.permute.xlu0 %984
    %987 = vset.pattern.permute.xlu0 11
    %988 = vperm.xlu0 %987, %v80
    %v989 = vpop.permute.xlu0 %988
    %991 = vset.pattern.permute.xlu0 11
    %992 = vperm.xlu0 %991, %v81
    %v993 = vpop.permute.xlu0 %992
    %995 = vset.pattern.permute.xlu0 11
    %996 = vperm.xlu0 %995, %v82
    %v997 = vpop.permute.xlu0 %996
    %v999 = vmul.f32 %v981, %v346
    %v1000 = vmul.f32 %v985, %v350
    %v1001 = vmul.f32 %v989, %v356
    %v1002 = vmul.f32 %v993, %v360
    %v1003 = vmul.f32 %v997, %v366
    %1009 = vrot.lane.b32.xlu0 %v999, 32
    %v1010 = vpop.permute.xlu0 %1009
    %1011 = vrot.lane.b32.xlu0 %v1000, 32
    %v1012 = vpop.permute.xlu0 %1011
    %1013 = vrot.lane.b32.xlu0 %v1001, 32
    %v1014 = vpop.permute.xlu0 %1013
    %1015 = vrot.lane.b32.xlu0 %v1002, 32
    %v1016 = vpop.permute.xlu0 %1015
    %1017 = vrot.lane.b32.xlu0 %v1003, 32
    %v1018 = vpop.permute.xlu0 %1017
    %v1024 = vadd.f32 %v974, %v1010
    %v1025 = vadd.f32 %v975, %v1012
    %v1026 = vadd.f32 %v976, %v1014
    %v1027 = vadd.f32 %v977, %v1016
    %v1028 = vadd.f32 %v978, %v1018
    %1029 = vset.pattern.permute.xlu0 12
    %1030 = vperm.xlu0 %1029, %v78
    %v1031 = vpop.permute.xlu0 %1030
    %1033 = vset.pattern.permute.xlu0 12
    %1034 = vperm.xlu0 %1033, %v79
    %v1035 = vpop.permute.xlu0 %1034
    %1037 = vset.pattern.permute.xlu0 12
    %1038 = vperm.xlu0 %1037, %v80
    %v1039 = vpop.permute.xlu0 %1038
    %1041 = vset.pattern.permute.xlu0 12
    %1042 = vperm.xlu0 %1041, %v81
    %v1043 = vpop.permute.xlu0 %1042
    %1045 = vset.pattern.permute.xlu0 12
    %1046 = vperm.xlu0 %1045, %v82
    %v1047 = vpop.permute.xlu0 %1046
    %v1049 = vmul.f32 %v1031, %v348
    %v1050 = vmul.f32 %v1035, %v352
    %v1051 = vmul.f32 %v1039, %v358
    %v1052 = vmul.f32 %v1043, %v362
    %v1053 = vmul.f32 %v1047, %v368
    %v1054 = vadd.f32 %v1024, %v1049
    %v1055 = vadd.f32 %v1025, %v1050
    %v1056 = vadd.f32 %v1026, %v1051
    %v1057 = vadd.f32 %v1027, %v1052
    %v1058 = vadd.f32 %v1028, %v1053
    %1059 = vset.pattern.permute.xlu0 13
    %1060 = vperm.xlu0 %1059, %v78
    %v1061 = vpop.permute.xlu0 %1060
    %1063 = vset.pattern.permute.xlu0 13
    %1064 = vperm.xlu0 %1063, %v79
    %v1065 = vpop.permute.xlu0 %1064
    %1067 = vset.pattern.permute.xlu0 13
    %1068 = vperm.xlu0 %1067, %v80
    %v1069 = vpop.permute.xlu0 %1068
    %1071 = vset.pattern.permute.xlu0 13
    %1072 = vperm.xlu0 %1071, %v81
    %v1073 = vpop.permute.xlu0 %1072
    %1075 = vset.pattern.permute.xlu0 13
    %1076 = vperm.xlu0 %1075, %v82
    %v1077 = vpop.permute.xlu0 %1076
    %v1079 = vmul.f32 %v1061, %v348
    %v1080 = vmul.f32 %v1065, %v352
    %v1081 = vmul.f32 %v1069, %v358
    %v1082 = vmul.f32 %v1073, %v362
    %v1083 = vmul.f32 %v1077, %v368
    %1089 = vrot.lane.b32.xlu0 %v1079, 96
    %v1090 = vpop.permute.xlu0 %1089
    %1091 = vrot.lane.b32.xlu0 %v1080, 96
    %v1092 = vpop.permute.xlu0 %1091
    %1093 = vrot.lane.b32.xlu0 %v1081, 96
    %v1094 = vpop.permute.xlu0 %1093
    %1095 = vrot.lane.b32.xlu0 %v1082, 96
    %v1096 = vpop.permute.xlu0 %1095
    %1097 = vrot.lane.b32.xlu0 %v1083, 96
    %v1098 = vpop.permute.xlu0 %1097
    %v1104 = vadd.f32 %v1054, %v1090
    %v1105 = vadd.f32 %v1055, %v1092
    %v1106 = vadd.f32 %v1056, %v1094
    %v1107 = vadd.f32 %v1057, %v1096
    %v1108 = vadd.f32 %v1058, %v1098
    %1109 = vset.pattern.permute.xlu0 14
    %1110 = vperm.xlu0 %1109, %v78
    %v1111 = vpop.permute.xlu0 %1110
    %1113 = vset.pattern.permute.xlu0 14
    %1114 = vperm.xlu0 %1113, %v79
    %v1115 = vpop.permute.xlu0 %1114
    %1117 = vset.pattern.permute.xlu0 14
    %1118 = vperm.xlu0 %1117, %v80
    %v1119 = vpop.permute.xlu0 %1118
    %1121 = vset.pattern.permute.xlu0 14
    %1122 = vperm.xlu0 %1121, %v81
    %v1123 = vpop.permute.xlu0 %1122
    %1125 = vset.pattern.permute.xlu0 14
    %1126 = vperm.xlu0 %1125, %v82
    %v1127 = vpop.permute.xlu0 %1126
    %v1129 = vmul.f32 %v1111, %v348
    %v1130 = vmul.f32 %v1115, %v352
    %v1131 = vmul.f32 %v1119, %v358
    %v1132 = vmul.f32 %v1123, %v362
    %v1133 = vmul.f32 %v1127, %v368
    %1139 = vrot.lane.b32.xlu0 %v1129, 64
    %v1140 = vpop.permute.xlu0 %1139
    %1141 = vrot.lane.b32.xlu0 %v1130, 64
    %v1142 = vpop.permute.xlu0 %1141
    %1143 = vrot.lane.b32.xlu0 %v1131, 64
    %v1144 = vpop.permute.xlu0 %1143
    %1145 = vrot.lane.b32.xlu0 %v1132, 64
    %v1146 = vpop.permute.xlu0 %1145
    %1147 = vrot.lane.b32.xlu0 %v1133, 64
    %v1148 = vpop.permute.xlu0 %1147
    %v1154 = vadd.f32 %v1104, %v1140
    %v1155 = vadd.f32 %v1105, %v1142
    %v1156 = vadd.f32 %v1106, %v1144
    %v1157 = vadd.f32 %v1107, %v1146
    %v1158 = vadd.f32 %v1108, %v1148
    %1159 = vset.pattern.permute.xlu0 15
    %1160 = vperm.xlu0 %1159, %v78
    %v1161 = vpop.permute.xlu0 %1160
    %1163 = vset.pattern.permute.xlu0 15
    %1164 = vperm.xlu0 %1163, %v79
    %v1165 = vpop.permute.xlu0 %1164
    %1167 = vset.pattern.permute.xlu0 15
    %1168 = vperm.xlu0 %1167, %v80
    %v1169 = vpop.permute.xlu0 %1168
    %1171 = vset.pattern.permute.xlu0 15
    %1172 = vperm.xlu0 %1171, %v81
    %v1173 = vpop.permute.xlu0 %1172
    %1175 = vset.pattern.permute.xlu0 15
    %1176 = vperm.xlu0 %1175, %v82
    %v1177 = vpop.permute.xlu0 %1176
    %v1179 = vmul.f32 %v1161, %v348
    %v1180 = vmul.f32 %v1165, %v352
    %v1181 = vmul.f32 %v1169, %v358
    %v1182 = vmul.f32 %v1173, %v362
    %v1183 = vmul.f32 %v1177, %v368
    %1189 = vrot.lane.b32.xlu0 %v1179, 32
    %v1190 = vpop.permute.xlu0 %1189
    %1191 = vrot.lane.b32.xlu0 %v1180, 32
    %v1192 = vpop.permute.xlu0 %1191
    %1193 = vrot.lane.b32.xlu0 %v1181, 32
    %v1194 = vpop.permute.xlu0 %1193
    %1195 = vrot.lane.b32.xlu0 %v1182, 32
    %v1196 = vpop.permute.xlu0 %1195
    %1197 = vrot.lane.b32.xlu0 %v1183, 32
    %v1198 = vpop.permute.xlu0 %1197
    %v1204 = vadd.f32 %v1154, %v1190
    %v1205 = vadd.f32 %v1155, %v1192
    %v1206 = vadd.f32 %v1156, %v1194
    %v1207 = vadd.f32 %v1157, %v1196
    %v1208 = vadd.f32 %v1158, %v1198
    %1209 = vset.pattern.permute.xlu0 16
    %1210 = vperm.xlu0 %1209, %v78
    %v1211 = vpop.permute.xlu0 %1210
    %1213 = vset.pattern.permute.xlu0 16
    %1214 = vperm.xlu0 %1213, %v79
    %v1215 = vpop.permute.xlu0 %1214
    %1217 = vset.pattern.permute.xlu0 16
    %1218 = vperm.xlu0 %1217, %v80
    %v1219 = vpop.permute.xlu0 %1218
    %1221 = vset.pattern.permute.xlu0 16
    %1222 = vperm.xlu0 %1221, %v81
    %v1223 = vpop.permute.xlu0 %1222
    %1225 = vset.pattern.permute.xlu0 16
    %1226 = vperm.xlu0 %1225, %v82
    %v1227 = vpop.permute.xlu0 %1226
    %v1229 = vmul.f32 %v1211, %v407
    %v1230 = vmul.f32 %v1215, %v411
    %v1231 = vmul.f32 %v1219, %v417
    %v1232 = vmul.f32 %v1223, %v421
    %v1233 = vmul.f32 %v1227, %v427
    %v1234 = vadd.f32 %v1204, %v1229
    %v1235 = vadd.f32 %v1205, %v1230
    %v1236 = vadd.f32 %v1206, %v1231
    %v1237 = vadd.f32 %v1207, %v1232
    %v1238 = vadd.f32 %v1208, %v1233
    %1239 = vset.pattern.permute.xlu0 17
    %1240 = vperm.xlu0 %1239, %v78
    %v1241 = vpop.permute.xlu0 %1240
    %1243 = vset.pattern.permute.xlu0 17
    %1244 = vperm.xlu0 %1243, %v79
    %v1245 = vpop.permute.xlu0 %1244
    %1247 = vset.pattern.permute.xlu0 17
    %1248 = vperm.xlu0 %1247, %v80
    %v1249 = vpop.permute.xlu0 %1248
    %1251 = vset.pattern.permute.xlu0 17
    %1252 = vperm.xlu0 %1251, %v81
    %v1253 = vpop.permute.xlu0 %1252
    %1255 = vset.pattern.permute.xlu0 17
    %1256 = vperm.xlu0 %1255, %v82
    %v1257 = vpop.permute.xlu0 %1256
    %v1259 = vmul.f32 %v1241, %v407
    %v1260 = vmul.f32 %v1245, %v411
    %v1261 = vmul.f32 %v1249, %v417
    %v1262 = vmul.f32 %v1253, %v421
    %v1263 = vmul.f32 %v1257, %v427
    %1269 = vrot.lane.b32.xlu0 %v1259, 96
    %v1270 = vpop.permute.xlu0 %1269
    %1271 = vrot.lane.b32.xlu0 %v1260, 96
    %v1272 = vpop.permute.xlu0 %1271
    %1273 = vrot.lane.b32.xlu0 %v1261, 96
    %v1274 = vpop.permute.xlu0 %1273
    %1275 = vrot.lane.b32.xlu0 %v1262, 96
    %v1276 = vpop.permute.xlu0 %1275
    %1277 = vrot.lane.b32.xlu0 %v1263, 96
    %v1278 = vpop.permute.xlu0 %1277
    %v1284 = vadd.f32 %v1234, %v1270
    %v1285 = vadd.f32 %v1235, %v1272
    %v1286 = vadd.f32 %v1236, %v1274
    %v1287 = vadd.f32 %v1237, %v1276
    %v1288 = vadd.f32 %v1238, %v1278
    %1289 = vset.pattern.permute.xlu0 18
    %1290 = vperm.xlu0 %1289, %v78
    %v1291 = vpop.permute.xlu0 %1290
    %1293 = vset.pattern.permute.xlu0 18
    %1294 = vperm.xlu0 %1293, %v79
    %v1295 = vpop.permute.xlu0 %1294
    %1297 = vset.pattern.permute.xlu0 18
    %1298 = vperm.xlu0 %1297, %v80
    %v1299 = vpop.permute.xlu0 %1298
    %1301 = vset.pattern.permute.xlu0 18
    %1302 = vperm.xlu0 %1301, %v81
    %v1303 = vpop.permute.xlu0 %1302
    %1305 = vset.pattern.permute.xlu0 18
    %1306 = vperm.xlu0 %1305, %v82
    %v1307 = vpop.permute.xlu0 %1306
    %v1309 = vmul.f32 %v1291, %v407
    %v1310 = vmul.f32 %v1295, %v411
    %v1311 = vmul.f32 %v1299, %v417
    %v1312 = vmul.f32 %v1303, %v421
    %v1313 = vmul.f32 %v1307, %v427
    %1319 = vrot.lane.b32.xlu0 %v1309, 64
    %v1320 = vpop.permute.xlu0 %1319
    %1321 = vrot.lane.b32.xlu0 %v1310, 64
    %v1322 = vpop.permute.xlu0 %1321
    %1323 = vrot.lane.b32.xlu0 %v1311, 64
    %v1324 = vpop.permute.xlu0 %1323
    %1325 = vrot.lane.b32.xlu0 %v1312, 64
    %v1326 = vpop.permute.xlu0 %1325
    %1327 = vrot.lane.b32.xlu0 %v1313, 64
    %v1328 = vpop.permute.xlu0 %1327
    %v1334 = vadd.f32 %v1284, %v1320
    %v1335 = vadd.f32 %v1285, %v1322
    %v1336 = vadd.f32 %v1286, %v1324
    %v1337 = vadd.f32 %v1287, %v1326
    %v1338 = vadd.f32 %v1288, %v1328
    %1339 = vset.pattern.permute.xlu0 19
    %1340 = vperm.xlu0 %1339, %v78
    %v1341 = vpop.permute.xlu0 %1340
    %1343 = vset.pattern.permute.xlu0 19
    %1344 = vperm.xlu0 %1343, %v79
    %v1345 = vpop.permute.xlu0 %1344
    %1347 = vset.pattern.permute.xlu0 19
    %1348 = vperm.xlu0 %1347, %v80
    %v1349 = vpop.permute.xlu0 %1348
    %1351 = vset.pattern.permute.xlu0 19
    %1352 = vperm.xlu0 %1351, %v81
    %v1353 = vpop.permute.xlu0 %1352
    %1355 = vset.pattern.permute.xlu0 19
    %1356 = vperm.xlu0 %1355, %v82
    %v1357 = vpop.permute.xlu0 %1356
    %v1359 = vmul.f32 %v1341, %v407
    %v1360 = vmul.f32 %v1345, %v411
    %v1361 = vmul.f32 %v1349, %v417
    %v1362 = vmul.f32 %v1353, %v421
    %v1363 = vmul.f32 %v1357, %v427
    %1369 = vrot.lane.b32.xlu0 %v1359, 32
    %v1370 = vpop.permute.xlu0 %1369
    %1371 = vrot.lane.b32.xlu0 %v1360, 32
    %v1372 = vpop.permute.xlu0 %1371
    %1373 = vrot.lane.b32.xlu0 %v1361, 32
    %v1374 = vpop.permute.xlu0 %1373
    %1375 = vrot.lane.b32.xlu0 %v1362, 32
    %v1376 = vpop.permute.xlu0 %1375
    %1377 = vrot.lane.b32.xlu0 %v1363, 32
    %v1378 = vpop.permute.xlu0 %1377
    %v1384 = vadd.f32 %v1334, %v1370
    %v1385 = vadd.f32 %v1335, %v1372
    %v1386 = vadd.f32 %v1336, %v1374
    %v1387 = vadd.f32 %v1337, %v1376
    %v1388 = vadd.f32 %v1338, %v1378
    %1389 = vset.pattern.permute.xlu0 20
    %1390 = vperm.xlu0 %1389, %v78
    %v1391 = vpop.permute.xlu0 %1390
    %1393 = vset.pattern.permute.xlu0 20
    %1394 = vperm.xlu0 %1393, %v79
    %v1395 = vpop.permute.xlu0 %1394
    %1397 = vset.pattern.permute.xlu0 20
    %1398 = vperm.xlu0 %1397, %v80
    %v1399 = vpop.permute.xlu0 %1398
    %1401 = vset.pattern.permute.xlu0 20
    %1402 = vperm.xlu0 %1401, %v81
    %v1403 = vpop.permute.xlu0 %1402
    %1405 = vset.pattern.permute.xlu0 20
    %1406 = vperm.xlu0 %1405, %v82
    %v1407 = vpop.permute.xlu0 %1406
    %v1409 = vmul.f32 %v1391, %v409
    %v1410 = vmul.f32 %v1395, %v413
    %v1411 = vmul.f32 %v1399, %v419
    %v1412 = vmul.f32 %v1403, %v423
    %v1413 = vmul.f32 %v1407, %v429
    %v1414 = vadd.f32 %v1384, %v1409
    %v1415 = vadd.f32 %v1385, %v1410
    %v1416 = vadd.f32 %v1386, %v1411
    %v1417 = vadd.f32 %v1387, %v1412
    %v1418 = vadd.f32 %v1388, %v1413
    %1419 = vset.pattern.permute.xlu0 21
    %1420 = vperm.xlu0 %1419, %v78
    %v1421 = vpop.permute.xlu0 %1420
    %1423 = vset.pattern.permute.xlu0 21
    %1424 = vperm.xlu0 %1423, %v79
    %v1425 = vpop.permute.xlu0 %1424
    %1427 = vset.pattern.permute.xlu0 21
    %1428 = vperm.xlu0 %1427, %v80
    %v1429 = vpop.permute.xlu0 %1428
    %1431 = vset.pattern.permute.xlu0 21
    %1432 = vperm.xlu0 %1431, %v81
    %v1433 = vpop.permute.xlu0 %1432
    %1435 = vset.pattern.permute.xlu0 21
    %1436 = vperm.xlu0 %1435, %v82
    %v1437 = vpop.permute.xlu0 %1436
    %v1439 = vmul.f32 %v1421, %v409
    %v1440 = vmul.f32 %v1425, %v413
    %v1441 = vmul.f32 %v1429, %v419
    %v1442 = vmul.f32 %v1433, %v423
    %v1443 = vmul.f32 %v1437, %v429
    %1449 = vrot.lane.b32.xlu0 %v1439, 96
    %v1450 = vpop.permute.xlu0 %1449
    %1451 = vrot.lane.b32.xlu0 %v1440, 96
    %v1452 = vpop.permute.xlu0 %1451
    %1453 = vrot.lane.b32.xlu0 %v1441, 96
    %v1454 = vpop.permute.xlu0 %1453
    %1455 = vrot.lane.b32.xlu0 %v1442, 96
    %v1456 = vpop.permute.xlu0 %1455
    %1457 = vrot.lane.b32.xlu0 %v1443, 96
    %v1458 = vpop.permute.xlu0 %1457
    %v1464 = vadd.f32 %v1414, %v1450
    %v1465 = vadd.f32 %v1415, %v1452
    %v1466 = vadd.f32 %v1416, %v1454
    %v1467 = vadd.f32 %v1417, %v1456
    %v1468 = vadd.f32 %v1418, %v1458
    %1469 = vset.pattern.permute.xlu0 22
    %1470 = vperm.xlu0 %1469, %v78
    %v1471 = vpop.permute.xlu0 %1470
    %1473 = vset.pattern.permute.xlu0 22
    %1474 = vperm.xlu0 %1473, %v79
    %v1475 = vpop.permute.xlu0 %1474
    %1477 = vset.pattern.permute.xlu0 22
    %1478 = vperm.xlu0 %1477, %v80
    %v1479 = vpop.permute.xlu0 %1478
    %1481 = vset.pattern.permute.xlu0 22
    %1482 = vperm.xlu0 %1481, %v81
    %v1483 = vpop.permute.xlu0 %1482
    %1485 = vset.pattern.permute.xlu0 22
    %1486 = vperm.xlu0 %1485, %v82
    %v1487 = vpop.permute.xlu0 %1486
    %v1489 = vmul.f32 %v1471, %v409
    %v1490 = vmul.f32 %v1475, %v413
    %v1491 = vmul.f32 %v1479, %v419
    %v1492 = vmul.f32 %v1483, %v423
    %v1493 = vmul.f32 %v1487, %v429
    %1499 = vrot.lane.b32.xlu0 %v1489, 64
    %v1500 = vpop.permute.xlu0 %1499
    %1501 = vrot.lane.b32.xlu0 %v1490, 64
    %v1502 = vpop.permute.xlu0 %1501
    %1503 = vrot.lane.b32.xlu0 %v1491, 64
    %v1504 = vpop.permute.xlu0 %1503
    %1505 = vrot.lane.b32.xlu0 %v1492, 64
    %v1506 = vpop.permute.xlu0 %1505
    %1507 = vrot.lane.b32.xlu0 %v1493, 64
    %v1508 = vpop.permute.xlu0 %1507
    %v1514 = vadd.f32 %v1464, %v1500
    %v1515 = vadd.f32 %v1465, %v1502
    %v1516 = vadd.f32 %v1466, %v1504
    %v1517 = vadd.f32 %v1467, %v1506
    %v1518 = vadd.f32 %v1468, %v1508
    %1519 = vset.pattern.permute.xlu0 23
    %1520 = vperm.xlu0 %1519, %v78
    %v1521 = vpop.permute.xlu0 %1520
    %1523 = vset.pattern.permute.xlu0 23
    %1524 = vperm.xlu0 %1523, %v79
    %v1525 = vpop.permute.xlu0 %1524
    %1527 = vset.pattern.permute.xlu0 23
    %1528 = vperm.xlu0 %1527, %v80
    %v1529 = vpop.permute.xlu0 %1528
    %1531 = vset.pattern.permute.xlu0 23
    %1532 = vperm.xlu0 %1531, %v81
    %v1533 = vpop.permute.xlu0 %1532
    %1535 = vset.pattern.permute.xlu0 23
    %1536 = vperm.xlu0 %1535, %v82
    %v1537 = vpop.permute.xlu0 %1536
    %v1539 = vmul.f32 %v1521, %v409
    %v1540 = vmul.f32 %v1525, %v413
    %v1541 = vmul.f32 %v1529, %v419
    %v1542 = vmul.f32 %v1533, %v423
    %v1543 = vmul.f32 %v1537, %v429
    %1549 = vrot.lane.b32.xlu0 %v1539, 32
    %v1550 = vpop.permute.xlu0 %1549
    %1551 = vrot.lane.b32.xlu0 %v1540, 32
    %v1552 = vpop.permute.xlu0 %1551
    %1553 = vrot.lane.b32.xlu0 %v1541, 32
    %v1554 = vpop.permute.xlu0 %1553
    %1555 = vrot.lane.b32.xlu0 %v1542, 32
    %v1556 = vpop.permute.xlu0 %1555
    %1557 = vrot.lane.b32.xlu0 %v1543, 32
    %v1558 = vpop.permute.xlu0 %1557
    %v1564 = vadd.f32 %v1514, %v1550
    %v1565 = vadd.f32 %v1515, %v1552
    %v1566 = vadd.f32 %v1516, %v1554
    %v1567 = vadd.f32 %v1517, %v1556
    %v1568 = vadd.f32 %v1518, %v1558
    %1569 = vset.pattern.permute.xlu0 24
    %1570 = vperm.xlu0 %1569, %v78
    %v1571 = vpop.permute.xlu0 %1570
    %1573 = vset.pattern.permute.xlu0 24
    %1574 = vperm.xlu0 %1573, %v79
    %v1575 = vpop.permute.xlu0 %1574
    %1577 = vset.pattern.permute.xlu0 24
    %1578 = vperm.xlu0 %1577, %v80
    %v1579 = vpop.permute.xlu0 %1578
    %1581 = vset.pattern.permute.xlu0 24
    %1582 = vperm.xlu0 %1581, %v81
    %v1583 = vpop.permute.xlu0 %1582
    %1585 = vset.pattern.permute.xlu0 24
    %1586 = vperm.xlu0 %1585, %v82
    %v1587 = vpop.permute.xlu0 %1586
    %v1589 = vmul.f32 %v1571, %v468
    %v1590 = vmul.f32 %v1575, %v471
    %v1591 = vmul.f32 %v1579, %v476
    %v1592 = vmul.f32 %v1583, %v479
    %v1593 = vmul.f32 %v1587, %v484
    %v1594 = vadd.f32 %v1564, %v1589
    %v1595 = vadd.f32 %v1565, %v1590
    %v1596 = vadd.f32 %v1566, %v1591
    %v1597 = vadd.f32 %v1567, %v1592
    %v1598 = vadd.f32 %v1568, %v1593
    %v1599 = vld [vmem:[%s3] sm:$0xf]
    %v1600 = vld [vmem:[%s3 + $0x4] sm:$0x3]
    %v1601 = vpack.c.bf16 %v1595, %v1594
    %v1602 = vpack.c.bf16 %v1597, %v1596
    %v1603 = vpack.c.bf16 %v1598, %v1598
    %v1606 = vunpack.c.l.b16 %v1599
    %v1607 = vunpack.c.l.b16 %v1600
    %v1608 = vpack.c.b16 %v1607, %v1606
    %vm1609 = vcmask 326656
    %v1611 = vsel %vm1609, %v1608, 0
    %vm1613 = vcmask 1043456
    %v1615 = vsel %vm1613, %v1603, 0
    %1617 = vmatprep.subr.bf16.mxu0 0
    %1618 = vmatpush1.bf16.msra.mxu0 0
    %1619 = vmatprep.subr.bf16.mxu0 0
    %1620 = vmatpush1.bf16.msra.mxu0 0
    %1621 = vmatprep.subr.bf16.mxu0 0
    %1622 = vmatpush1.bf16.msra.mxu0 0
    %1623 = vmatprep.subr.bf16.mxu0 0
    %1624 = vmatpush1.bf16.msra.mxu0 0
    %1625 = vmatprep.subr.bf16.mxu0 0
    %1626 = vmatpush1.bf16.msra.mxu0 0
    %1627 = vmatprep.subr.bf16.mxu0 0
    %1628 = vmatpush1.bf16.msra.mxu0 %v1615
    %1629 = vmatprep.subr.bf16.mxu0 0
    %1630 = vmatpush1.bf16.msra.mxu0 %v1602
    %1631 = vmatprep.subr.bf16.mxu0 0
    %1632 = vmatpush1.bf16.msra.mxu0 %v1601
    %1633 = vmatprep.subr.bf16.mxu0 0
    %1634 = vmatpush2.bf16.msra.mxu0 0
    %1635 = vmatprep.subr.bf16.mxu0 0
    %1636 = vmatpush2.bf16.msra.mxu0 0
    %1637 = vmatprep.subr.bf16.mxu0 0
    %1638 = vmatpush2.bf16.msra.mxu0 0
    %1639 = vmatprep.subr.bf16.mxu0 0
    %1640 = vmatpush2.bf16.msra.mxu0 0
    %1641 = vmatprep.subr.bf16.mxu0 0
    %1642 = vmatpush2.bf16.msra.mxu0 0
    %1643 = vmatprep.subr.bf16.mxu0 0
    %1644 = vmatpush2.bf16.msra.mxu0 0
    %1645 = vmatprep.subr.bf16.mxu0 0
    %1646 = vmatpush2.bf16.msra.mxu0 0
    %1647 = vmatprep.subr.bf16.mxu0 0
    %1648 = vmatpush2.bf16.msra.mxu0 0
    %1649 = vmatprep.mubr.bf16.mxu0 0
    %1650 = vmatmul.mubr.bf16.gmra.mxu0 %v1611
    %v1651 = vpop.f32.mrf.mxu0
    %v1652 = vadd.f32 0.0, %v1651
    %v1653 = vpop.f32.mrf.mxu0
    %v1654 = vpop.f32.mrf.mxu0
    %v1655 = vadd.f32 0.0, %v1654
    %v1656 = vpop.f32.mrf.mxu0
    %1657 = vdwg.mxu0
    %v1658 = vld [vmem:[%s4] sm:$0xff]
    %v1659 = vld [vmem:[%s4 + $0x8] sm:$0xf]
    %1661 = vset.pattern.permute.xlu0 0
    %1662 = vperm.xlu0 %1661, %v1658
    %v1663 = vpop.permute.xlu0 %1662
    %1666 = vset.pattern.permute.xlu0 0
    %1667 = vperm.xlu0 %1666, %v1659
    %v1668 = vpop.permute.xlu0 %1667
    %v1670 = vmul.f32 %v1652, %v1663
    %v1671 = vmul.f32 %v1655, %v1668
    %v1672 = vld [vmem:[%s8] sm:$0x3]
    %v1673 = vsel %vm218, %v107, 0
    %v1676 = vsel %vm228, %v1672, 0
    %1678 = vmatprep.subr.bf16.mxu0 0
    %1679 = vmatpush1.bf16.msra.mxu0 0
    %1680 = vmatprep.subr.bf16.mxu0 0
    %1681 = vmatpush1.bf16.msra.mxu0 0
    %1682 = vmatprep.subr.bf16.mxu0 0
    %1683 = vmatpush1.bf16.msra.mxu0 0
    %1684 = vmatprep.subr.bf16.mxu0 0
    %1685 = vmatpush1.bf16.msra.mxu0 0
    %1686 = vmatprep.subr.bf16.mxu0 0
    %1687 = vmatpush1.bf16.msra.mxu0 0
    %1688 = vmatprep.subr.bf16.mxu0 0
    %1689 = vmatpush1.bf16.msra.mxu0 0
    %1690 = vmatprep.subr.bf16.mxu0 0
    %1691 = vmatpush1.bf16.msra.mxu0 0
    %1692 = vmatprep.subr.bf16.mxu0 0
    %1693 = vmatpush1.bf16.msra.mxu0 %v1676
    %1694 = vmatprep.subr.bf16.mxu0 0
    %1695 = vmatpush2.bf16.msra.mxu0 0
    %1696 = vmatprep.subr.bf16.mxu0 0
    %1697 = vmatpush2.bf16.msra.mxu0 0
    %1698 = vmatprep.subr.bf16.mxu0 0
    %1699 = vmatpush2.bf16.msra.mxu0 0
    %1700 = vmatprep.subr.bf16.mxu0 0
    %1701 = vmatpush2.bf16.msra.mxu0 0
    %1702 = vmatprep.subr.bf16.mxu0 0
    %1703 = vmatpush2.bf16.msra.mxu0 0
    %1704 = vmatprep.subr.bf16.mxu0 0
    %1705 = vmatpush2.bf16.msra.mxu0 0
    %1706 = vmatprep.subr.bf16.mxu0 0
    %1707 = vmatpush2.bf16.msra.mxu0 0
    %1708 = vmatprep.subr.bf16.mxu0 0
    %1709 = vmatpush2.bf16.msra.mxu0 0
    %1710 = vmatprep.mubr.bf16.mxu0 0
    %1711 = vmatmul.mubr.bf16.gmra.mxu0 %v1673
    %v1712 = vpop.f32.mrf.mxu0
    %v1713 = vadd.f32 0.0, %v1712
    %v1714 = vpop.f32.mrf.mxu0
    %v1715 = vpop.f32.mrf.mxu0
    %v1716 = vadd.f32 0.0, %v1715
    %v1717 = vpop.f32.mrf.mxu0
    %1718 = vdwg.mxu0
    %v1719 = vadd.f32 %v1670, %v1713
    %v1720 = vadd.f32 %v1671, %v1716
    %v1721 = vld [vmem:[%s9] sm:$0x1]
    %v1723 = vlaneseq
    %v1724 = vshrl.u32 %v1723, 7
    %v1725 = vsub.s32 0, %v1724
    %v1726 = vrot.slane %v1721, %v1725
    %v1728 = vadd.f32 %v1719, %v1726
    %v1729 = vadd.f32 %v1720, %v1726
    %v1730 = vmax.f32 %v1728, 0.0
    %v1731 = vmax.f32 %v1729, 0.0
    %v1732 = vpack.c.bf16 %v1731, %v1730
    %v1734 = vsel %vm118, %v1732, 0
    %1736 = vmatprep.subr.bf16.mxu0 0
    %1737 = vmatpush1.bf16.msra.mxu0 0
    %1738 = vmatprep.subr.bf16.mxu0 0
    %1739 = vmatpush1.bf16.msra.mxu0 0
    %1740 = vmatprep.subr.bf16.mxu0 0
    %1741 = vmatpush1.bf16.msra.mxu0 0
    %1742 = vmatprep.subr.bf16.mxu0 0
    %1743 = vmatpush1.bf16.msra.mxu0 0
    %1744 = vmatprep.subr.bf16.mxu0 0
    %1745 = vmatpush1.bf16.msra.mxu0 0
    %1746 = vmatprep.subr.bf16.mxu0 0
    %1747 = vmatpush1.bf16.msra.mxu0 0
    %1748 = vmatprep.subr.bf16.mxu0 0
    %1749 = vmatpush1.bf16.msra.mxu0 0
    %1750 = vmatprep.subr.bf16.mxu0 0
    %1751 = vmatpush1.bf16.msra.mxu0 %v1734
    %1752 = vmatprep.subr.bf16.mxu0 0
    %1753 = vmatpush2.bf16.msra.mxu0 0
    %1754 = vmatprep.subr.bf16.mxu0 0
    %1755 = vmatpush2.bf16.msra.mxu0 0
    %1756 = vmatprep.subr.bf16.mxu0 0
    %1757 = vmatpush2.bf16.msra.mxu0 0
    %1758 = vmatprep.subr.bf16.mxu0 0
    %1759 = vmatpush2.bf16.msra.mxu0 0
    %1760 = vmatprep.subr.bf16.mxu0 0
    %1761 = vmatpush2.bf16.msra.mxu0 0
    %1762 = vmatprep.subr.bf16.mxu0 0
    %1763 = vmatpush2.bf16.msra.mxu0 0
    %1764 = vmatprep.subr.bf16.mxu0 0
    %1765 = vmatpush2.bf16.msra.mxu0 0
    %1766 = vmatprep.subr.bf16.mxu0 0
    %1767 = vmatpush2.bf16.msra.mxu0 0
    %1768 = vmatprep.mubr.bf16.mxu0 0
    %1769 = vmatmul.mubr.bf16.gmra.mxu0 %v110
    %v1770 = vpop.f32.mrf.mxu0
    %v1771 = vadd.f32 0.0, %v1770
    %v1772 = vpop.f32.mrf.mxu0
    %v1773 = vpop.f32.mrf.mxu0
    %v1774 = vadd.f32 0.0, %v1773
    %v1775 = vpop.f32.mrf.mxu0
    %1776 = vmatprep.mubr.bf16.mxu0 0
    %1777 = vmatmul.mubr.bf16.gmra.mxu0 %v113
    %v1778 = vpop.f32.mrf.mxu0
    %v1779 = vadd.f32 0.0, %v1778
    %v1780 = vpop.f32.mrf.mxu0
    %v1781 = vpop.f32.mrf.mxu0
    %v1782 = vadd.f32 0.0, %v1781
    %v1783 = vpop.f32.mrf.mxu0
    %1784 = vmatprep.mubr.bf16.mxu0 0
    %1785 = vmatmul.mubr.bf16.gmra.mxu0 %v116
    %v1786 = vpop.f32.mrf.mxu0
    %v1787 = vadd.f32 0.0, %v1786
    %v1788 = vpop.f32.mrf.mxu0
    %v1789 = vpop.f32.mrf.mxu0
    %v1790 = vpop.f32.mrf.mxu0
    %1791 = vdwg.mxu0
    %v1792 = vpack.c.bf16 %v1774, %v1771
    %v1793 = vpack.c.bf16 %v1782, %v1779
    %v1794 = vpack.c.bf16 %v1787, %v1787
    %v1795 = vld [vmem:[#allocation2] sm:$0xff]
    %v1796 = vld [vmem:[#allocation2 + $0x8] sm:$0xff]
    %v1797 = vld [vmem:[#allocation2 + $0x10] sm:$0xff]
    %v1798 = vld [vmem:[#allocation2 + $0x18] sm:$0xff]
    %v1799 = vld [vmem:[#allocation2 + $0x20] sm:$0xff]
    %v1800 = vld [vmem:[#allocation2 + $0x28] sm:$0xff]
    %v1801 = vld [vmem:[#allocation2 + $0x30] sm:$0xf]
    %v1802 = vld [vmem:[#allocation2 + $0x34] sm:$0xff]
    %v1803 = vld [vmem:[#allocation2 + $0x3c] sm:$0xff]
    %v1804 = vld [vmem:[#allocation2 + $0x44] sm:$0xff]
    %v1805 = vld [vmem:[#allocation2 + $0x4c] sm:$0xff]
    %v1806 = vld [vmem:[#allocation2 + $0x54] sm:$0xff]
    %v1807 = vld [vmem:[#allocation2 + $0x5c] sm:$0xff]
    %v1808 = vld [vmem:[#allocation2 + $0x64] sm:$0xf]
    %v1809 = vld [vmem:[#allocation2 + $0x68] sm:$0xff]
    %v1810 = vld [vmem:[#allocation2 + $0x70] sm:$0xff]
    %v1811 = vld [vmem:[#allocation2 + $0x78] sm:$0xff]
    %v1812 = vld [vmem:[#allocation2 + $0x80] sm:$0xff]
    %v1813 = vld [vmem:[#allocation2 + $0x88] sm:$0xff]
    %v1814 = vld [vmem:[#allocation2 + $0x90] sm:$0xff]
    %v1815 = vld [vmem:[#allocation2 + $0x98] sm:$0xf]
    %v1816 = vld [vmem:[#allocation2 + $0x9c] sm:$0xff]
    %v1817 = vld [vmem:[#allocation2 + $0xa4] sm:$0xff]
    %v1818 = vld [vmem:[#allocation2 + $0xac] sm:$0xff]
    %v1819 = vld [vmem:[#allocation2 + $0xb4] sm:$0xff]
    %v1820 = vld [vmem:[#allocation2 + $0xbc] sm:$0xff]
    %v1821 = vld [vmem:[#allocation2 + $0xc4] sm:$0xff]
    %v1822 = vld [vmem:[#allocation2 + $0xcc] sm:$0xf]
    %v1851 = vunpack.c.l.b16 %v1795
    %v1852 = vunpack.c.h.b16 %v1795
    %v1853 = vunpack.c.l.b16 %v1796
    %v1854 = vunpack.c.h.b16 %v1796
    %v1855 = vunpack.c.l.b16 %v1797
    %v1856 = vunpack.c.h.b16 %v1797
    %v1857 = vunpack.c.l.b16 %v1798
    %v1858 = vunpack.c.h.b16 %v1798
    %v1859 = vunpack.c.l.b16 %v1799
    %v1860 = vunpack.c.h.b16 %v1799
    %v1861 = vunpack.c.l.b16 %v1800
    %v1862 = vunpack.c.h.b16 %v1800
    %v1863 = vunpack.c.l.b16 %v1801
    %v1864 = vunpack.c.l.b16 %v1802
    %v1865 = vunpack.c.h.b16 %v1802
    %v1866 = vunpack.c.l.b16 %v1803
    %v1867 = vunpack.c.h.b16 %v1803
    %v1868 = vunpack.c.l.b16 %v1804
    %v1869 = vunpack.c.h.b16 %v1804
    %v1870 = vunpack.c.l.b16 %v1805
    %v1871 = vunpack.c.h.b16 %v1805
    %v1872 = vunpack.c.l.b16 %v1806
    %v1873 = vunpack.c.h.b16 %v1806
    %v1874 = vunpack.c.l.b16 %v1807
    %v1875 = vunpack.c.h.b16 %v1807
    %v1876 = vunpack.c.l.b16 %v1808
    %v1877 = vunpack.c.l.b16 %v1809
    %v1878 = vunpack.c.h.b16 %v1809
    %v1879 = vunpack.c.l.b16 %v1810
    %v1880 = vunpack.c.h.b16 %v1810
    %v1881 = vunpack.c.l.b16 %v1811
    %v1882 = vunpack.c.h.b16 %v1811
    %v1883 = vunpack.c.l.b16 %v1812
    %v1884 = vunpack.c.h.b16 %v1812
    %v1885 = vunpack.c.l.b16 %v1813
    %v1886 = vunpack.c.h.b16 %v1813
    %v1887 = vunpack.c.l.b16 %v1814
    %v1888 = vunpack.c.h.b16 %v1814
    %v1889 = vunpack.c.l.b16 %v1815
    %v1890 = vunpack.c.l.b16 %v1816
    %v1891 = vunpack.c.h.b16 %v1816
    %v1892 = vunpack.c.l.b16 %v1817
    %v1893 = vunpack.c.h.b16 %v1817
    %v1894 = vunpack.c.l.b16 %v1818
    %v1895 = vunpack.c.h.b16 %v1818
    %v1896 = vunpack.c.l.b16 %v1819
    %v1897 = vunpack.c.h.b16 %v1819
    %v1898 = vunpack.c.l.b16 %v1820
    %v1899 = vunpack.c.h.b16 %v1820
    %v1900 = vunpack.c.l.b16 %v1821
    %v1901 = vunpack.c.h.b16 %v1821
    %v1902 = vunpack.c.l.b16 %v1822
    %v1903 = vpack.c.b16 %v1864, %v1851
    %v1904 = vpack.c.b16 %v1865, %v1852
    %v1905 = vpack.c.b16 %v1866, %v1853
    %v1906 = vpack.c.b16 %v1867, %v1854
    %v1907 = vpack.c.b16 %v1868, %v1855
    %v1908 = vpack.c.b16 %v1869, %v1856
    %v1909 = vpack.c.b16 %v1870, %v1857
    %v1910 = vpack.c.b16 %v1871, %v1858
    %v1911 = vpack.c.b16 %v1872, %v1859
    %v1912 = vpack.c.b16 %v1873, %v1860
    %v1913 = vpack.c.b16 %v1874, %v1861
    %v1914 = vpack.c.b16 %v1875, %v1862
    %v1915 = vpack.c.b16 %v1876, %v1863
    %v1916 = vpack.c.b16 %v1890, %v1877
    %v1917 = vpack.c.b16 %v1891, %v1878
    %v1918 = vpack.c.b16 %v1892, %v1879
    %v1919 = vpack.c.b16 %v1893, %v1880
    %v1920 = vpack.c.b16 %v1894, %v1881
    %v1921 = vpack.c.b16 %v1895, %v1882
    %v1922 = vpack.c.b16 %v1896, %v1883
    %v1923 = vpack.c.b16 %v1897, %v1884
    %v1924 = vpack.c.b16 %v1898, %v1885
    %v1925 = vpack.c.b16 %v1899, %v1886
    %v1926 = vpack.c.b16 %v1900, %v1887
    %v1927 = vpack.c.b16 %v1901, %v1888
    %v1928 = vpack.c.b16 %v1902, %v1889
    %vm1955 = vcmask 261120
    %v1957 = vsel %vm1955, %v1792, 0
    %v1960 = vsel %vm1955, %v1793, 0
    %v1963 = vsel %vm1955, %v1794, 0
    %1965 = vmatprep.subr.bf16.mxu0 0
    %1966 = vmatpush1.bf16.msra.mxu0 0
    %1967 = vmatprep.subr.bf16.mxu0 0
    %1968 = vmatpush1.bf16.msra.mxu0 0
    %1969 = vmatprep.subr.bf16.mxu0 0
    %1970 = vmatpush1.bf16.msra.mxu0 0
    %1971 = vmatprep.subr.bf16.mxu0 0
    %1972 = vmatpush1.bf16.msra.mxu0 0
    %1973 = vmatprep.subr.bf16.mxu0 0
    %1974 = vmatpush1.bf16.msra.mxu0 0
    %1975 = vmatprep.subr.bf16.mxu0 0
    %1976 = vmatpush1.bf16.msra.mxu0 0
    %1977 = vmatprep.subr.bf16.mxu0 %v1917
    %1978 = vmatpush1.bf16.msra.mxu0 %v1916
    %1979 = vmatprep.subr.bf16.mxu0 %v1904
    %1980 = vmatpush1.bf16.msra.mxu0 %v1903
    %1981 = vmatprep.subr.bf16.mxu0 0
    %1982 = vmatpush2.bf16.msra.mxu0 0
    %1983 = vmatprep.subr.bf16.mxu0 0
    %1984 = vmatpush2.bf16.msra.mxu0 0
    %1985 = vmatprep.subr.bf16.mxu0 0
    %1986 = vmatpush2.bf16.msra.mxu0 0
    %1987 = vmatprep.subr.bf16.mxu0 0
    %1988 = vmatpush2.bf16.msra.mxu0 0
    %1989 = vmatprep.subr.bf16.mxu0 0
    %1990 = vmatpush2.bf16.msra.mxu0 0
    %1991 = vmatprep.subr.bf16.mxu0 0
    %1992 = vmatpush2.bf16.msra.mxu0 0
    %1993 = vmatprep.subr.bf16.mxu0 0
    %1994 = vmatpush2.bf16.msra.mxu0 0
    %1995 = vmatprep.subr.bf16.mxu0 0
    %1996 = vmatpush2.bf16.msra.mxu0 0
    %1997 = vmatprep.mubr.bf16.mxu0 0
    %1998 = vmatmul.mubr.bf16.gmra.mxu0 %v1957
    %v1999 = vpop.f32.mrf.mxu0
    %v2000 = vadd.f32 0.0, %v1999
    %v2001 = vpop.f32.mrf.mxu0
    %v2002 = vadd.f32 0.0, %v2001
    %v2003 = vpop.f32.mrf.mxu0
    %v2004 = vadd.f32 0.0, %v2003
    %v2005 = vpop.f32.mrf.mxu0
    %v2006 = vadd.f32 0.0, %v2005
    %2007 = vmatprep.mubr.bf16.mxu0 0
    %2008 = vmatmul.mubr.bf16.gmra.mxu0 %v1960
    %v2009 = vpop.f32.mrf.mxu0
    %v2010 = vadd.f32 0.0, %v2009
    %v2011 = vpop.f32.mrf.mxu0
    %v2012 = vadd.f32 0.0, %v2011
    %v2013 = vpop.f32.mrf.mxu0
    %v2014 = vadd.f32 0.0, %v2013
    %v2015 = vpop.f32.mrf.mxu0
    %v2016 = vadd.f32 0.0, %v2015
    %2017 = vmatprep.mubr.bf16.mxu0 0
    %2018 = vmatmul.mubr.bf16.gmra.mxu0 %v1963
    %v2019 = vpop.f32.mrf.mxu0
    %v2020 = vadd.f32 0.0, %v2019
    %v2021 = vpop.f32.mrf.mxu0
    %v2022 = vadd.f32 0.0, %v2021
    %v2023 = vpop.f32.mrf.mxu0
    %v2024 = vpop.f32.mrf.mxu0
    %2025 = vdwg.mxu0
    %2026 = vmatprep.subr.bf16.mxu0 0
    %2027 = vmatpush1.bf16.msra.mxu0 0
    %2028 = vmatprep.subr.bf16.mxu0 0
    %2029 = vmatpush1.bf16.msra.mxu0 0
    %2030 = vmatprep.subr.bf16.mxu0 0
    %2031 = vmatpush1.bf16.msra.mxu0 0
    %2032 = vmatprep.subr.bf16.mxu0 0
    %2033 = vmatpush1.bf16.msra.mxu0 0
    %2034 = vmatprep.subr.bf16.mxu0 0
    %2035 = vmatpush1.bf16.msra.mxu0 0
    %2036 = vmatprep.subr.bf16.mxu0 0
    %2037 = vmatpush1.bf16.msra.mxu0 0
    %2038 = vmatprep.subr.bf16.mxu0 %v1919
    %2039 = vmatpush1.bf16.msra.mxu0 %v1918
    %2040 = vmatprep.subr.bf16.mxu0 %v1906
    %2041 = vmatpush1.bf16.msra.mxu0 %v1905
    %2042 = vmatprep.subr.bf16.mxu0 0
    %2043 = vmatpush2.bf16.msra.mxu0 0
    %2044 = vmatprep.subr.bf16.mxu0 0
    %2045 = vmatpush2.bf16.msra.mxu0 0
    %2046 = vmatprep.subr.bf16.mxu0 0
    %2047 = vmatpush2.bf16.msra.mxu0 0
    %2048 = vmatprep.subr.bf16.mxu0 0
    %2049 = vmatpush2.bf16.msra.mxu0 0
    %2050 = vmatprep.subr.bf16.mxu0 0
    %2051 = vmatpush2.bf16.msra.mxu0 0
    %2052 = vmatprep.subr.bf16.mxu0 0
    %2053 = vmatpush2.bf16.msra.mxu0 0
    %2054 = vmatprep.subr.bf16.mxu0 0
    %2055 = vmatpush2.bf16.msra.mxu0 0
    %2056 = vmatprep.subr.bf16.mxu0 0
    %2057 = vmatpush2.bf16.msra.mxu0 0
    %2058 = vmatprep.mubr.bf16.mxu0 0
    %2059 = vmatmul.mubr.bf16.gmra.mxu0 %v1957
    %v2060 = vpop.f32.mrf.mxu0
    %v2061 = vadd.f32 0.0, %v2060
    %v2062 = vpop.f32.mrf.mxu0
    %v2063 = vadd.f32 0.0, %v2062
    %v2064 = vpop.f32.mrf.mxu0
    %v2065 = vadd.f32 0.0, %v2064
    %v2066 = vpop.f32.mrf.mxu0
    %v2067 = vadd.f32 0.0, %v2066
    %2068 = vmatprep.mubr.bf16.mxu0 0
    %2069 = vmatmul.mubr.bf16.gmra.mxu0 %v1960
    %v2070 = vpop.f32.mrf.mxu0
    %v2071 = vadd.f32 0.0, %v2070
    %v2072 = vpop.f32.mrf.mxu0
    %v2073 = vadd.f32 0.0, %v2072
    %v2074 = vpop.f32.mrf.mxu0
    %v2075 = vadd.f32 0.0, %v2074
    %v2076 = vpop.f32.mrf.mxu0
    %v2077 = vadd.f32 0.0, %v2076
    %2078 = vmatprep.mubr.bf16.mxu0 0
    %2079 = vmatmul.mubr.bf16.gmra.mxu0 %v1963
    %v2080 = vpop.f32.mrf.mxu0
    %v2081 = vadd.f32 0.0, %v2080
    %v2082 = vpop.f32.mrf.mxu0
    %v2083 = vadd.f32 0.0, %v2082
    %v2084 = vpop.f32.mrf.mxu0
    %v2085 = vpop.f32.mrf.mxu0
    %2086 = vdwg.mxu0
    %2087 = vmatprep.subr.bf16.mxu0 0
    %2088 = vmatpush1.bf16.msra.mxu0 0
    %2089 = vmatprep.subr.bf16.mxu0 0
    %2090 = vmatpush1.bf16.msra.mxu0 0
    %2091 = vmatprep.subr.bf16.mxu0 0
    %2092 = vmatpush1.bf16.msra.mxu0 0
    %2093 = vmatprep.subr.bf16.mxu0 0
    %2094 = vmatpush1.bf16.msra.mxu0 0
    %2095 = vmatprep.subr.bf16.mxu0 0
    %2096 = vmatpush1.bf16.msra.mxu0 0
    %2097 = vmatprep.subr.bf16.mxu0 0
    %2098 = vmatpush1.bf16.msra.mxu0 0
    %2099 = vmatprep.subr.bf16.mxu0 %v1921
    %2100 = vmatpush1.bf16.msra.mxu0 %v1920
    %2101 = vmatprep.subr.bf16.mxu0 %v1908
    %2102 = vmatpush1.bf16.msra.mxu0 %v1907
    %2103 = vmatprep.subr.bf16.mxu0 0
    %2104 = vmatpush2.bf16.msra.mxu0 0
    %2105 = vmatprep.subr.bf16.mxu0 0
    %2106 = vmatpush2.bf16.msra.mxu0 0
    %2107 = vmatprep.subr.bf16.mxu0 0
    %2108 = vmatpush2.bf16.msra.mxu0 0
    %2109 = vmatprep.subr.bf16.mxu0 0
    %2110 = vmatpush2.bf16.msra.mxu0 0
    %2111 = vmatprep.subr.bf16.mxu0 0
    %2112 = vmatpush2.bf16.msra.mxu0 0
    %2113 = vmatprep.subr.bf16.mxu0 0
    %2114 = vmatpush2.bf16.msra.mxu0 0
    %2115 = vmatprep.subr.bf16.mxu0 0
    %2116 = vmatpush2.bf16.msra.mxu0 0
    %2117 = vmatprep.subr.bf16.mxu0 0
    %2118 = vmatpush2.bf16.msra.mxu0 0
    %2119 = vmatprep.mubr.bf16.mxu0 0
    %2120 = vmatmul.mubr.bf16.gmra.mxu0 %v1957
    %v2121 = vpop.f32.mrf.mxu0
    %v2122 = vadd.f32 0.0, %v2121
    %v2123 = vpop.f32.mrf.mxu0
    %v2124 = vadd.f32 0.0, %v2123
    %v2125 = vpop.f32.mrf.mxu0
    %v2126 = vadd.f32 0.0, %v2125
    %v2127 = vpop.f32.mrf.mxu0
    %v2128 = vadd.f32 0.0, %v2127
    %2129 = vmatprep.mubr.bf16.mxu0 0
    %2130 = vmatmul.mubr.bf16.gmra.mxu0 %v1960
    %v2131 = vpop.f32.mrf.mxu0
    %v2132 = vadd.f32 0.0, %v2131
    %v2133 = vpop.f32.mrf.mxu0
    %v2134 = vadd.f32 0.0, %v2133
    %v2135 = vpop.f32.mrf.mxu0
    %v2136 = vadd.f32 0.0, %v2135
    %v2137 = vpop.f32.mrf.mxu0
    %v2138 = vadd.f32 0.0, %v2137
    %2139 = vmatprep.mubr.bf16.mxu0 0
    %2140 = vmatmul.mubr.bf16.gmra.mxu0 %v1963
    %v2141 = vpop.f32.mrf.mxu0
    %v2142 = vadd.f32 0.0, %v2141
    %v2143 = vpop.f32.mrf.mxu0
    %v2144 = vadd.f32 0.0, %v2143
    %v2145 = vpop.f32.mrf.mxu0
    %v2146 = vpop.f32.mrf.mxu0
    %2147 = vdwg.mxu0
    %2148 = vmatprep.subr.bf16.mxu0 0
    %2149 = vmatpush1.bf16.msra.mxu0 0
    %2150 = vmatprep.subr.bf16.mxu0 0
    %2151 = vmatpush1.bf16.msra.mxu0 0
    %2152 = vmatprep.subr.bf16.mxu0 0
    %2153 = vmatpush1.bf16.msra.mxu0 0
    %2154 = vmatprep.subr.bf16.mxu0 0
    %2155 = vmatpush1.bf16.msra.mxu0 0
    %2156 = vmatprep.subr.bf16.mxu0 0
    %2157 = vmatpush1.bf16.msra.mxu0 0
    %2158 = vmatprep.subr.bf16.mxu0 0
    %2159 = vmatpush1.bf16.msra.mxu0 0
    %2160 = vmatprep.subr.bf16.mxu0 %v1923
    %2161 = vmatpush1.bf16.msra.mxu0 %v1922
    %2162 = vmatprep.subr.bf16.mxu0 %v1910
    %2163 = vmatpush1.bf16.msra.mxu0 %v1909
    %2164 = vmatprep.subr.bf16.mxu0 0
    %2165 = vmatpush2.bf16.msra.mxu0 0
    %2166 = vmatprep.subr.bf16.mxu0 0
    %2167 = vmatpush2.bf16.msra.mxu0 0
    %2168 = vmatprep.subr.bf16.mxu0 0
    %2169 = vmatpush2.bf16.msra.mxu0 0
    %2170 = vmatprep.subr.bf16.mxu0 0
    %2171 = vmatpush2.bf16.msra.mxu0 0
    %2172 = vmatprep.subr.bf16.mxu0 0
    %2173 = vmatpush2.bf16.msra.mxu0 0
    %2174 = vmatprep.subr.bf16.mxu0 0
    %2175 = vmatpush2.bf16.msra.mxu0 0
    %2176 = vmatprep.subr.bf16.mxu0 0
    %2177 = vmatpush2.bf16.msra.mxu0 0
    %2178 = vmatprep.subr.bf16.mxu0 0
    %2179 = vmatpush2.bf16.msra.mxu0 0
    %2180 = vmatprep.mubr.bf16.mxu0 0
    %2181 = vmatmul.mubr.bf16.gmra.mxu0 %v1957
    %v2182 = vpop.f32.mrf.mxu0
    %v2183 = vadd.f32 0.0, %v2182
    %v2184 = vpop.f32.mrf.mxu0
    %v2185 = vadd.f32 0.0, %v2184
    %v2186 = vpop.f32.mrf.mxu0
    %v2187 = vadd.f32 0.0, %v2186
    %v2188 = vpop.f32.mrf.mxu0
    %v2189 = vadd.f32 0.0, %v2188
    %2190 = vmatprep.mubr.bf16.mxu0 0
    %2191 = vmatmul.mubr.bf16.gmra.mxu0 %v1960
    %v2192 = vpop.f32.mrf.mxu0
    %v2193 = vadd.f32 0.0, %v2192
    %v2194 = vpop.f32.mrf.mxu0
    %v2195 = vadd.f32 0.0, %v2194
    %v2196 = vpop.f32.mrf.mxu0
    %v2197 = vadd.f32 0.0, %v2196
    %v2198 = vpop.f32.mrf.mxu0
    %v2199 = vadd.f32 0.0, %v2198
    %2200 = vmatprep.mubr.bf16.mxu0 0
    %2201 = vmatmul.mubr.bf16.gmra.mxu0 %v1963
    %v2202 = vpop.f32.mrf.mxu0
    %v2203 = vadd.f32 0.0, %v2202
    %v2204 = vpop.f32.mrf.mxu0
    %v2205 = vadd.f32 0.0, %v2204
    %v2206 = vpop.f32.mrf.mxu0
    %v2207 = vpop.f32.mrf.mxu0
    %2208 = vdwg.mxu0
    %2209 = vmatprep.subr.bf16.mxu0 0
    %2210 = vmatpush1.bf16.msra.mxu0 0
    %2211 = vmatprep.subr.bf16.mxu0 0
    %2212 = vmatpush1.bf16.msra.mxu0 0
    %2213 = vmatprep.subr.bf16.mxu0 0
    %2214 = vmatpush1.bf16.msra.mxu0 0
    %2215 = vmatprep.subr.bf16.mxu0 0
    %2216 = vmatpush1.bf16.msra.mxu0 0
    %2217 = vmatprep.subr.bf16.mxu0 0
    %2218 = vmatpush1.bf16.msra.mxu0 0
    %2219 = vmatprep.subr.bf16.mxu0 0
    %2220 = vmatpush1.bf16.msra.mxu0 0
    %2221 = vmatprep.subr.bf16.mxu0 %v1925
    %2222 = vmatpush1.bf16.msra.mxu0 %v1924
    %2223 = vmatprep.subr.bf16.mxu0 %v1912
    %2224 = vmatpush1.bf16.msra.mxu0 %v1911
    %2225 = vmatprep.subr.bf16.mxu0 0
    %2226 = vmatpush2.bf16.msra.mxu0 0
    %2227 = vmatprep.subr.bf16.mxu0 0
    %2228 = vmatpush2.bf16.msra.mxu0 0
    %2229 = vmatprep.subr.bf16.mxu0 0
    %2230 = vmatpush2.bf16.msra.mxu0 0
    %2231 = vmatprep.subr.bf16.mxu0 0
    %2232 = vmatpush2.bf16.msra.mxu0 0
    %2233 = vmatprep.subr.bf16.mxu0 0
    %2234 = vmatpush2.bf16.msra.mxu0 0
    %2235 = vmatprep.subr.bf16.mxu0 0
    %2236 = vmatpush2.bf16.msra.mxu0 0
    %2237 = vmatprep.subr.bf16.mxu0 0
    %2238 = vmatpush2.bf16.msra.mxu0 0
    %2239 = vmatprep.subr.bf16.mxu0 0
    %2240 = vmatpush2.bf16.msra.mxu0 0
    %2241 = vmatprep.mubr.bf16.mxu0 0
    %2242 = vmatmul.mubr.bf16.gmra.mxu0 %v1957
    %v2243 = vpop.f32.mrf.mxu0
    %v2244 = vadd.f32 0.0, %v2243
    %v2245 = vpop.f32.mrf.mxu0
    %v2246 = vadd.f32 0.0, %v2245
    %v2247 = vpop.f32.mrf.mxu0
    %v2248 = vadd.f32 0.0, %v2247
    %v2249 = vpop.f32.mrf.mxu0
    %v2250 = vadd.f32 0.0, %v2249
    %2251 = vmatprep.mubr.bf16.mxu0 0
    %2252 = vmatmul.mubr.bf16.gmra.mxu0 %v1960
    %v2253 = vpop.f32.mrf.mxu0
    %v2254 = vadd.f32 0.0, %v2253
    %v2255 = vpop.f32.mrf.mxu0
    %v2256 = vadd.f32 0.0, %v2255
    %v2257 = vpop.f32.mrf.mxu0
    %v2258 = vadd.f32 0.0, %v2257
    %v2259 = vpop.f32.mrf.mxu0
    %v2260 = vadd.f32 0.0, %v2259
    %2261 = vmatprep.mubr.bf16.mxu0 0
    %2262 = vmatmul.mubr.bf16.gmra.mxu0 %v1963
    %v2263 = vpop.f32.mrf.mxu0
    %v2264 = vadd.f32 0.0, %v2263
    %v2265 = vpop.f32.mrf.mxu0
    %v2266 = vadd.f32 0.0, %v2265
    %v2267 = vpop.f32.mrf.mxu0
    %v2268 = vpop.f32.mrf.mxu0
    %2269 = vdwg.mxu0
    %2270 = vmatprep.subr.bf16.mxu0 0
    %2271 = vmatpush1.bf16.msra.mxu0 0
    %2272 = vmatprep.subr.bf16.mxu0 0
    %2273 = vmatpush1.bf16.msra.mxu0 0
    %2274 = vmatprep.subr.bf16.mxu0 0
    %2275 = vmatpush1.bf16.msra.mxu0 0
    %2276 = vmatprep.subr.bf16.mxu0 0
    %2277 = vmatpush1.bf16.msra.mxu0 0
    %2278 = vmatprep.subr.bf16.mxu0 0
    %2279 = vmatpush1.bf16.msra.mxu0 0
    %2280 = vmatprep.subr.bf16.mxu0 0
    %2281 = vmatpush1.bf16.msra.mxu0 0
    %2282 = vmatprep.subr.bf16.mxu0 %v1927
    %2283 = vmatpush1.bf16.msra.mxu0 %v1926
    %2284 = vmatprep.subr.bf16.mxu0 %v1914
    %2285 = vmatpush1.bf16.msra.mxu0 %v1913
    %2286 = vmatprep.subr.bf16.mxu0 0
    %2287 = vmatpush2.bf16.msra.mxu0 0
    %2288 = vmatprep.subr.bf16.mxu0 0
    %2289 = vmatpush2.bf16.msra.mxu0 0
    %2290 = vmatprep.subr.bf16.mxu0 0
    %2291 = vmatpush2.bf16.msra.mxu0 0
    %2292 = vmatprep.subr.bf16.mxu0 0
    %2293 = vmatpush2.bf16.msra.mxu0 0
    %2294 = vmatprep.subr.bf16.mxu0 0
    %2295 = vmatpush2.bf16.msra.mxu0 0
    %2296 = vmatprep.subr.bf16.mxu0 0
    %2297 = vmatpush2.bf16.msra.mxu0 0
    %2298 = vmatprep.subr.bf16.mxu0 0
    %2299 = vmatpush2.bf16.msra.mxu0 0
    %2300 = vmatprep.subr.bf16.mxu0 0
    %2301 = vmatpush2.bf16.msra.mxu0 0
    %2302 = vmatprep.mubr.bf16.mxu0 0
    %2303 = vmatmul.mubr.bf16.gmra.mxu0 %v1957
    %v2304 = vpop.f32.mrf.mxu0
    %v2305 = vadd.f32 0.0, %v2304
    %v2306 = vpop.f32.mrf.mxu0
    %v2307 = vadd.f32 0.0, %v2306
    %v2308 = vpop.f32.mrf.mxu0
    %v2309 = vadd.f32 0.0, %v2308
    %v2310 = vpop.f32.mrf.mxu0
    %v2311 = vadd.f32 0.0, %v2310
    %2312 = vmatprep.mubr.bf16.mxu0 0
    %2313 = vmatmul.mubr.bf16.gmra.mxu0 %v1960
    %v2314 = vpop.f32.mrf.mxu0
    %v2315 = vadd.f32 0.0, %v2314
    %v2316 = vpop.f32.mrf.mxu0
    %v2317 = vadd.f32 0.0, %v2316
    %v2318 = vpop.f32.mrf.mxu0
    %v2319 = vadd.f32 0.0, %v2318
    %v2320 = vpop.f32.mrf.mxu0
    %v2321 = vadd.f32 0.0, %v2320
    %2322 = vmatprep.mubr.bf16.mxu0 0
    %2323 = vmatmul.mubr.bf16.gmra.mxu0 %v1963
    %v2324 = vpop.f32.mrf.mxu0
    %v2325 = vadd.f32 0.0, %v2324
    %v2326 = vpop.f32.mrf.mxu0
    %v2327 = vadd.f32 0.0, %v2326
    %v2328 = vpop.f32.mrf.mxu0
    %v2329 = vpop.f32.mrf.mxu0
    %2330 = vdwg.mxu0
    %2331 = vmatprep.subr.bf16.mxu0 0
    %2332 = vmatpush1.bf16.msra.mxu0 0
    %2333 = vmatprep.subr.bf16.mxu0 0
    %2334 = vmatpush1.bf16.msra.mxu0 0
    %2335 = vmatprep.subr.bf16.mxu0 0
    %2336 = vmatpush1.bf16.msra.mxu0 0
    %2337 = vmatprep.subr.bf16.mxu0 0
    %2338 = vmatpush1.bf16.msra.mxu0 0
    %2339 = vmatprep.subr.bf16.mxu0 0
    %2340 = vmatpush1.bf16.msra.mxu0 0
    %2341 = vmatprep.subr.bf16.mxu0 0
    %2342 = vmatpush1.bf16.msra.mxu0 0
    %2343 = vmatprep.subr.bf16.mxu0 0
    %2344 = vmatpush1.bf16.msra.mxu0 %v1928
    %2345 = vmatprep.subr.bf16.mxu0 0
    %2346 = vmatpush1.bf16.msra.mxu0 %v1915
    %2347 = vmatprep.subr.bf16.mxu0 0
    %2348 = vmatpush2.bf16.msra.mxu0 0
    %2349 = vmatprep.subr.bf16.mxu0 0
    %2350 = vmatpush2.bf16.msra.mxu0 0
    %2351 = vmatprep.subr.bf16.mxu0 0
    %2352 = vmatpush2.bf16.msra.mxu0 0
    %2353 = vmatprep.subr.bf16.mxu0 0
    %2354 = vmatpush2.bf16.msra.mxu0 0
    %2355 = vmatprep.subr.bf16.mxu0 0
    %2356 = vmatpush2.bf16.msra.mxu0 0
    %2357 = vmatprep.subr.bf16.mxu0 0
    %2358 = vmatpush2.bf16.msra.mxu0 0
    %2359 = vmatprep.subr.bf16.mxu0 0
    %2360 = vmatpush2.bf16.msra.mxu0 0
    %2361 = vmatprep.subr.bf16.mxu0 0
    %2362 = vmatpush2.bf16.msra.mxu0 0
    %2363 = vmatprep.mubr.bf16.mxu0 0
    %2364 = vmatmul.mubr.bf16.gmra.mxu0 %v1957
    %v2365 = vpop.f32.mrf.mxu0
    %v2366 = vadd.f32 0.0, %v2365
    %v2367 = vpop.f32.mrf.mxu0
    %v2368 = vpop.f32.mrf.mxu0
    %v2369 = vadd.f32 0.0, %v2368
    %v2370 = vpop.f32.mrf.mxu0
    %2371 = vmatprep.mubr.bf16.mxu0 0
    %2372 = vmatmul.mubr.bf16.gmra.mxu0 %v1960
    %v2373 = vpop.f32.mrf.mxu0
    %v2374 = vadd.f32 0.0, %v2373
    %v2375 = vpop.f32.mrf.mxu0
    %v2376 = vpop.f32.mrf.mxu0
    %v2377 = vadd.f32 0.0, %v2376
    %v2378 = vpop.f32.mrf.mxu0
    %2379 = vmatprep.mubr.bf16.mxu0 0
    %2380 = vmatmul.mubr.bf16.gmra.mxu0 %v1963
    %v2381 = vpop.f32.mrf.mxu0
    %v2382 = vadd.f32 0.0, %v2381
    %v2383 = vpop.f32.mrf.mxu0
    %v2384 = vpop.f32.mrf.mxu0
    %v2385 = vpop.f32.mrf.mxu0
    %2386 = vdwg.mxu0
    %v2387 = vmul.f32 %v492, %v2000
    %v2388 = vmul.f32 %v497, %v2004
    %v2389 = vmul.f32 %v502, %v2010
    %v2390 = vmul.f32 %v507, %v2014
    %v2391 = vmul.f32 %v512, %v2020
    %v2392 = vmul.f32 %v521, %v2000
    %v2393 = vmul.f32 %v525, %v2004
    %v2394 = vmul.f32 %v529, %v2010
    %v2395 = vmul.f32 %v533, %v2014
    %v2396 = vmul.f32 %v537, %v2020
    %2402 = vrot.lane.b32.xlu0 %v2392, 64
    %v2403 = vpop.permute.xlu0 %2402
    %2404 = vrot.lane.b32.xlu0 %v2393, 64
    %v2405 = vpop.permute.xlu0 %2404
    %2406 = vrot.lane.b32.xlu0 %v2394, 64
    %v2407 = vpop.permute.xlu0 %2406
    %2408 = vrot.lane.b32.xlu0 %v2395, 64
    %v2409 = vpop.permute.xlu0 %2408
    %2410 = vrot.lane.b32.xlu0 %v2396, 64
    %v2411 = vpop.permute.xlu0 %2410
    %v2417 = vadd.f32 %v2387, %v2403
    %v2418 = vadd.f32 %v2388, %v2405
    %v2419 = vadd.f32 %v2389, %v2407
    %v2420 = vadd.f32 %v2390, %v2409
    %v2421 = vadd.f32 %v2391, %v2411
    %v2422 = vmul.f32 %v571, %v2002
    %v2423 = vmul.f32 %v575, %v2006
    %v2424 = vmul.f32 %v579, %v2012
    %v2425 = vmul.f32 %v583, %v2016
    %v2426 = vmul.f32 %v587, %v2022
    %v2427 = vadd.f32 %v2417, %v2422
    %v2428 = vadd.f32 %v2418, %v2423
    %v2429 = vadd.f32 %v2419, %v2424
    %v2430 = vadd.f32 %v2420, %v2425
    %v2431 = vadd.f32 %v2421, %v2426
    %v2432 = vmul.f32 %v621, %v2002
    %v2433 = vmul.f32 %v625, %v2006
    %v2434 = vmul.f32 %v629, %v2012
    %v2435 = vmul.f32 %v633, %v2016
    %v2436 = vmul.f32 %v637, %v2022
    %2442 = vrot.lane.b32.xlu0 %v2432, 64
    %v2443 = vpop.permute.xlu0 %2442
    %2444 = vrot.lane.b32.xlu0 %v2433, 64
    %v2445 = vpop.permute.xlu0 %2444
    %2446 = vrot.lane.b32.xlu0 %v2434, 64
    %v2447 = vpop.permute.xlu0 %2446
    %2448 = vrot.lane.b32.xlu0 %v2435, 64
    %v2449 = vpop.permute.xlu0 %2448
    %2450 = vrot.lane.b32.xlu0 %v2436, 64
    %v2451 = vpop.permute.xlu0 %2450
    %v2457 = vadd.f32 %v2427, %v2443
    %v2458 = vadd.f32 %v2428, %v2445
    %v2459 = vadd.f32 %v2429, %v2447
    %v2460 = vadd.f32 %v2430, %v2449
    %v2461 = vadd.f32 %v2431, %v2451
    %v2462 = vmul.f32 %v671, %v2061
    %v2463 = vmul.f32 %v675, %v2065
    %v2464 = vmul.f32 %v679, %v2071
    %v2465 = vmul.f32 %v683, %v2075
    %v2466 = vmul.f32 %v687, %v2081
    %v2467 = vadd.f32 %v2457, %v2462
    %v2468 = vadd.f32 %v2458, %v2463
    %v2469 = vadd.f32 %v2459, %v2464
    %v2470 = vadd.f32 %v2460, %v2465
    %v2471 = vadd.f32 %v2461, %v2466
    %v2472 = vmul.f32 %v701, %v2061
    %v2473 = vmul.f32 %v705, %v2065
    %v2474 = vmul.f32 %v709, %v2071
    %v2475 = vmul.f32 %v713, %v2075
    %v2476 = vmul.f32 %v717, %v2081
    %2482 = vrot.lane.b32.xlu0 %v2472, 64
    %v2483 = vpop.permute.xlu0 %2482
    %2484 = vrot.lane.b32.xlu0 %v2473, 64
    %v2485 = vpop.permute.xlu0 %2484
    %2486 = vrot.lane.b32.xlu0 %v2474, 64
    %v2487 = vpop.permute.xlu0 %2486
    %2488 = vrot.lane.b32.xlu0 %v2475, 64
    %v2489 = vpop.permute.xlu0 %2488
    %2490 = vrot.lane.b32.xlu0 %v2476, 64
    %v2491 = vpop.permute.xlu0 %2490
    %v2497 = vadd.f32 %v2467, %v2483
    %v2498 = vadd.f32 %v2468, %v2485
    %v2499 = vadd.f32 %v2469, %v2487
    %v2500 = vadd.f32 %v2470, %v2489
    %v2501 = vadd.f32 %v2471, %v2491
    %v2502 = vmul.f32 %v751, %v2063
    %v2503 = vmul.f32 %v755, %v2067
    %v2504 = vmul.f32 %v759, %v2073
    %v2505 = vmul.f32 %v763, %v2077
    %v2506 = vmul.f32 %v767, %v2083
    %v2507 = vadd.f32 %v2497, %v2502
    %v2508 = vadd.f32 %v2498, %v2503
    %v2509 = vadd.f32 %v2499, %v2504
    %v2510 = vadd.f32 %v2500, %v2505
    %v2511 = vadd.f32 %v2501, %v2506
    %v2512 = vmul.f32 %v801, %v2063
    %v2513 = vmul.f32 %v805, %v2067
    %v2514 = vmul.f32 %v809, %v2073
    %v2515 = vmul.f32 %v813, %v2077
    %v2516 = vmul.f32 %v817, %v2083
    %2522 = vrot.lane.b32.xlu0 %v2512, 64
    %v2523 = vpop.permute.xlu0 %2522
    %2524 = vrot.lane.b32.xlu0 %v2513, 64
    %v2525 = vpop.permute.xlu0 %2524
    %2526 = vrot.lane.b32.xlu0 %v2514, 64
    %v2527 = vpop.permute.xlu0 %2526
    %2528 = vrot.lane.b32.xlu0 %v2515, 64
    %v2529 = vpop.permute.xlu0 %2528
    %2530 = vrot.lane.b32.xlu0 %v2516, 64
    %v2531 = vpop.permute.xlu0 %2530
    %v2537 = vadd.f32 %v2507, %v2523
    %v2538 = vadd.f32 %v2508, %v2525
    %v2539 = vadd.f32 %v2509, %v2527
    %v2540 = vadd.f32 %v2510, %v2529
    %v2541 = vadd.f32 %v2511, %v2531
    %v2542 = vmul.f32 %v851, %v2122
    %v2543 = vmul.f32 %v855, %v2126
    %v2544 = vmul.f32 %v859, %v2132
    %v2545 = vmul.f32 %v863, %v2136
    %v2546 = vmul.f32 %v867, %v2142
    %v2547 = vadd.f32 %v2537, %v2542
    %v2548 = vadd.f32 %v2538, %v2543
    %v2549 = vadd.f32 %v2539, %v2544
    %v2550 = vadd.f32 %v2540, %v2545
    %v2551 = vadd.f32 %v2541, %v2546
    %v2552 = vmul.f32 %v881, %v2122
    %v2553 = vmul.f32 %v885, %v2126
    %v2554 = vmul.f32 %v889, %v2132
    %v2555 = vmul.f32 %v893, %v2136
    %v2556 = vmul.f32 %v897, %v2142
    %2562 = vrot.lane.b32.xlu0 %v2552, 64
    %v2563 = vpop.permute.xlu0 %2562
    %2564 = vrot.lane.b32.xlu0 %v2553, 64
    %v2565 = vpop.permute.xlu0 %2564
    %2566 = vrot.lane.b32.xlu0 %v2554, 64
    %v2567 = vpop.permute.xlu0 %2566
    %2568 = vrot.lane.b32.xlu0 %v2555, 64
    %v2569 = vpop.permute.xlu0 %2568
    %2570 = vrot.lane.b32.xlu0 %v2556, 64
    %v2571 = vpop.permute.xlu0 %2570
    %v2577 = vadd.f32 %v2547, %v2563
    %v2578 = vadd.f32 %v2548, %v2565
    %v2579 = vadd.f32 %v2549, %v2567
    %v2580 = vadd.f32 %v2550, %v2569
    %v2581 = vadd.f32 %v2551, %v2571
    %v2582 = vmul.f32 %v931, %v2124
    %v2583 = vmul.f32 %v935, %v2128
    %v2584 = vmul.f32 %v939, %v2134
    %v2585 = vmul.f32 %v943, %v2138
    %v2586 = vmul.f32 %v947, %v2144
    %v2587 = vadd.f32 %v2577, %v2582
    %v2588 = vadd.f32 %v2578, %v2583
    %v2589 = vadd.f32 %v2579, %v2584
    %v2590 = vadd.f32 %v2580, %v2585
    %v2591 = vadd.f32 %v2581, %v2586
    %v2592 = vmul.f32 %v981, %v2124
    %v2593 = vmul.f32 %v985, %v2128
    %v2594 = vmul.f32 %v989, %v2134
    %v2595 = vmul.f32 %v993, %v2138
    %v2596 = vmul.f32 %v997, %v2144
    %2602 = vrot.lane.b32.xlu0 %v2592, 64
    %v2603 = vpop.permute.xlu0 %2602
    %2604 = vrot.lane.b32.xlu0 %v2593, 64
    %v2605 = vpop.permute.xlu0 %2604
    %2606 = vrot.lane.b32.xlu0 %v2594, 64
    %v2607 = vpop.permute.xlu0 %2606
    %2608 = vrot.lane.b32.xlu0 %v2595, 64
    %v2609 = vpop.permute.xlu0 %2608
    %2610 = vrot.lane.b32.xlu0 %v2596, 64
    %v2611 = vpop.permute.xlu0 %2610
    %v2617 = vadd.f32 %v2587, %v2603
    %v2618 = vadd.f32 %v2588, %v2605
    %v2619 = vadd.f32 %v2589, %v2607
    %v2620 = vadd.f32 %v2590, %v2609
    %v2621 = vadd.f32 %v2591, %v2611
    %v2622 = vmul.f32 %v1031, %v2183
    %v2623 = vmul.f32 %v1035, %v2187
    %v2624 = vmul.f32 %v1039, %v2193
    %v2625 = vmul.f32 %v1043, %v2197
    %v2626 = vmul.f32 %v1047, %v2203
    %v2627 = vadd.f32 %v2617, %v2622
    %v2628 = vadd.f32 %v2618, %v2623
    %v2629 = vadd.f32 %v2619, %v2624
    %v2630 = vadd.f32 %v2620, %v2625
    %v2631 = vadd.f32 %v2621, %v2626
    %v2632 = vmul.f32 %v1061, %v2183
    %v2633 = vmul.f32 %v1065, %v2187
    %v2634 = vmul.f32 %v1069, %v2193
    %v2635 = vmul.f32 %v1073, %v2197
    %v2636 = vmul.f32 %v1077, %v2203
    %2642 = vrot.lane.b32.xlu0 %v2632, 64
    %v2643 = vpop.permute.xlu0 %2642
    %2644 = vrot.lane.b32.xlu0 %v2633, 64
    %v2645 = vpop.permute.xlu0 %2644
    %2646 = vrot.lane.b32.xlu0 %v2634, 64
    %v2647 = vpop.permute.xlu0 %2646
    %2648 = vrot.lane.b32.xlu0 %v2635, 64
    %v2649 = vpop.permute.xlu0 %2648
    %2650 = vrot.lane.b32.xlu0 %v2636, 64
    %v2651 = vpop.permute.xlu0 %2650
    %v2657 = vadd.f32 %v2627, %v2643
    %v2658 = vadd.f32 %v2628, %v2645
    %v2659 = vadd.f32 %v2629, %v2647
    %v2660 = vadd.f32 %v2630, %v2649
    %v2661 = vadd.f32 %v2631, %v2651
    %v2662 = vmul.f32 %v1111, %v2185
    %v2663 = vmul.f32 %v1115, %v2189
    %v2664 = vmul.f32 %v1119, %v2195
    %v2665 = vmul.f32 %v1123, %v2199
    %v2666 = vmul.f32 %v1127, %v2205
    %v2667 = vadd.f32 %v2657, %v2662
    %v2668 = vadd.f32 %v2658, %v2663
    %v2669 = vadd.f32 %v2659, %v2664
    %v2670 = vadd.f32 %v2660, %v2665
    %v2671 = vadd.f32 %v2661, %v2666
    %v2672 = vmul.f32 %v1161, %v2185
    %v2673 = vmul.f32 %v1165, %v2189
    %v2674 = vmul.f32 %v1169, %v2195
    %v2675 = vmul.f32 %v1173, %v2199
    %v2676 = vmul.f32 %v1177, %v2205
    %2682 = vrot.lane.b32.xlu0 %v2672, 64
    %v2683 = vpop.permute.xlu0 %2682
    %2684 = vrot.lane.b32.xlu0 %v2673, 64
    %v2685 = vpop.permute.xlu0 %2684
    %2686 = vrot.lane.b32.xlu0 %v2674, 64
    %v2687 = vpop.permute.xlu0 %2686
    %2688 = vrot.lane.b32.xlu0 %v2675, 64
    %v2689 = vpop.permute.xlu0 %2688
    %2690 = vrot.lane.b32.xlu0 %v2676, 64
    %v2691 = vpop.permute.xlu0 %2690
    %v2697 = vadd.f32 %v2667, %v2683
    %v2698 = vadd.f32 %v2668, %v2685
    %v2699 = vadd.f32 %v2669, %v2687
    %v2700 = vadd.f32 %v2670, %v2689
    %v2701 = vadd.f32 %v2671, %v2691
    %v2702 = vmul.f32 %v1211, %v2244
    %v2703 = vmul.f32 %v1215, %v2248
    %v2704 = vmul.f32 %v1219, %v2254
    %v2705 = vmul.f32 %v1223, %v2258
    %v2706 = vmul.f32 %v1227, %v2264
    %v2707 = vadd.f32 %v2697, %v2702
    %v2708 = vadd.f32 %v2698, %v2703
    %v2709 = vadd.f32 %v2699, %v2704
    %v2710 = vadd.f32 %v2700, %v2705
    %v2711 = vadd.f32 %v2701, %v2706
    %v2712 = vmul.f32 %v1241, %v2244
    %v2713 = vmul.f32 %v1245, %v2248
    %v2714 = vmul.f32 %v1249, %v2254
    %v2715 = vmul.f32 %v1253, %v2258
    %v2716 = vmul.f32 %v1257, %v2264
    %2722 = vrot.lane.b32.xlu0 %v2712, 64
    %v2723 = vpop.permute.xlu0 %2722
    %2724 = vrot.lane.b32.xlu0 %v2713, 64
    %v2725 = vpop.permute.xlu0 %2724
    %2726 = vrot.lane.b32.xlu0 %v2714, 64
    %v2727 = vpop.permute.xlu0 %2726
    %2728 = vrot.lane.b32.xlu0 %v2715, 64
    %v2729 = vpop.permute.xlu0 %2728
    %2730 = vrot.lane.b32.xlu0 %v2716, 64
    %v2731 = vpop.permute.xlu0 %2730
    %v2737 = vadd.f32 %v2707, %v2723
    %v2738 = vadd.f32 %v2708, %v2725
    %v2739 = vadd.f32 %v2709, %v2727
    %v2740 = vadd.f32 %v2710, %v2729
    %v2741 = vadd.f32 %v2711, %v2731
    %v2742 = vmul.f32 %v1291, %v2246
    %v2743 = vmul.f32 %v1295, %v2250
    %v2744 = vmul.f32 %v1299, %v2256
    %v2745 = vmul.f32 %v1303, %v2260
    %v2746 = vmul.f32 %v1307, %v2266
    %v2747 = vadd.f32 %v2737, %v2742
    %v2748 = vadd.f32 %v2738, %v2743
    %v2749 = vadd.f32 %v2739, %v2744
    %v2750 = vadd.f32 %v2740, %v2745
    %v2751 = vadd.f32 %v2741, %v2746
    %v2752 = vmul.f32 %v1341, %v2246
    %v2753 = vmul.f32 %v1345, %v2250
    %v2754 = vmul.f32 %v1349, %v2256
    %v2755 = vmul.f32 %v1353, %v2260
    %v2756 = vmul.f32 %v1357, %v2266
    %2762 = vrot.lane.b32.xlu0 %v2752, 64
    %v2763 = vpop.permute.xlu0 %2762
    %2764 = vrot.lane.b32.xlu0 %v2753, 64
    %v2765 = vpop.permute.xlu0 %2764
    %2766 = vrot.lane.b32.xlu0 %v2754, 64
    %v2767 = vpop.permute.xlu0 %2766
    %2768 = vrot.lane.b32.xlu0 %v2755, 64
    %v2769 = vpop.permute.xlu0 %2768
    %2770 = vrot.lane.b32.xlu0 %v2756, 64
    %v2771 = vpop.permute.xlu0 %2770
    %v2777 = vadd.f32 %v2747, %v2763
    %v2778 = vadd.f32 %v2748, %v2765
    %v2779 = vadd.f32 %v2749, %v2767
    %v2780 = vadd.f32 %v2750, %v2769
    %v2781 = vadd.f32 %v2751, %v2771
    %v2782 = vmul.f32 %v1391, %v2305
    %v2783 = vmul.f32 %v1395, %v2309
    %v2784 = vmul.f32 %v1399, %v2315
    %v2785 = vmul.f32 %v1403, %v2319
    %v2786 = vmul.f32 %v1407, %v2325
    %v2787 = vadd.f32 %v2777, %v2782
    %v2788 = vadd.f32 %v2778, %v2783
    %v2789 = vadd.f32 %v2779, %v2784
    %v2790 = vadd.f32 %v2780, %v2785
    %v2791 = vadd.f32 %v2781, %v2786
    %v2792 = vmul.f32 %v1421, %v2305
    %v2793 = vmul.f32 %v1425, %v2309
    %v2794 = vmul.f32 %v1429, %v2315
    %v2795 = vmul.f32 %v1433, %v2319
    %v2796 = vmul.f32 %v1437, %v2325
    %2802 = vrot.lane.b32.xlu0 %v2792, 64
    %v2803 = vpop.permute.xlu0 %2802
    %2804 = vrot.lane.b32.xlu0 %v2793, 64
    %v2805 = vpop.permute.xlu0 %2804
    %2806 = vrot.lane.b32.xlu0 %v2794, 64
    %v2807 = vpop.permute.xlu0 %2806
    %2808 = vrot.lane.b32.xlu0 %v2795, 64
    %v2809 = vpop.permute.xlu0 %2808
    %2810 = vrot.lane.b32.xlu0 %v2796, 64
    %v2811 = vpop.permute.xlu0 %2810
    %v2817 = vadd.f32 %v2787, %v2803
    %v2818 = vadd.f32 %v2788, %v2805
    %v2819 = vadd.f32 %v2789, %v2807
    %v2820 = vadd.f32 %v2790, %v2809
    %v2821 = vadd.f32 %v2791, %v2811
    %v2822 = vmul.f32 %v1471, %v2307
    %v2823 = vmul.f32 %v1475, %v2311
    %v2824 = vmul.f32 %v1479, %v2317
    %v2825 = vmul.f32 %v1483, %v2321
    %v2826 = vmul.f32 %v1487, %v2327
    %v2827 = vadd.f32 %v2817, %v2822
    %v2828 = vadd.f32 %v2818, %v2823
    %v2829 = vadd.f32 %v2819, %v2824
    %v2830 = vadd.f32 %v2820, %v2825
    %v2831 = vadd.f32 %v2821, %v2826
    %v2832 = vmul.f32 %v1521, %v2307
    %v2833 = vmul.f32 %v1525, %v2311
    %v2834 = vmul.f32 %v1529, %v2317
    %v2835 = vmul.f32 %v1533, %v2321
    %v2836 = vmul.f32 %v1537, %v2327
    %2842 = vrot.lane.b32.xlu0 %v2832, 64
    %v2843 = vpop.permute.xlu0 %2842
    %2844 = vrot.lane.b32.xlu0 %v2833, 64
    %v2845 = vpop.permute.xlu0 %2844
    %2846 = vrot.lane.b32.xlu0 %v2834, 64
    %v2847 = vpop.permute.xlu0 %2846
    %2848 = vrot.lane.b32.xlu0 %v2835, 64
    %v2849 = vpop.permute.xlu0 %2848
    %2850 = vrot.lane.b32.xlu0 %v2836, 64
    %v2851 = vpop.permute.xlu0 %2850
    %v2857 = vadd.f32 %v2827, %v2843
    %v2858 = vadd.f32 %v2828, %v2845
    %v2859 = vadd.f32 %v2829, %v2847
    %v2860 = vadd.f32 %v2830, %v2849
    %v2861 = vadd.f32 %v2831, %v2851
    %v2862 = vmul.f32 %v1571, %v2366
    %v2863 = vmul.f32 %v1575, %v2369
    %v2864 = vmul.f32 %v1579, %v2374
    %v2865 = vmul.f32 %v1583, %v2377
    %v2866 = vmul.f32 %v1587, %v2382
    %v2867 = vadd.f32 %v2857, %v2862
    %v2868 = vadd.f32 %v2858, %v2863
    %v2869 = vadd.f32 %v2859, %v2864
    %v2870 = vadd.f32 %v2860, %v2865
    %v2871 = vadd.f32 %v2861, %v2866
    %v2872 = vpack.c.bf16 %v2868, %v2867
    %v2873 = vpack.c.bf16 %v2870, %v2869
    %v2874 = vpack.c.bf16 %v2871, %v2871
    %v2876 = vsel %vm1613, %v2874, 0
    %2878 = vmatprep.subr.bf16.mxu0 0
    %2879 = vmatpush1.bf16.msra.mxu0 0
    %2880 = vmatprep.subr.bf16.mxu0 0
    %2881 = vmatpush1.bf16.msra.mxu0 0
    %2882 = vmatprep.subr.bf16.mxu0 0
    %2883 = vmatpush1.bf16.msra.mxu0 0
    %2884 = vmatprep.subr.bf16.mxu0 0
    %2885 = vmatpush1.bf16.msra.mxu0 0
    %2886 = vmatprep.subr.bf16.mxu0 0
    %2887 = vmatpush1.bf16.msra.mxu0 0
    %2888 = vmatprep.subr.bf16.mxu0 0
    %2889 = vmatpush1.bf16.msra.mxu0 %v2876
    %2890 = vmatprep.subr.bf16.mxu0 0
    %2891 = vmatpush1.bf16.msra.mxu0 %v2873
    %2892 = vmatprep.subr.bf16.mxu0 0
    %2893 = vmatpush1.bf16.msra.mxu0 %v2872
    %2894 = vmatprep.subr.bf16.mxu0 0
    %2895 = vmatpush2.bf16.msra.mxu0 0
    %2896 = vmatprep.subr.bf16.mxu0 0
    %2897 = vmatpush2.bf16.msra.mxu0 0
    %2898 = vmatprep.subr.bf16.mxu0 0
    %2899 = vmatpush2.bf16.msra.mxu0 0
    %2900 = vmatprep.subr.bf16.mxu0 0
    %2901 = vmatpush2.bf16.msra.mxu0 0
    %2902 = vmatprep.subr.bf16.mxu0 0
    %2903 = vmatpush2.bf16.msra.mxu0 0
    %2904 = vmatprep.subr.bf16.mxu0 0
    %2905 = vmatpush2.bf16.msra.mxu0 0
    %2906 = vmatprep.subr.bf16.mxu0 0
    %2907 = vmatpush2.bf16.msra.mxu0 0
    %2908 = vmatprep.subr.bf16.mxu0 0
    %2909 = vmatpush2.bf16.msra.mxu0 0
    %2910 = vmatprep.mubr.bf16.mxu0 0
    %2911 = vmatmul.mubr.bf16.gmra.mxu0 %v1611
    %v2912 = vpop.f32.mrf.mxu0
    %v2913 = vadd.f32 0.0, %v2912
    %v2914 = vpop.f32.mrf.mxu0
    %v2915 = vpop.f32.mrf.mxu0
    %v2916 = vadd.f32 0.0, %v2915
    %v2917 = vpop.f32.mrf.mxu0
    %2918 = vdwg.mxu0
    %v2919 = vmul.f32 %v2913, %v1663
    %v2920 = vmul.f32 %v2916, %v1668
    %v2921 = vld [vmem:[%s11] sm:$0xf]
    %v2922 = vld [vmem:[%s11 + $0x4] sm:$0xf]
    %v2923 = vld [vmem:[%s11 + $0x8] sm:$0xf]
    %v2924 = vld [vmem:[%s11 + $0xc] sm:$0xf]
    %v2929 = vunpack.c.l.b16 %v2921
    %v2930 = vunpack.c.l.b16 %v2922
    %v2931 = vunpack.c.l.b16 %v2923
    %v2932 = vunpack.c.l.b16 %v2924
    %v2933 = vpack.c.b16 %v2930, %v2929
    %v2934 = vpack.c.b16 %v2932, %v2931
    %v2937 = vsel %vm1955, %v1732, 0
    %2939 = vmatprep.subr.bf16.mxu0 0
    %2940 = vmatpush1.bf16.msra.mxu0 0
    %2941 = vmatprep.subr.bf16.mxu0 0
    %2942 = vmatpush1.bf16.msra.mxu0 0
    %2943 = vmatprep.subr.bf16.mxu0 0
    %2944 = vmatpush1.bf16.msra.mxu0 0
    %2945 = vmatprep.subr.bf16.mxu0 0
    %2946 = vmatpush1.bf16.msra.mxu0 0
    %2947 = vmatprep.subr.bf16.mxu0 0
    %2948 = vmatpush1.bf16.msra.mxu0 0
    %2949 = vmatprep.subr.bf16.mxu0 0
    %2950 = vmatpush1.bf16.msra.mxu0 0
    %2951 = vmatprep.subr.bf16.mxu0 0
    %2952 = vmatpush1.bf16.msra.mxu0 %v2934
    %2953 = vmatprep.subr.bf16.mxu0 0
    %2954 = vmatpush1.bf16.msra.mxu0 %v2933
    %2955 = vmatprep.subr.bf16.mxu0 0
    %2956 = vmatpush2.bf16.msra.mxu0 0
    %2957 = vmatprep.subr.bf16.mxu0 0
    %2958 = vmatpush2.bf16.msra.mxu0 0
    %2959 = vmatprep.subr.bf16.mxu0 0
    %2960 = vmatpush2.bf16.msra.mxu0 0
    %2961 = vmatprep.subr.bf16.mxu0 0
    %2962 = vmatpush2.bf16.msra.mxu0 0
    %2963 = vmatprep.subr.bf16.mxu0 0
    %2964 = vmatpush2.bf16.msra.mxu0 0
    %2965 = vmatprep.subr.bf16.mxu0 0
    %2966 = vmatpush2.bf16.msra.mxu0 0
    %2967 = vmatprep.subr.bf16.mxu0 0
    %2968 = vmatpush2.bf16.msra.mxu0 0
    %2969 = vmatprep.subr.bf16.mxu0 0
    %2970 = vmatpush2.bf16.msra.mxu0 0
    %2971 = vmatprep.mubr.bf16.mxu0 0
    %2972 = vmatmul.mubr.bf16.gmra.mxu0 %v2937
    %v2973 = vpop.f32.mrf.mxu0
    %v2974 = vadd.f32 0.0, %v2973
    %v2975 = vpop.f32.mrf.mxu0
    %v2976 = vpop.f32.mrf.mxu0
    %v2977 = vadd.f32 0.0, %v2976
    %v2978 = vpop.f32.mrf.mxu0
    %2979 = vdwg.mxu0
    %v2980 = vadd.f32 %v2919, %v2974
    %v2981 = vadd.f32 %v2920, %v2977
    %v2982 = vld [vmem:[%s12] sm:$0x1]
    %v2984 = vlaneseq
    %v2985 = vshrl.u32 %v2984, 7
    %v2986 = vsub.s32 0, %v2985
    %v2987 = vrot.slane %v2982, %v2986
    %v2989 = vadd.f32 %v2980, %v2987
    %v2990 = vadd.f32 %v2981, %v2987
    %v2991 = vmax.f32 %v2989, 0.0
    %v2992 = vmax.f32 %v2990, 0.0
    %v2993 = vld [vmem:[%s5] sm:$0x1]
    %v2994 = vpack.c.bf16 %v2992, %v2991
    %v2996 = vsel %vm108, %v2993, 0
    %v2999 = vsel %vm118, %v2994, 0
    %3001 = vmatprep.subr.bf16.mxu0 0
    %3002 = vmatpush1.bf16.msra.mxu0 0
    %3003 = vmatprep.subr.bf16.mxu0 0
    %3004 = vmatpush1.bf16.msra.mxu0 0
    %3005 = vmatprep.subr.bf16.mxu0 0
    %3006 = vmatpush1.bf16.msra.mxu0 0
    %3007 = vmatprep.subr.bf16.mxu0 0
    %3008 = vmatpush1.bf16.msra.mxu0 0
    %3009 = vmatprep.subr.bf16.mxu0 0
    %3010 = vmatpush1.bf16.msra.mxu0 0
    %3011 = vmatprep.subr.bf16.mxu0 0
    %3012 = vmatpush1.bf16.msra.mxu0 0
    %3013 = vmatprep.subr.bf16.mxu0 0
    %3014 = vmatpush1.bf16.msra.mxu0 0
    %3015 = vmatprep.subr.bf16.mxu0 0
    %3016 = vmatpush1.bf16.msra.mxu0 %v2999
    %3017 = vmatprep.subr.bf16.mxu0 0
    %3018 = vmatpush2.bf16.msra.mxu0 0
    %3019 = vmatprep.subr.bf16.mxu0 0
    %3020 = vmatpush2.bf16.msra.mxu0 0
    %3021 = vmatprep.subr.bf16.mxu0 0
    %3022 = vmatpush2.bf16.msra.mxu0 0
    %3023 = vmatprep.subr.bf16.mxu0 0
    %3024 = vmatpush2.bf16.msra.mxu0 0
    %3025 = vmatprep.subr.bf16.mxu0 0
    %3026 = vmatpush2.bf16.msra.mxu0 0
    %3027 = vmatprep.subr.bf16.mxu0 0
    %3028 = vmatpush2.bf16.msra.mxu0 0
    %3029 = vmatprep.subr.bf16.mxu0 0
    %3030 = vmatpush2.bf16.msra.mxu0 0
    %3031 = vmatprep.subr.bf16.mxu0 0
    %3032 = vmatpush2.bf16.msra.mxu0 0
    %3033 = vmatprep.mubr.bf16.mxu0 0
    %3034 = vmatmul.mubr.bf16.gmra.mxu0 %v2996
    %v3035 = vpop.f32.mrf.mxu0
    %v3036 = vadd.f32 0.0, %v3035
    %v3037 = vpop.f32.mrf.mxu0
    %v3038 = vpop.f32.mrf.mxu0
    %v3039 = vpop.f32.mrf.mxu0
    %3040 = vdwg.mxu0
    %v3041 = vld [vmem:[%s6] sm:$0x3]
    %3043 = vset.pattern.permute.xlu0 0
    %3044 = vperm.xlu0 %3043, %v3041
    %v3045 = vpop.permute.xlu0 %3044
    %v3047 = vmul.f32 %v3036, %v3045
    %v3048 = vpack.c.bf16 %v3047, %v3047
    %v3049 = vld [vmem:[%s13] sm:$0xf]
    %v3050 = vld [vmem:[%s13 + $0x4] sm:$0xf]
    %v3051 = vld [vmem:[%s13 + $0x8] sm:$0xf]
    %v3052 = vld [vmem:[%s13 + $0xc] sm:$0xf]
    %v3053 = vld [vmem:[%s13 + $0x10] sm:$0xf]
    %v3054 = vld [vmem:[%s13 + $0x14] sm:$0xf]
    %v3055 = vld [vmem:[%s13 + $0x18] sm:$0xf]
    %v3056 = vld [vmem:[%s13 + $0x1c] sm:$0xf]
    %v3057 = vld [vmem:[%s14] sm:$0x1]
    %v3059 = vlaneseq
    %v3060 = vshrl.u32 %v3059, 7
    %v3061 = vsub.s32 0, %v3060
    %v3062 = vrot.slane %v3057, %v3061
    %v3072 = vunpack.c.l.b16 %v3049
    %v3073 = vunpack.c.l.b16 %v3050
    %v3074 = vunpack.c.l.b16 %v3051
    %v3075 = vunpack.c.l.b16 %v3052
    %v3076 = vunpack.c.l.b16 %v3053
    %v3077 = vunpack.c.l.b16 %v3054
    %v3078 = vunpack.c.l.b16 %v3055
    %v3079 = vunpack.c.l.b16 %v3056
    %v3080 = vpack.c.b16 %v3073, %v3072
    %v3081 = vpack.c.b16 %v3075, %v3074
    %v3082 = vpack.c.b16 %v3077, %v3076
    %v3083 = vpack.c.b16 %v3079, %v3078
    %vm3088 = vcmask 523264
    %v3090 = vsel %vm3088, %v3048, 0
    %3092 = vmatprep.subr.bf16.mxu0 0
    %3093 = vmatpush1.bf16.msra.mxu0 0
    %3094 = vmatprep.subr.bf16.mxu0 0
    %3095 = vmatpush1.bf16.msra.mxu0 0
    %3096 = vmatprep.subr.bf16.mxu0 0
    %3097 = vmatpush1.bf16.msra.mxu0 0
    %3098 = vmatprep.subr.bf16.mxu0 0
    %3099 = vmatpush1.bf16.msra.mxu0 0
    %3100 = vmatprep.subr.bf16.mxu0 0
    %3101 = vmatpush1.bf16.msra.mxu0 %v3083
    %3102 = vmatprep.subr.bf16.mxu0 0
    %3103 = vmatpush1.bf16.msra.mxu0 %v3082
    %3104 = vmatprep.subr.bf16.mxu0 0
    %3105 = vmatpush1.bf16.msra.mxu0 %v3081
    %3106 = vmatprep.subr.bf16.mxu0 0
    %3107 = vmatpush1.bf16.msra.mxu0 %v3080
    %3108 = vmatprep.subr.bf16.mxu0 0
    %3109 = vmatpush2.bf16.msra.mxu0 0
    %3110 = vmatprep.subr.bf16.mxu0 0
    %3111 = vmatpush2.bf16.msra.mxu0 0
    %3112 = vmatprep.subr.bf16.mxu0 0
    %3113 = vmatpush2.bf16.msra.mxu0 0
    %3114 = vmatprep.subr.bf16.mxu0 0
    %3115 = vmatpush2.bf16.msra.mxu0 0
    %3116 = vmatprep.subr.bf16.mxu0 0
    %3117 = vmatpush2.bf16.msra.mxu0 0
    %3118 = vmatprep.subr.bf16.mxu0 0
    %3119 = vmatpush2.bf16.msra.mxu0 0
    %3120 = vmatprep.subr.bf16.mxu0 0
    %3121 = vmatpush2.bf16.msra.mxu0 0
    %3122 = vmatprep.subr.bf16.mxu0 0
    %3123 = vmatpush2.bf16.msra.mxu0 0
    %3124 = vmatprep.mubr.bf16.mxu0 0
    %3125 = vmatmul.mubr.bf16.gmra.mxu0 %v3090
    %v3126 = vpop.f32.mrf.mxu0
    %v3127 = vadd.f32 %v3062, %v3126
    %v3128 = vpop.f32.mrf.mxu0
    %v3129 = vpop.f32.mrf.mxu0
    %v3130 = vpop.f32.mrf.mxu0
    %3131 = vdwg.mxu0
    %v3132 = vxor.u32 %v3127, 2147483648
    %v3133 = vmul.f32 %v3132, 1.442695
    %v3134 = vpow.pop %v3133
    %v3135 = vadd.f32 %v3134, 1.0
    %v3136 = vrcp.pop %v3135
    %v3137 = vmul.f32 1.0, %v3136
    %v3138 = vmul.f32 %v3047, %v3137
    %v3139 = vpack.c.bf16 %v3138, %v3138
    %v3140 = vld [vmem:[%s15] sm:$0xf]
    %v3141 = vld [vmem:[%s15 + $0x4] sm:$0xf]
    %v3142 = vld [vmem:[%s15 + $0x8] sm:$0xf]
    %v3143 = vld [vmem:[%s15 + $0xc] sm:$0xf]
    %v3144 = vld [vmem:[%s15 + $0x10] sm:$0xf]
    %v3145 = vld [vmem:[%s15 + $0x14] sm:$0xf]
    %v3146 = vld [vmem:[%s15 + $0x18] sm:$0xf]
    %v3147 = vld [vmem:[%s15 + $0x1c] sm:$0xf]
    %v3148 = vld [vmem:[%s16] sm:$0x1]
    %v3150 = vlaneseq
    %v3151 = vshrl.u32 %v3150, 7
    %v3152 = vsub.s32 0, %v3151
    %v3153 = vrot.slane %v3148, %v3152
    %v3163 = vunpack.c.l.b16 %v3140
    %v3164 = vunpack.c.l.b16 %v3141
    %v3165 = vunpack.c.l.b16 %v3142
    %v3166 = vunpack.c.l.b16 %v3143
    %v3167 = vunpack.c.l.b16 %v3144
    %v3168 = vunpack.c.l.b16 %v3145
    %v3169 = vunpack.c.l.b16 %v3146
    %v3170 = vunpack.c.l.b16 %v3147
    %v3171 = vpack.c.b16 %v3164, %v3163
    %v3172 = vpack.c.b16 %v3166, %v3165
    %v3173 = vpack.c.b16 %v3168, %v3167
    %v3174 = vpack.c.b16 %v3170, %v3169
    %v3180 = vsel %vm3088, %v3139, 0
    %3182 = vmatprep.subr.bf16.mxu0 0
    %3183 = vmatpush1.bf16.msra.mxu0 0
    %3184 = vmatprep.subr.bf16.mxu0 0
    %3185 = vmatpush1.bf16.msra.mxu0 0
    %3186 = vmatprep.subr.bf16.mxu0 0
    %3187 = vmatpush1.bf16.msra.mxu0 0
    %3188 = vmatprep.subr.bf16.mxu0 0
    %3189 = vmatpush1.bf16.msra.mxu0 0
    %3190 = vmatprep.subr.bf16.mxu0 0
    %3191 = vmatpush1.bf16.msra.mxu0 %v3174
    %3192 = vmatprep.subr.bf16.mxu0 0
    %3193 = vmatpush1.bf16.msra.mxu0 %v3173
    %3194 = vmatprep.subr.bf16.mxu0 0
    %3195 = vmatpush1.bf16.msra.mxu0 %v3172
    %3196 = vmatprep.subr.bf16.mxu0 0
    %3197 = vmatpush1.bf16.msra.mxu0 %v3171
    %3198 = vmatprep.subr.bf16.mxu0 0
    %3199 = vmatpush2.bf16.msra.mxu0 0
    %3200 = vmatprep.subr.bf16.mxu0 0
    %3201 = vmatpush2.bf16.msra.mxu0 0
    %3202 = vmatprep.subr.bf16.mxu0 0
    %3203 = vmatpush2.bf16.msra.mxu0 0
    %3204 = vmatprep.subr.bf16.mxu0 0
    %3205 = vmatpush2.bf16.msra.mxu0 0
    %3206 = vmatprep.subr.bf16.mxu0 0
    %3207 = vmatpush2.bf16.msra.mxu0 0
    %3208 = vmatprep.subr.bf16.mxu0 0
    %3209 = vmatpush2.bf16.msra.mxu0 0
    %3210 = vmatprep.subr.bf16.mxu0 0
    %3211 = vmatpush2.bf16.msra.mxu0 0
    %3212 = vmatprep.subr.bf16.mxu0 0
    %3213 = vmatpush2.bf16.msra.mxu0 0
    %3214 = vmatprep.mubr.bf16.mxu0 0
    %3215 = vmatmul.mubr.bf16.gmra.mxu0 %v3180
    %v3216 = vpop.f32.mrf.mxu0
    %v3217 = vadd.f32 %v3153, %v3216
    %v3218 = vpop.f32.mrf.mxu0
    %v3219 = vpop.f32.mrf.mxu0
    %v3220 = vpop.f32.mrf.mxu0
    %3221 = vdwg.mxu0
    %v3222 = vxor.u32 %v3217, 2147483648
    %v3223 = vmul.f32 %v3222, 1.442695
    %v3224 = vpow.pop %v3223
    %v3225 = vadd.f32 %v3224, 1.0
    %v3226 = vrcp.pop %v3225
    %v3227 = vmul.f32 1.0, %v3226
    %v3228 = vmul.f32 %v3138, %v3227
    %v3229 = vpack.c.bf16 %v3228, %v3228
    %v3230 = vld [vmem:[%s17] sm:$0xf]
    %v3231 = vld [vmem:[%s17 + $0x4] sm:$0xf]
    %v3232 = vld [vmem:[%s17 + $0x8] sm:$0xf]
    %v3233 = vld [vmem:[%s17 + $0xc] sm:$0xf]
    %v3234 = vld [vmem:[%s17 + $0x10] sm:$0xf]
    %v3235 = vld [vmem:[%s17 + $0x14] sm:$0xf]
    %v3236 = vld [vmem:[%s17 + $0x18] sm:$0xf]
    %v3237 = vld [vmem:[%s17 + $0x1c] sm:$0xf]
    %v3238 = vld [vmem:[%s18] sm:$0x1]
    %v3240 = vlaneseq
    %v3241 = vshrl.u32 %v3240, 7
    %v3242 = vsub.s32 0, %v3241
    %v3243 = vrot.slane %v3238, %v3242
    %v3253 = vunpack.c.l.b16 %v3230
    %v3254 = vunpack.c.l.b16 %v3231
    %v3255 = vunpack.c.l.b16 %v3232
    %v3256 = vunpack.c.l.b16 %v3233
    %v3257 = vunpack.c.l.b16 %v3234
    %v3258 = vunpack.c.l.b16 %v3235
    %v3259 = vunpack.c.l.b16 %v3236
    %v3260 = vunpack.c.l.b16 %v3237
    %v3261 = vpack.c.b16 %v3254, %v3253
    %v3262 = vpack.c.b16 %v3256, %v3255
    %v3263 = vpack.c.b16 %v3258, %v3257
    %v3264 = vpack.c.b16 %v3260, %v3259
    %v3270 = vsel %vm3088, %v3229, 0
    %3272 = vmatprep.subr.bf16.mxu0 0
    %3273 = vmatpush1.bf16.msra.mxu0 0
    %3274 = vmatprep.subr.bf16.mxu0 0
    %3275 = vmatpush1.bf16.msra.mxu0 0
    %3276 = vmatprep.subr.bf16.mxu0 0
    %3277 = vmatpush1.bf16.msra.mxu0 0
    %3278 = vmatprep.subr.bf16.mxu0 0
    %3279 = vmatpush1.bf16.msra.mxu0 0
    %3280 = vmatprep.subr.bf16.mxu0 0
    %3281 = vmatpush1.bf16.msra.mxu0 %v3264
    %3282 = vmatprep.subr.bf16.mxu0 0
    %3283 = vmatpush1.bf16.msra.mxu0 %v3263
    %3284 = vmatprep.subr.bf16.mxu0 0
    %3285 = vmatpush1.bf16.msra.mxu0 %v3262
    %3286 = vmatprep.subr.bf16.mxu0 0
    %3287 = vmatpush1.bf16.msra.mxu0 %v3261
    %3288 = vmatprep.subr.bf16.mxu0 0
    %3289 = vmatpush2.bf16.msra.mxu0 0
    %3290 = vmatprep.subr.bf16.mxu0 0
    %3291 = vmatpush2.bf16.msra.mxu0 0
    %3292 = vmatprep.subr.bf16.mxu0 0
    %3293 = vmatpush2.bf16.msra.mxu0 0
    %3294 = vmatprep.subr.bf16.mxu0 0
    %3295 = vmatpush2.bf16.msra.mxu0 0
    %3296 = vmatprep.subr.bf16.mxu0 0
    %3297 = vmatpush2.bf16.msra.mxu0 0
    %3298 = vmatprep.subr.bf16.mxu0 0
    %3299 = vmatpush2.bf16.msra.mxu0 0
    %3300 = vmatprep.subr.bf16.mxu0 0
    %3301 = vmatpush2.bf16.msra.mxu0 0
    %3302 = vmatprep.subr.bf16.mxu0 0
    %3303 = vmatpush2.bf16.msra.mxu0 0
    %3304 = vmatprep.mubr.bf16.mxu0 0
    %3305 = vmatmul.mubr.bf16.gmra.mxu0 %v3270
    %v3306 = vpop.f32.mrf.mxu0
    %v3307 = vadd.f32 %v3243, %v3306
    %v3308 = vpop.f32.mrf.mxu0
    %v3309 = vpop.f32.mrf.mxu0
    %v3310 = vpop.f32.mrf.mxu0
    %3311 = vdwg.mxu0
    %vm3312 = vcmask 74752
    %v3313 = vsel %vm3312, %v3307, -inf
    %3314 = vmax.xlane.f32.xlu0 %v3313
    %v3315 = vpop.xlane.xlu0 %3314
    %v3316 = vsub.f32 %v3307, %v3315
    %v3317 = vmul.f32 %v3316, 1.442695
    %v3318 = vpow.pop %v3317
    %v3319 = vsel %vm3312, %v3318, 0.0
    %3320 = vadd.xlane.f32.xlu0 %v3319
    %v3321 = vpop.xlane.xlu0 %3320
    %v3322 = vlog2.pop %v3321
    %v3323 = vmul.f32 %v3322, 0.6931472
    %v3324 = vsub.f32 %v3316, %v3323
    %3325 = vst.msk [vmem:[#allocation5] sm:$0x3] %vm3312, %v3324
    // Predicated region
    $region82: #{tpu_custom_call.1} parent=1 // pred_check
      _
    $region83: #{tpu_custom_call.1} parent=1 // pred_check_branch
      %3327 = sbr.rel (0) target = $region85
    $region84: #{tpu_custom_call.1} parent=1 // pred_region
      %s3329 = ssub.s32 32, 32
      %3330 = vsyncadd [#allocation4], %s3329
      %s3332 = sshll.u32 [#allocation5], 4
      %s3333 = int_to_ptr.vmem [resolvable:$true] %s3332
      %3335 = dma.vmem_to_hbm [thread:$0]  %s3333, 32, %s19, [#allocation4]
    $region85: #{tpu_custom_call.1} parent=1 // pred_fallthru
      _
    // Predicated region
    $region86: #{tpu_custom_call.1} parent=1 // pred_check
      _
    $region87: #{tpu_custom_call.1} parent=1 // pred_check_branch
      %3337 = sbr.rel (0) target = $region89
    $region88: #{tpu_custom_call.1} parent=1 // pred_region
      %3338 = dma.done [#allocation4], 32
    $region89: #{tpu_custom_call.1} parent=1 // pred_fallthru
      _
    %3339 = vsyncpa [#allocation3], 1
    %3340 = vsyncpa [#allocation4], 1

</llo_original>
